<compile_context>
chip_gen: v7x
topology: tpu7x:2x2x1
jax: 0.10.0
libtpu: 0.0.40
codegen_flags: <defaults>
</compile_context>

<pallas_src>
import numpy as np
import jax
import jax.numpy as jnp
from jax import lax
from jax.experimental import pallas as pl
from jax.experimental.pallas import tpu as pltpu


def _lstm_kernel(x_ref, w1x_ref, b1_ref, wrec_ref, w2x_ref, b2_ref,
                 wfc_ref, bfc_ref, out_ref, xp_ref):
    TB = x_ref.shape[0]
    H4 = w1x_ref.shape[1]          # 4H, gate order [i, f, o, g]
    H = H4 // 4
    B = out_ref.shape[0]
    T = TB // B

    # Hoisted layer-1 input projection for all timesteps (bias folded in):
    # one MXU-friendly (T*B, D) @ (D, 4H) matmul instead of T tiny ones.
    xp_ref[...] = (jnp.dot(x_ref[...], w1x_ref[...],
                           preferred_element_type=jnp.float32) + b1_ref[...])

    wrec = wrec_ref[...]                              # (2H, 8H) = block_diag(w1h, w2h)
    w2x = w2x_ref[...]                                # (H, 4H)
    b2 = jnp.broadcast_to(b2_ref[...], (B, H4))       # hoisted broadcast

    def lstm_gates(g, c_prev):
        # [i, f, o, g] order: one sigmoid over (B, 3H), one tanh over (B, H).
        sg = jax.nn.sigmoid(g[:, :3 * H])
        gg = jnp.tanh(g[:, 3 * H:])
        i_g = sg[:, 0 * H:1 * H]
        f_g = sg[:, 1 * H:2 * H]
        o_g = sg[:, 2 * H:3 * H]
        c_new = f_g * c_prev + i_g * gg
        h_new = o_g * jnp.tanh(c_new)
        return h_new, c_new

    def step(t, carry):
        h1, c1, h2, c2 = carry
        # Fused recurrent matmul for both layers: (B, 2H) @ (2H, 8H).
        rec = jnp.dot(jnp.concatenate([h1, h2], axis=1), wrec,
                      preferred_element_type=jnp.float32)        # (B, 8H)
        g1 = xp_ref[pl.ds(t * B, B), :] + rec[:, :H4]
        h1n, c1n = lstm_gates(g1, c1)
        g2 = (jnp.dot(h1n, w2x, preferred_element_type=jnp.float32)
              + b2 + rec[:, H4:])
        h2n, c2n = lstm_gates(g2, c2)
        return h1n, c1n, h2n, c2n

    z = jnp.zeros((B, H), jnp.float32)
    _, _, h2, _ = lax.fori_loop(0, T, step, (z, z, z, z), unroll=True)

    # FC + sigmoid head on the final layer-2 hidden state.
    out_ref[...] = jax.nn.sigmoid(
        jnp.dot(h2, wfc_ref[...], preferred_element_type=jnp.float32)
        + bfc_ref[...])


def stock_price_lstm_forward(x, params):
    """x: (B, T, D) float32, batch-first like the PyTorch module."""
    B, T, D = x.shape
    H = params["w2x"].shape[0]
    H4 = 4 * H
    out_dim = params["wfc"].shape[1]

    # Time-major, flattened to (T*B, D) so the hoisted input projection is one matmul.
    x_tm = jnp.transpose(x, (1, 0, 2)).reshape(T * B, D)

    vmem = lambda: pl.BlockSpec(memory_space=pltpu.MemorySpace.VMEM)
    return pl.pallas_call(
        _lstm_kernel,
        out_shape=jax.ShapeDtypeStruct((B, out_dim), jnp.float32),
        in_specs=[vmem() for _ in range(8)],
        out_specs=vmem(),
        scratch_shapes=[pltpu.VMEM((T * B, H4), jnp.float32)],
    )(x_tm, params["w1x"], params["b1"], params["wrec"],
      params["w2x"], params["b2"], params["wfc"], params["bfc"])
    # TODO(synk): for production-length sequences, switch to a T-chunked grid
    # (BlockSpec((Tc*B, D))) instead of whole-sequence VMEM residency.


def init_raw_params(key, input_dim, hidden_dim, output_dim):
    """PyTorch-shaped params (nn.LSTM / nn.Linear uniform +-1/sqrt(H) init)."""
    H, D = hidden_dim, input_dim
    k = 1.0 / np.sqrt(H)
    keys = jax.random.split(key, 10)
    u = lambda kk, shape: jax.random.uniform(kk, shape, jnp.float32, -k, k)
    return {
        "w_ih1": u(keys[0], (4 * H, D)), "w_hh1": u(keys[1], (4 * H, H)),
        "b_ih1": u(keys[2], (4 * H,)),   "b_hh1": u(keys[3], (4 * H,)),
        "w_ih2": u(keys[4], (4 * H, H)), "w_hh2": u(keys[5], (4 * H, H)),
        "b_ih2": u(keys[6], (4 * H,)),   "b_hh2": u(keys[7], (4 * H,)),
        "w_fc":  u(keys[8], (output_dim, H)), "b_fc": u(keys[9], (output_dim,)),
    }


def to_kernel_params(raw, hidden_dim):
    """Kernel-friendly layout: transposed weights, [i,f,o,g] gate order, fused biases,
    block-diag recurrent weight for the two layers."""
    H = hidden_dim
    # PyTorch gate order is [i, f, g, o] along 4H; kernel uses [i, f, o, g].
    perm = np.concatenate([np.arange(0, H), np.arange(H, 2 * H),
                           np.arange(3 * H, 4 * H), np.arange(2 * H, 3 * H)])

    w1x = raw["w_ih1"][perm].T                          # (D, 4H)
    w1h = raw["w_hh1"][perm].T                          # (H, 4H)
    b1 = (raw["b_ih1"] + raw["b_hh1"])[perm][None, :]   # (1, 4H)
    w2x = raw["w_ih2"][perm].T                          # (H, 4H)
    w2h = raw["w_hh2"][perm].T                          # (H, 4H)
    b2 = (raw["b_ih2"] + raw["b_hh2"])[perm][None, :]   # (1, 4H)

    wrec = jnp.zeros((2 * H, 8 * H), jnp.float32)
    wrec = wrec.at[:H, :4 * H].set(w1h)
    wrec = wrec.at[H:, 4 * H:].set(w2h)

    return {
        "w1x": w1x, "b1": b1, "wrec": wrec,
        "w2x": w2x, "b2": b2,
        "wfc": raw["w_fc"].T, "bfc": raw["b_fc"][None, :],
    }


def reference_forward(x, raw, hidden_dim):
    """Pure-JAX reference of the PyTorch forward (standard [i,f,g,o] gate order)."""
    H = hidden_dim
    B = x.shape[0]

    def cell(x_in, h, c, w_ih, w_hh, b_ih, b_hh):
        g = x_in @ w_ih.T + h @ w_hh.T + b_ih + b_hh
        i = jax.nn.sigmoid(g[:, 0 * H:1 * H])
        f = jax.nn.sigmoid(g[:, 1 * H:2 * H])
        gg = jnp.tanh(g[:, 2 * H:3 * H])
        o = jax.nn.sigmoid(g[:, 3 * H:4 * H])
        c = f * c + i * gg
        h = o * jnp.tanh(c)
        return h, c

    def step(carry, x_t):
        h1, c1, h2, c2 = carry
        h1, c1 = cell(x_t, h1, c1, raw["w_ih1"], raw["w_hh1"],
                      raw["b_ih1"], raw["b_hh1"])
        h2, c2 = cell(h1, h2, c2, raw["w_ih2"], raw["w_hh2"],
                      raw["b_ih2"], raw["b_hh2"])
        return (h1, c1, h2, c2), None

    init = tuple(jnp.zeros((B, H), jnp.float32) for _ in range(4))
    (_, _, h2, _), _ = jax.lax.scan(step, init, jnp.transpose(x, (1, 0, 2)))
    return jax.nn.sigmoid(h2 @ raw["w_fc"].T + raw["b_fc"])


if __name__ == "__main__":
    B, T, D, H, OUT = 8, 8, 16, 64, 1      # hidden_dim = 64 per the module spec
    key = jax.random.PRNGKey(0)
    k_x, k_p = jax.random.split(key)
    x = jax.random.normal(k_x, (B, T, D), jnp.float32)
    raw = init_raw_params(k_p, D, H, OUT)
    params = to_kernel_params(raw, H)

    out = stock_price_lstm_forward(x, params)
    out = jax.block_until_ready(out)

    ref = reference_forward(x, raw, H)
    np.testing.assert_allclose(np.asarray(out), np.asarray(ref),
                               rtol=1e-4, atol=1e-5)
    print("KERNEL_OK")
</pallas_src>

<mosaic_0001>
module attributes {stable_mosaic.version = 11 : i64} {
  func.func @_lstm_kernel(%arg0: memref<64x16xf32, #tpu.memory_space<vmem>>, %arg1: memref<16x256xf32, #tpu.memory_space<vmem>>, %arg2: memref<1x256xf32, #tpu.memory_space<vmem>>, %arg3: memref<128x512xf32, #tpu.memory_space<vmem>>, %arg4: memref<64x256xf32, #tpu.memory_space<vmem>>, %arg5: memref<1x256xf32, #tpu.memory_space<vmem>>, %arg6: memref<64x1xf32, #tpu.memory_space<vmem>>, %arg7: memref<1x1xf32, #tpu.memory_space<vmem>>, %arg8: memref<8x1xf32, #tpu.memory_space<vmem>>, %arg9: memref<64x256xf32, #tpu.memory_space<vmem>>) attributes {dimension_semantics = [], scalar_prefetch = 0 : i64, scratch_operands = 1 : i64, tpu.core_type = #tpu.core_type<tc>} {
    %c0 = arith.constant 0 : index
    %c0_0 = arith.constant 0 : index
    %0 = vector.load %arg0[%c0, %c0_0] : memref<64x16xf32, #tpu.memory_space<vmem>>, vector<64x16xf32>
    %c0_1 = arith.constant 0 : index
    %c0_2 = arith.constant 0 : index
    %1 = vector.load %arg1[%c0_1, %c0_2] : memref<16x256xf32, #tpu.memory_space<vmem>>, vector<16x256xf32>
    %cst = arith.constant dense<0.000000e+00> : vector<64x256xf32>
    %2 = tpu.matmul %0, %1, %cst {dimension_numbers = #tpu.dot_dimension_numbers<[1], [0], [0], [1], [0, 0, 1, 1], [], []>} : vector<64x16xf32>, vector<16x256xf32>, vector<64x256xf32> -> vector<64x256xf32>
    %c0_3 = arith.constant 0 : index
    %c0_4 = arith.constant 0 : index
    %3 = vector.load %arg2[%c0_3, %c0_4] : memref<1x256xf32, #tpu.memory_space<vmem>>, vector<1x256xf32>
    %4 = vector.broadcast %3 : vector<1x256xf32> to vector<64x256xf32>
    %5 = arith.addf %2, %4 : vector<64x256xf32>
    %c0_5 = arith.constant 0 : index
    %c0_6 = arith.constant 0 : index
    %6 = vector.load %arg9[%c0_5, %c0_6] : memref<64x256xf32, #tpu.memory_space<vmem>>, vector<64x256xf32>
    tpu.vector_store %arg9[%c0_5, %c0_6], %5 {strides = array<i32>} : memref<64x256xf32, #tpu.memory_space<vmem>>, vector<64x256xf32>,
    %c0_7 = arith.constant 0 : index
    %c0_8 = arith.constant 0 : index
    %7 = vector.load %arg3[%c0_7, %c0_8] : memref<128x512xf32, #tpu.memory_space<vmem>>, vector<128x512xf32>
    %c0_9 = arith.constant 0 : index
    %c0_10 = arith.constant 0 : index
    %8 = vector.load %arg4[%c0_9, %c0_10] : memref<64x256xf32, #tpu.memory_space<vmem>>, vector<64x256xf32>
    %c0_11 = arith.constant 0 : index
    %c0_12 = arith.constant 0 : index
    %9 = vector.load %arg5[%c0_11, %c0_12] : memref<1x256xf32, #tpu.memory_space<vmem>>, vector<1x256xf32>
    %10 = vector.shape_cast %9 : vector<1x256xf32> to vector<1x256xf32>
    %11 = vector.broadcast %10 : vector<1x256xf32> to vector<8x256xf32>
    %cst_13 = arith.constant 0.000000e+00 : f32
    %12 = vector.broadcast %cst_13 : f32 to vector<8x64xf32>
    %c0_i32 = arith.constant 0 : i32
    %13 = tpu.concatenate %12, %12 in 1 : vector<8x64xf32>, vector<8x64xf32> -> vector<8x128xf32>
    %cst_14 = arith.constant dense<0.000000e+00> : vector<8x512xf32>
    %14 = tpu.matmul %13, %7, %cst_14 {dimension_numbers = #tpu.dot_dimension_numbers<[1], [0], [0], [1], [0, 0, 1, 1], [], []>} : vector<8x128xf32>, vector<128x512xf32>, vector<8x512xf32> -> vector<8x512xf32>
    %c8_i32 = arith.constant 8 : i32
    %15 = arith.muli %c0_i32, %c8_i32 : i32
    %16 = arith.index_cast %15 : i32 to index
    %c0_15 = arith.constant 0 : index
    %17 = vector.load %arg9[%16, %c0_15] : memref<64x256xf32, #tpu.memory_space<vmem>>, vector<8x256xf32>
    %18 = vector.extract_strided_slice %14 {offsets = [0, 0], sizes = [8, 256], strides = [1, 1]} : vector<8x512xf32> to vector<8x256xf32>
    %19 = arith.addf %17, %18 : vector<8x256xf32>
    %20 = vector.extract_strided_slice %19 {offsets = [0, 0], sizes = [8, 192], strides = [1, 1]} : vector<8x256xf32> to vector<8x192xf32>
    %21 = arith.negf %20 : vector<8x192xf32>
    %22 = math.exp %21 : vector<8x192xf32>
    %cst_16 = arith.constant 1.000000e+00 : f32
    %23 = vector.broadcast %cst_16 : f32 to vector<8x192xf32>
    %24 = arith.addf %23, %22 : vector<8x192xf32>
    %25 = arith.divf %23, %24 : vector<8x192xf32>
    %26 = vector.extract_strided_slice %19 {offsets = [0, 192], sizes = [8, 64], strides = [1, 1]} : vector<8x256xf32> to vector<8x64xf32>
    %27 = math.tanh %26 : vector<8x64xf32>
    %28 = vector.extract_strided_slice %25 {offsets = [0, 0], sizes = [8, 64], strides = [1, 1]} : vector<8x192xf32> to vector<8x64xf32>
    %29 = vector.extract_strided_slice %25 {offsets = [0, 64], sizes = [8, 64], strides = [1, 1]} : vector<8x192xf32> to vector<8x64xf32>
    %30 = vector.extract_strided_slice %25 {offsets = [0, 128], sizes = [8, 64], strides = [1, 1]} : vector<8x192xf32> to vector<8x64xf32>
    %31 = arith.mulf %29, %12 : vector<8x64xf32>
    %32 = arith.mulf %28, %27 : vector<8x64xf32>
    %33 = arith.addf %31, %32 : vector<8x64xf32>
    %34 = math.tanh %33 : vector<8x64xf32>
    %35 = arith.mulf %30, %34 : vector<8x64xf32>
    %cst_17 = arith.constant dense<0.000000e+00> : vector<8x256xf32>
    %36 = tpu.matmul %35, %8, %cst_17 {dimension_numbers = #tpu.dot_dimension_numbers<[1], [0], [0], [1], [0, 0, 1, 1], [], []>} : vector<8x64xf32>, vector<64x256xf32>, vector<8x256xf32> -> vector<8x256xf32>
    %37 = arith.addf %36, %11 : vector<8x256xf32>
    %38 = vector.extract_strided_slice %14 {offsets = [0, 256], sizes = [8, 256], strides = [1, 1]} : vector<8x512xf32> to vector<8x256xf32>
    %39 = arith.addf %37, %38 : vector<8x256xf32>
    %40 = vector.extract_strided_slice %39 {offsets = [0, 0], sizes = [8, 192], strides = [1, 1]} : vector<8x256xf32> to vector<8x192xf32>
    %41 = arith.negf %40 : vector<8x192xf32>
    %42 = math.exp %41 : vector<8x192xf32>
    %cst_18 = arith.constant 1.000000e+00 : f32
    %43 = vector.broadcast %cst_18 : f32 to vector<8x192xf32>
    %44 = arith.addf %43, %42 : vector<8x192xf32>
    %45 = arith.divf %43, %44 : vector<8x192xf32>
    %46 = vector.extract_strided_slice %39 {offsets = [0, 192], sizes = [8, 64], strides = [1, 1]} : vector<8x256xf32> to vector<8x64xf32>
    %47 = math.tanh %46 : vector<8x64xf32>
    %48 = vector.extract_strided_slice %45 {offsets = [0, 0], sizes = [8, 64], strides = [1, 1]} : vector<8x192xf32> to vector<8x64xf32>
    %49 = vector.extract_strided_slice %45 {offsets = [0, 64], sizes = [8, 64], strides = [1, 1]} : vector<8x192xf32> to vector<8x64xf32>
    %50 = vector.extract_strided_slice %45 {offsets = [0, 128], sizes = [8, 64], strides = [1, 1]} : vector<8x192xf32> to vector<8x64xf32>
    %51 = arith.mulf %49, %12 : vector<8x64xf32>
    %52 = arith.mulf %48, %47 : vector<8x64xf32>
    %53 = arith.addf %51, %52 : vector<8x64xf32>
    %54 = math.tanh %53 : vector<8x64xf32>
    %55 = arith.mulf %50, %54 : vector<8x64xf32>
    %c1_i32 = arith.constant 1 : i32
    %56 = tpu.concatenate %35, %55 in 1 : vector<8x64xf32>, vector<8x64xf32> -> vector<8x128xf32>
    %cst_19 = arith.constant dense<0.000000e+00> : vector<8x512xf32>
    %57 = tpu.matmul %56, %7, %cst_19 {dimension_numbers = #tpu.dot_dimension_numbers<[1], [0], [0], [1], [0, 0, 1, 1], [], []>} : vector<8x128xf32>, vector<128x512xf32>, vector<8x512xf32> -> vector<8x512xf32>
    %c8_i32_20 = arith.constant 8 : i32
    %58 = arith.muli %c1_i32, %c8_i32_20 : i32
    %59 = arith.index_cast %58 : i32 to index
    %c0_21 = arith.constant 0 : index
    %60 = vector.load %arg9[%59, %c0_21] : memref<64x256xf32, #tpu.memory_space<vmem>>, vector<8x256xf32>
    %61 = vector.extract_strided_slice %57 {offsets = [0, 0], sizes = [8, 256], strides = [1, 1]} : vector<8x512xf32> to vector<8x256xf32>
    %62 = arith.addf %60, %61 : vector<8x256xf32>
    %63 = vector.extract_strided_slice %62 {offsets = [0, 0], sizes = [8, 192], strides = [1, 1]} : vector<8x256xf32> to vector<8x192xf32>
    %64 = arith.negf %63 : vector<8x192xf32>
    %65 = math.exp %64 : vector<8x192xf32>
    %cst_22 = arith.constant 1.000000e+00 : f32
    %66 = vector.broadcast %cst_22 : f32 to vector<8x192xf32>
    %67 = arith.addf %66, %65 : vector<8x192xf32>
    %68 = arith.divf %66, %67 : vector<8x192xf32>
    %69 = vector.extract_strided_slice %62 {offsets = [0, 192], sizes = [8, 64], strides = [1, 1]} : vector<8x256xf32> to vector<8x64xf32>
    %70 = math.tanh %69 : vector<8x64xf32>
    %71 = vector.extract_strided_slice %68 {offsets = [0, 0], sizes = [8, 64], strides = [1, 1]} : vector<8x192xf32> to vector<8x64xf32>
    %72 = vector.extract_strided_slice %68 {offsets = [0, 64], sizes = [8, 64], strides = [1, 1]} : vector<8x192xf32> to vector<8x64xf32>
    %73 = vector.extract_strided_slice %68 {offsets = [0, 128], sizes = [8, 64], strides = [1, 1]} : vector<8x192xf32> to vector<8x64xf32>
    %74 = arith.mulf %72, %33 : vector<8x64xf32>
    %75 = arith.mulf %71, %70 : vector<8x64xf32>
    %76 = arith.addf %74, %75 : vector<8x64xf32>
    %77 = math.tanh %76 : vector<8x64xf32>
    %78 = arith.mulf %73, %77 : vector<8x64xf32>
    %cst_23 = arith.constant dense<0.000000e+00> : vector<8x256xf32>
    %79 = tpu.matmul %78, %8, %cst_23 {dimension_numbers = #tpu.dot_dimension_numbers<[1], [0], [0], [1], [0, 0, 1, 1], [], []>} : vector<8x64xf32>, vector<64x256xf32>, vector<8x256xf32> -> vector<8x256xf32>
    %80 = arith.addf %79, %11 : vector<8x256xf32>
    %81 = vector.extract_strided_slice %57 {offsets = [0, 256], sizes = [8, 256], strides = [1, 1]} : vector<8x512xf32> to vector<8x256xf32>
    %82 = arith.addf %80, %81 : vector<8x256xf32>
    %83 = vector.extract_strided_slice %82 {offsets = [0, 0], sizes = [8, 192], strides = [1, 1]} : vector<8x256xf32> to vector<8x192xf32>
    %84 = arith.negf %83 : vector<8x192xf32>
    %85 = math.exp %84 : vector<8x192xf32>
    %cst_24 = arith.constant 1.000000e+00 : f32
    %86 = vector.broadcast %cst_24 : f32 to vector<8x192xf32>
    %87 = arith.addf %86, %85 : vector<8x192xf32>
    %88 = arith.divf %86, %87 : vector<8x192xf32>
    %89 = vector.extract_strided_slice %82 {offsets = [0, 192], sizes = [8, 64], strides = [1, 1]} : vector<8x256xf32> to vector<8x64xf32>
    %90 = math.tanh %89 : vector<8x64xf32>
    %91 = vector.extract_strided_slice %88 {offsets = [0, 0], sizes = [8, 64], strides = [1, 1]} : vector<8x192xf32> to vector<8x64xf32>
    %92 = vector.extract_strided_slice %88 {offsets = [0, 64], sizes = [8, 64], strides = [1, 1]} : vector<8x192xf32> to vector<8x64xf32>
    %93 = vector.extract_strided_slice %88 {offsets = [0, 128], sizes = [8, 64], strides = [1, 1]} : vector<8x192xf32> to vector<8x64xf32>
    %94 = arith.mulf %92, %53 : vector<8x64xf32>
    %95 = arith.mulf %91, %90 : vector<8x64xf32>
    %96 = arith.addf %94, %95 : vector<8x64xf32>
    %97 = math.tanh %96 : vector<8x64xf32>
    %98 = arith.mulf %93, %97 : vector<8x64xf32>
    %c2_i32 = arith.constant 2 : i32
    %99 = tpu.concatenate %78, %98 in 1 : vector<8x64xf32>, vector<8x64xf32> -> vector<8x128xf32>
    %cst_25 = arith.constant dense<0.000000e+00> : vector<8x512xf32>
    %100 = tpu.matmul %99, %7, %cst_25 {dimension_numbers = #tpu.dot_dimension_numbers<[1], [0], [0], [1], [0, 0, 1, 1], [], []>} : vector<8x128xf32>, vector<128x512xf32>, vector<8x512xf32> -> vector<8x512xf32>
    %c8_i32_26 = arith.constant 8 : i32
    %101 = arith.muli %c2_i32, %c8_i32_26 : i32
    %102 = arith.index_cast %101 : i32 to index
    %c0_27 = arith.constant 0 : index
    %103 = vector.load %arg9[%102, %c0_27] : memref<64x256xf32, #tpu.memory_space<vmem>>, vector<8x256xf32>
    %104 = vector.extract_strided_slice %100 {offsets = [0, 0], sizes = [8, 256], strides = [1, 1]} : vector<8x512xf32> to vector<8x256xf32>
    %105 = arith.addf %103, %104 : vector<8x256xf32>
    %106 = vector.extract_strided_slice %105 {offsets = [0, 0], sizes = [8, 192], strides = [1, 1]} : vector<8x256xf32> to vector<8x192xf32>
    %107 = arith.negf %106 : vector<8x192xf32>
    %108 = math.exp %107 : vector<8x192xf32>
    %cst_28 = arith.constant 1.000000e+00 : f32
    %109 = vector.broadcast %cst_28 : f32 to vector<8x192xf32>
    %110 = arith.addf %109, %108 : vector<8x192xf32>
    %111 = arith.divf %109, %110 : vector<8x192xf32>
    %112 = vector.extract_strided_slice %105 {offsets = [0, 192], sizes = [8, 64], strides = [1, 1]} : vector<8x256xf32> to vector<8x64xf32>
    %113 = math.tanh %112 : vector<8x64xf32>
    %114 = vector.extract_strided_slice %111 {offsets = [0, 0], sizes = [8, 64], strides = [1, 1]} : vector<8x192xf32> to vector<8x64xf32>
    %115 = vector.extract_strided_slice %111 {offsets = [0, 64], sizes = [8, 64], strides = [1, 1]} : vector<8x192xf32> to vector<8x64xf32>
    %116 = vector.extract_strided_slice %111 {offsets = [0, 128], sizes = [8, 64], strides = [1, 1]} : vector<8x192xf32> to vector<8x64xf32>
    %117 = arith.mulf %115, %76 : vector<8x64xf32>
    %118 = arith.mulf %114, %113 : vector<8x64xf32>
    %119 = arith.addf %117, %118 : vector<8x64xf32>
    %120 = math.tanh %119 : vector<8x64xf32>
    %121 = arith.mulf %116, %120 : vector<8x64xf32>
    %cst_29 = arith.constant dense<0.000000e+00> : vector<8x256xf32>
    %122 = tpu.matmul %121, %8, %cst_29 {dimension_numbers = #tpu.dot_dimension_numbers<[1], [0], [0], [1], [0, 0, 1, 1], [], []>} : vector<8x64xf32>, vector<64x256xf32>, vector<8x256xf32> -> vector<8x256xf32>
    %123 = arith.addf %122, %11 : vector<8x256xf32>
    %124 = vector.extract_strided_slice %100 {offsets = [0, 256], sizes = [8, 256], strides = [1, 1]} : vector<8x512xf32> to vector<8x256xf32>
    %125 = arith.addf %123, %124 : vector<8x256xf32>
    %126 = vector.extract_strided_slice %125 {offsets = [0, 0], sizes = [8, 192], strides = [1, 1]} : vector<8x256xf32> to vector<8x192xf32>
    %127 = arith.negf %126 : vector<8x192xf32>
    %128 = math.exp %127 : vector<8x192xf32>
    %cst_30 = arith.constant 1.000000e+00 : f32
    %129 = vector.broadcast %cst_30 : f32 to vector<8x192xf32>
    %130 = arith.addf %129, %128 : vector<8x192xf32>
    %131 = arith.divf %129, %130 : vector<8x192xf32>
    %132 = vector.extract_strided_slice %125 {offsets = [0, 192], sizes = [8, 64], strides = [1, 1]} : vector<8x256xf32> to vector<8x64xf32>
    %133 = math.tanh %132 : vector<8x64xf32>
    %134 = vector.extract_strided_slice %131 {offsets = [0, 0], sizes = [8, 64], strides = [1, 1]} : vector<8x192xf32> to vector<8x64xf32>
    %135 = vector.extract_strided_slice %131 {offsets = [0, 64], sizes = [8, 64], strides = [1, 1]} : vector<8x192xf32> to vector<8x64xf32>
    %136 = vector.extract_strided_slice %131 {offsets = [0, 128], sizes = [8, 64], strides = [1, 1]} : vector<8x192xf32> to vector<8x64xf32>
    %137 = arith.mulf %135, %96 : vector<8x64xf32>
    %138 = arith.mulf %134, %133 : vector<8x64xf32>
    %139 = arith.addf %137, %138 : vector<8x64xf32>
    %140 = math.tanh %139 : vector<8x64xf32>
    %141 = arith.mulf %136, %140 : vector<8x64xf32>
    %c3_i32 = arith.constant 3 : i32
    %142 = tpu.concatenate %121, %141 in 1 : vector<8x64xf32>, vector<8x64xf32> -> vector<8x128xf32>
    %cst_31 = arith.constant dense<0.000000e+00> : vector<8x512xf32>
    %143 = tpu.matmul %142, %7, %cst_31 {dimension_numbers = #tpu.dot_dimension_numbers<[1], [0], [0], [1], [0, 0, 1, 1], [], []>} : vector<8x128xf32>, vector<128x512xf32>, vector<8x512xf32> -> vector<8x512xf32>
    %c8_i32_32 = arith.constant 8 : i32
    %144 = arith.muli %c3_i32, %c8_i32_32 : i32
    %145 = arith.index_cast %144 : i32 to index
    %c0_33 = arith.constant 0 : index
    %146 = vector.load %arg9[%145, %c0_33] : memref<64x256xf32, #tpu.memory_space<vmem>>, vector<8x256xf32>
    %147 = vector.extract_strided_slice %143 {offsets = [0, 0], sizes = [8, 256], strides = [1, 1]} : vector<8x512xf32> to vector<8x256xf32>
    %148 = arith.addf %146, %147 : vector<8x256xf32>
    %149 = vector.extract_strided_slice %148 {offsets = [0, 0], sizes = [8, 192], strides = [1, 1]} : vector<8x256xf32> to vector<8x192xf32>
    %150 = arith.negf %149 : vector<8x192xf32>
    %151 = math.exp %150 : vector<8x192xf32>
    %cst_34 = arith.constant 1.000000e+00 : f32
    %152 = vector.broadcast %cst_34 : f32 to vector<8x192xf32>
    %153 = arith.addf %152, %151 : vector<8x192xf32>
    %154 = arith.divf %152, %153 : vector<8x192xf32>
    %155 = vector.extract_strided_slice %148 {offsets = [0, 192], sizes = [8, 64], strides = [1, 1]} : vector<8x256xf32> to vector<8x64xf32>
    %156 = math.tanh %155 : vector<8x64xf32>
    %157 = vector.extract_strided_slice %154 {offsets = [0, 0], sizes = [8, 64], strides = [1, 1]} : vector<8x192xf32> to vector<8x64xf32>
    %158 = vector.extract_strided_slice %154 {offsets = [0, 64], sizes = [8, 64], strides = [1, 1]} : vector<8x192xf32> to vector<8x64xf32>
    %159 = vector.extract_strided_slice %154 {offsets = [0, 128], sizes = [8, 64], strides = [1, 1]} : vector<8x192xf32> to vector<8x64xf32>
    %160 = arith.mulf %158, %119 : vector<8x64xf32>
    %161 = arith.mulf %157, %156 : vector<8x64xf32>
    %162 = arith.addf %160, %161 : vector<8x64xf32>
    %163 = math.tanh %162 : vector<8x64xf32>
    %164 = arith.mulf %159, %163 : vector<8x64xf32>
    %cst_35 = arith.constant dense<0.000000e+00> : vector<8x256xf32>
    %165 = tpu.matmul %164, %8, %cst_35 {dimension_numbers = #tpu.dot_dimension_numbers<[1], [0], [0], [1], [0, 0, 1, 1], [], []>} : vector<8x64xf32>, vector<64x256xf32>, vector<8x256xf32> -> vector<8x256xf32>
    %166 = arith.addf %165, %11 : vector<8x256xf32>
    %167 = vector.extract_strided_slice %143 {offsets = [0, 256], sizes = [8, 256], strides = [1, 1]} : vector<8x512xf32> to vector<8x256xf32>
    %168 = arith.addf %166, %167 : vector<8x256xf32>
    %169 = vector.extract_strided_slice %168 {offsets = [0, 0], sizes = [8, 192], strides = [1, 1]} : vector<8x256xf32> to vector<8x192xf32>
    %170 = arith.negf %169 : vector<8x192xf32>
    %171 = math.exp %170 : vector<8x192xf32>
    %cst_36 = arith.constant 1.000000e+00 : f32
    %172 = vector.broadcast %cst_36 : f32 to vector<8x192xf32>
    %173 = arith.addf %172, %171 : vector<8x192xf32>
    %174 = arith.divf %172, %173 : vector<8x192xf32>
    %175 = vector.extract_strided_slice %168 {offsets = [0, 192], sizes = [8, 64], strides = [1, 1]} : vector<8x256xf32> to vector<8x64xf32>
    %176 = math.tanh %175 : vector<8x64xf32>
    %177 = vector.extract_strided_slice %174 {offsets = [0, 0], sizes = [8, 64], strides = [1, 1]} : vector<8x192xf32> to vector<8x64xf32>
    %178 = vector.extract_strided_slice %174 {offsets = [0, 64], sizes = [8, 64], strides = [1, 1]} : vector<8x192xf32> to vector<8x64xf32>
    %179 = vector.extract_strided_slice %174 {offsets = [0, 128], sizes = [8, 64], strides = [1, 1]} : vector<8x192xf32> to vector<8x64xf32>
    %180 = arith.mulf %178, %139 : vector<8x64xf32>
    %181 = arith.mulf %177, %176 : vector<8x64xf32>
    %182 = arith.addf %180, %181 : vector<8x64xf32>
    %183 = math.tanh %182 : vector<8x64xf32>
    %184 = arith.mulf %179, %183 : vector<8x64xf32>
    %c4_i32 = arith.constant 4 : i32
    %185 = tpu.concatenate %164, %184 in 1 : vector<8x64xf32>, vector<8x64xf32> -> vector<8x128xf32>
    %cst_37 = arith.constant dense<0.000000e+00> : vector<8x512xf32>
    %186 = tpu.matmul %185, %7, %cst_37 {dimension_numbers = #tpu.dot_dimension_numbers<[1], [0], [0], [1], [0, 0, 1, 1], [], []>} : vector<8x128xf32>, vector<128x512xf32>, vector<8x512xf32> -> vector<8x512xf32>
    %c8_i32_38 = arith.constant 8 : i32
    %187 = arith.muli %c4_i32, %c8_i32_38 : i32
    %188 = arith.index_cast %187 : i32 to index
    %c0_39 = arith.constant 0 : index
    %189 = vector.load %arg9[%188, %c0_39] : memref<64x256xf32, #tpu.memory_space<vmem>>, vector<8x256xf32>
    %190 = vector.extract_strided_slice %186 {offsets = [0, 0], sizes = [8, 256], strides = [1, 1]} : vector<8x512xf32> to vector<8x256xf32>
    %191 = arith.addf %189, %190 : vector<8x256xf32>
    %192 = vector.extract_strided_slice %191 {offsets = [0, 0], sizes = [8, 192], strides = [1, 1]} : vector<8x256xf32> to vector<8x192xf32>
    %193 = arith.negf %192 : vector<8x192xf32>
    %194 = math.exp %193 : vector<8x192xf32>
    %cst_40 = arith.constant 1.000000e+00 : f32
    %195 = vector.broadcast %cst_40 : f32 to vector<8x192xf32>
    %196 = arith.addf %195, %194 : vector<8x192xf32>
    %197 = arith.divf %195, %196 : vector<8x192xf32>
    %198 = vector.extract_strided_slice %191 {offsets = [0, 192], sizes = [8, 64], strides = [1, 1]} : vector<8x256xf32> to vector<8x64xf32>
    %199 = math.tanh %198 : vector<8x64xf32>
    %200 = vector.extract_strided_slice %197 {offsets = [0, 0], sizes = [8, 64], strides = [1, 1]} : vector<8x192xf32> to vector<8x64xf32>
    %201 = vector.extract_strided_slice %197 {offsets = [0, 64], sizes = [8, 64], strides = [1, 1]} : vector<8x192xf32> to vector<8x64xf32>
    %202 = vector.extract_strided_slice %197 {offsets = [0, 128], sizes = [8, 64], strides = [1, 1]} : vector<8x192xf32> to vector<8x64xf32>
    %203 = arith.mulf %201, %162 : vector<8x64xf32>
    %204 = arith.mulf %200, %199 : vector<8x64xf32>
    %205 = arith.addf %203, %204 : vector<8x64xf32>
    %206 = math.tanh %205 : vector<8x64xf32>
    %207 = arith.mulf %202, %206 : vector<8x64xf32>
    %cst_41 = arith.constant dense<0.000000e+00> : vector<8x256xf32>
    %208 = tpu.matmul %207, %8, %cst_41 {dimension_numbers = #tpu.dot_dimension_numbers<[1], [0], [0], [1], [0, 0, 1, 1], [], []>} : vector<8x64xf32>, vector<64x256xf32>, vector<8x256xf32> -> vector<8x256xf32>
    %209 = arith.addf %208, %11 : vector<8x256xf32>
    %210 = vector.extract_strided_slice %186 {offsets = [0, 256], sizes = [8, 256], strides = [1, 1]} : vector<8x512xf32> to vector<8x256xf32>
    %211 = arith.addf %209, %210 : vector<8x256xf32>
    %212 = vector.extract_strided_slice %211 {offsets = [0, 0], sizes = [8, 192], strides = [1, 1]} : vector<8x256xf32> to vector<8x192xf32>
    %213 = arith.negf %212 : vector<8x192xf32>
    %214 = math.exp %213 : vector<8x192xf32>
    %cst_42 = arith.constant 1.000000e+00 : f32
    %215 = vector.broadcast %cst_42 : f32 to vector<8x192xf32>
    %216 = arith.addf %215, %214 : vector<8x192xf32>
    %217 = arith.divf %215, %216 : vector<8x192xf32>
    %218 = vector.extract_strided_slice %211 {offsets = [0, 192], sizes = [8, 64], strides = [1, 1]} : vector<8x256xf32> to vector<8x64xf32>
    %219 = math.tanh %218 : vector<8x64xf32>
    %220 = vector.extract_strided_slice %217 {offsets = [0, 0], sizes = [8, 64], strides = [1, 1]} : vector<8x192xf32> to vector<8x64xf32>
    %221 = vector.extract_strided_slice %217 {offsets = [0, 64], sizes = [8, 64], strides = [1, 1]} : vector<8x192xf32> to vector<8x64xf32>
    %222 = vector.extract_strided_slice %217 {offsets = [0, 128], sizes = [8, 64], strides = [1, 1]} : vector<8x192xf32> to vector<8x64xf32>
    %223 = arith.mulf %221, %182 : vector<8x64xf32>
    %224 = arith.mulf %220, %219 : vector<8x64xf32>
    %225 = arith.addf %223, %224 : vector<8x64xf32>
    %226 = math.tanh %225 : vector<8x64xf32>
    %227 = arith.mulf %222, %226 : vector<8x64xf32>
    %c5_i32 = arith.constant 5 : i32
    %228 = tpu.concatenate %207, %227 in 1 : vector<8x64xf32>, vector<8x64xf32> -> vector<8x128xf32>
    %cst_43 = arith.constant dense<0.000000e+00> : vector<8x512xf32>
    %229 = tpu.matmul %228, %7, %cst_43 {dimension_numbers = #tpu.dot_dimension_numbers<[1], [0], [0], [1], [0, 0, 1, 1], [], []>} : vector<8x128xf32>, vector<128x512xf32>, vector<8x512xf32> -> vector<8x512xf32>
    %c8_i32_44 = arith.constant 8 : i32
    %230 = arith.muli %c5_i32, %c8_i32_44 : i32
    %231 = arith.index_cast %230 : i32 to index
    %c0_45 = arith.constant 0 : index
    %232 = vector.load %arg9[%231, %c0_45] : memref<64x256xf32, #tpu.memory_space<vmem>>, vector<8x256xf32>
    %233 = vector.extract_strided_slice %229 {offsets = [0, 0], sizes = [8, 256], strides = [1, 1]} : vector<8x512xf32> to vector<8x256xf32>
    %234 = arith.addf %232, %233 : vector<8x256xf32>
    %235 = vector.extract_strided_slice %234 {offsets = [0, 0], sizes = [8, 192], strides = [1, 1]} : vector<8x256xf32> to vector<8x192xf32>
    %236 = arith.negf %235 : vector<8x192xf32>
    %237 = math.exp %236 : vector<8x192xf32>
    %cst_46 = arith.constant 1.000000e+00 : f32
    %238 = vector.broadcast %cst_46 : f32 to vector<8x192xf32>
    %239 = arith.addf %238, %237 : vector<8x192xf32>
    %240 = arith.divf %238, %239 : vector<8x192xf32>
    %241 = vector.extract_strided_slice %234 {offsets = [0, 192], sizes = [8, 64], strides = [1, 1]} : vector<8x256xf32> to vector<8x64xf32>
    %242 = math.tanh %241 : vector<8x64xf32>
    %243 = vector.extract_strided_slice %240 {offsets = [0, 0], sizes = [8, 64], strides = [1, 1]} : vector<8x192xf32> to vector<8x64xf32>
    %244 = vector.extract_strided_slice %240 {offsets = [0, 64], sizes = [8, 64], strides = [1, 1]} : vector<8x192xf32> to vector<8x64xf32>
    %245 = vector.extract_strided_slice %240 {offsets = [0, 128], sizes = [8, 64], strides = [1, 1]} : vector<8x192xf32> to vector<8x64xf32>
    %246 = arith.mulf %244, %205 : vector<8x64xf32>
    %247 = arith.mulf %243, %242 : vector<8x64xf32>
    %248 = arith.addf %246, %247 : vector<8x64xf32>
    %249 = math.tanh %248 : vector<8x64xf32>
    %250 = arith.mulf %245, %249 : vector<8x64xf32>
    %cst_47 = arith.constant dense<0.000000e+00> : vector<8x256xf32>
    %251 = tpu.matmul %250, %8, %cst_47 {dimension_numbers = #tpu.dot_dimension_numbers<[1], [0], [0], [1], [0, 0, 1, 1], [], []>} : vector<8x64xf32>, vector<64x256xf32>, vector<8x256xf32> -> vector<8x256xf32>
    %252 = arith.addf %251, %11 : vector<8x256xf32>
    %253 = vector.extract_strided_slice %229 {offsets = [0, 256], sizes = [8, 256], strides = [1, 1]} : vector<8x512xf32> to vector<8x256xf32>
    %254 = arith.addf %252, %253 : vector<8x256xf32>
    %255 = vector.extract_strided_slice %254 {offsets = [0, 0], sizes = [8, 192], strides = [1, 1]} : vector<8x256xf32> to vector<8x192xf32>
    %256 = arith.negf %255 : vector<8x192xf32>
    %257 = math.exp %256 : vector<8x192xf32>
    %cst_48 = arith.constant 1.000000e+00 : f32
    %258 = vector.broadcast %cst_48 : f32 to vector<8x192xf32>
    %259 = arith.addf %258, %257 : vector<8x192xf32>
    %260 = arith.divf %258, %259 : vector<8x192xf32>
    %261 = vector.extract_strided_slice %254 {offsets = [0, 192], sizes = [8, 64], strides = [1, 1]} : vector<8x256xf32> to vector<8x64xf32>
    %262 = math.tanh %261 : vector<8x64xf32>
    %263 = vector.extract_strided_slice %260 {offsets = [0, 0], sizes = [8, 64], strides = [1, 1]} : vector<8x192xf32> to vector<8x64xf32>
    %264 = vector.extract_strided_slice %260 {offsets = [0, 64], sizes = [8, 64], strides = [1, 1]} : vector<8x192xf32> to vector<8x64xf32>
    %265 = vector.extract_strided_slice %260 {offsets = [0, 128], sizes = [8, 64], strides = [1, 1]} : vector<8x192xf32> to vector<8x64xf32>
    %266 = arith.mulf %264, %225 : vector<8x64xf32>
    %267 = arith.mulf %263, %262 : vector<8x64xf32>
    %268 = arith.addf %266, %267 : vector<8x64xf32>
    %269 = math.tanh %268 : vector<8x64xf32>
    %270 = arith.mulf %265, %269 : vector<8x64xf32>
    %c6_i32 = arith.constant 6 : i32
    %271 = tpu.concatenate %250, %270 in 1 : vector<8x64xf32>, vector<8x64xf32> -> vector<8x128xf32>
    %cst_49 = arith.constant dense<0.000000e+00> : vector<8x512xf32>
    %272 = tpu.matmul %271, %7, %cst_49 {dimension_numbers = #tpu.dot_dimension_numbers<[1], [0], [0], [1], [0, 0, 1, 1], [], []>} : vector<8x128xf32>, vector<128x512xf32>, vector<8x512xf32> -> vector<8x512xf32>
    %c8_i32_50 = arith.constant 8 : i32
    %273 = arith.muli %c6_i32, %c8_i32_50 : i32
    %274 = arith.index_cast %273 : i32 to index
    %c0_51 = arith.constant 0 : index
    %275 = vector.load %arg9[%274, %c0_51] : memref<64x256xf32, #tpu.memory_space<vmem>>, vector<8x256xf32>
    %276 = vector.extract_strided_slice %272 {offsets = [0, 0], sizes = [8, 256], strides = [1, 1]} : vector<8x512xf32> to vector<8x256xf32>
    %277 = arith.addf %275, %276 : vector<8x256xf32>
    %278 = vector.extract_strided_slice %277 {offsets = [0, 0], sizes = [8, 192], strides = [1, 1]} : vector<8x256xf32> to vector<8x192xf32>
    %279 = arith.negf %278 : vector<8x192xf32>
    %280 = math.exp %279 : vector<8x192xf32>
    %cst_52 = arith.constant 1.000000e+00 : f32
    %281 = vector.broadcast %cst_52 : f32 to vector<8x192xf32>
    %282 = arith.addf %281, %280 : vector<8x192xf32>
    %283 = arith.divf %281, %282 : vector<8x192xf32>
    %284 = vector.extract_strided_slice %277 {offsets = [0, 192], sizes = [8, 64], strides = [1, 1]} : vector<8x256xf32> to vector<8x64xf32>
    %285 = math.tanh %284 : vector<8x64xf32>
    %286 = vector.extract_strided_slice %283 {offsets = [0, 0], sizes = [8, 64], strides = [1, 1]} : vector<8x192xf32> to vector<8x64xf32>
    %287 = vector.extract_strided_slice %283 {offsets = [0, 64], sizes = [8, 64], strides = [1, 1]} : vector<8x192xf32> to vector<8x64xf32>
    %288 = vector.extract_strided_slice %283 {offsets = [0, 128], sizes = [8, 64], strides = [1, 1]} : vector<8x192xf32> to vector<8x64xf32>
    %289 = arith.mulf %287, %248 : vector<8x64xf32>
    %290 = arith.mulf %286, %285 : vector<8x64xf32>
    %291 = arith.addf %289, %290 : vector<8x64xf32>
    %292 = math.tanh %291 : vector<8x64xf32>
    %293 = arith.mulf %288, %292 : vector<8x64xf32>
    %cst_53 = arith.constant dense<0.000000e+00> : vector<8x256xf32>
    %294 = tpu.matmul %293, %8, %cst_53 {dimension_numbers = #tpu.dot_dimension_numbers<[1], [0], [0], [1], [0, 0, 1, 1], [], []>} : vector<8x64xf32>, vector<64x256xf32>, vector<8x256xf32> -> vector<8x256xf32>
    %295 = arith.addf %294, %11 : vector<8x256xf32>
    %296 = vector.extract_strided_slice %272 {offsets = [0, 256], sizes = [8, 256], strides = [1, 1]} : vector<8x512xf32> to vector<8x256xf32>
    %297 = arith.addf %295, %296 : vector<8x256xf32>
    %298 = vector.extract_strided_slice %297 {offsets = [0, 0], sizes = [8, 192], strides = [1, 1]} : vector<8x256xf32> to vector<8x192xf32>
    %299 = arith.negf %298 : vector<8x192xf32>
    %300 = math.exp %299 : vector<8x192xf32>
    %cst_54 = arith.constant 1.000000e+00 : f32
    %301 = vector.broadcast %cst_54 : f32 to vector<8x192xf32>
    %302 = arith.addf %301, %300 : vector<8x192xf32>
    %303 = arith.divf %301, %302 : vector<8x192xf32>
    %304 = vector.extract_strided_slice %297 {offsets = [0, 192], sizes = [8, 64], strides = [1, 1]} : vector<8x256xf32> to vector<8x64xf32>
    %305 = math.tanh %304 : vector<8x64xf32>
    %306 = vector.extract_strided_slice %303 {offsets = [0, 0], sizes = [8, 64], strides = [1, 1]} : vector<8x192xf32> to vector<8x64xf32>
    %307 = vector.extract_strided_slice %303 {offsets = [0, 64], sizes = [8, 64], strides = [1, 1]} : vector<8x192xf32> to vector<8x64xf32>
    %308 = vector.extract_strided_slice %303 {offsets = [0, 128], sizes = [8, 64], strides = [1, 1]} : vector<8x192xf32> to vector<8x64xf32>
    %309 = arith.mulf %307, %268 : vector<8x64xf32>
    %310 = arith.mulf %306, %305 : vector<8x64xf32>
    %311 = arith.addf %309, %310 : vector<8x64xf32>
    %312 = math.tanh %311 : vector<8x64xf32>
    %313 = arith.mulf %308, %312 : vector<8x64xf32>
    %c7_i32 = arith.constant 7 : i32
    %314 = tpu.concatenate %293, %313 in 1 : vector<8x64xf32>, vector<8x64xf32> -> vector<8x128xf32>
    %cst_55 = arith.constant dense<0.000000e+00> : vector<8x512xf32>
    %315 = tpu.matmul %314, %7, %cst_55 {dimension_numbers = #tpu.dot_dimension_numbers<[1], [0], [0], [1], [0, 0, 1, 1], [], []>} : vector<8x128xf32>, vector<128x512xf32>, vector<8x512xf32> -> vector<8x512xf32>
    %c8_i32_56 = arith.constant 8 : i32
    %316 = arith.muli %c7_i32, %c8_i32_56 : i32
    %317 = arith.index_cast %316 : i32 to index
    %c0_57 = arith.constant 0 : index
    %318 = vector.load %arg9[%317, %c0_57] : memref<64x256xf32, #tpu.memory_space<vmem>>, vector<8x256xf32>
    %319 = vector.extract_strided_slice %315 {offsets = [0, 0], sizes = [8, 256], strides = [1, 1]} : vector<8x512xf32> to vector<8x256xf32>
    %320 = arith.addf %318, %319 : vector<8x256xf32>
    %321 = vector.extract_strided_slice %320 {offsets = [0, 0], sizes = [8, 192], strides = [1, 1]} : vector<8x256xf32> to vector<8x192xf32>
    %322 = arith.negf %321 : vector<8x192xf32>
    %323 = math.exp %322 : vector<8x192xf32>
    %cst_58 = arith.constant 1.000000e+00 : f32
    %324 = vector.broadcast %cst_58 : f32 to vector<8x192xf32>
    %325 = arith.addf %324, %323 : vector<8x192xf32>
    %326 = arith.divf %324, %325 : vector<8x192xf32>
    %327 = vector.extract_strided_slice %320 {offsets = [0, 192], sizes = [8, 64], strides = [1, 1]} : vector<8x256xf32> to vector<8x64xf32>
    %328 = math.tanh %327 : vector<8x64xf32>
    %329 = vector.extract_strided_slice %326 {offsets = [0, 0], sizes = [8, 64], strides = [1, 1]} : vector<8x192xf32> to vector<8x64xf32>
    %330 = vector.extract_strided_slice %326 {offsets = [0, 64], sizes = [8, 64], strides = [1, 1]} : vector<8x192xf32> to vector<8x64xf32>
    %331 = vector.extract_strided_slice %326 {offsets = [0, 128], sizes = [8, 64], strides = [1, 1]} : vector<8x192xf32> to vector<8x64xf32>
    %332 = arith.mulf %330, %291 : vector<8x64xf32>
    %333 = arith.mulf %329, %328 : vector<8x64xf32>
    %334 = arith.addf %332, %333 : vector<8x64xf32>
    %335 = math.tanh %334 : vector<8x64xf32>
    %336 = arith.mulf %331, %335 : vector<8x64xf32>
    %cst_59 = arith.constant dense<0.000000e+00> : vector<8x256xf32>
    %337 = tpu.matmul %336, %8, %cst_59 {dimension_numbers = #tpu.dot_dimension_numbers<[1], [0], [0], [1], [0, 0, 1, 1], [], []>} : vector<8x64xf32>, vector<64x256xf32>, vector<8x256xf32> -> vector<8x256xf32>
    %338 = arith.addf %337, %11 : vector<8x256xf32>
    %339 = vector.extract_strided_slice %315 {offsets = [0, 256], sizes = [8, 256], strides = [1, 1]} : vector<8x512xf32> to vector<8x256xf32>
    %340 = arith.addf %338, %339 : vector<8x256xf32>
    %341 = vector.extract_strided_slice %340 {offsets = [0, 0], sizes = [8, 192], strides = [1, 1]} : vector<8x256xf32> to vector<8x192xf32>
    %342 = arith.negf %341 : vector<8x192xf32>
    %343 = math.exp %342 : vector<8x192xf32>
    %cst_60 = arith.constant 1.000000e+00 : f32
    %344 = vector.broadcast %cst_60 : f32 to vector<8x192xf32>
    %345 = arith.addf %344, %343 : vector<8x192xf32>
    %346 = arith.divf %344, %345 : vector<8x192xf32>
    %347 = vector.extract_strided_slice %340 {offsets = [0, 192], sizes = [8, 64], strides = [1, 1]} : vector<8x256xf32> to vector<8x64xf32>
    %348 = math.tanh %347 : vector<8x64xf32>
    %349 = vector.extract_strided_slice %346 {offsets = [0, 0], sizes = [8, 64], strides = [1, 1]} : vector<8x192xf32> to vector<8x64xf32>
    %350 = vector.extract_strided_slice %346 {offsets = [0, 64], sizes = [8, 64], strides = [1, 1]} : vector<8x192xf32> to vector<8x64xf32>
    %351 = vector.extract_strided_slice %346 {offsets = [0, 128], sizes = [8, 64], strides = [1, 1]} : vector<8x192xf32> to vector<8x64xf32>
    %352 = arith.mulf %350, %311 : vector<8x64xf32>
    %353 = arith.mulf %349, %348 : vector<8x64xf32>
    %354 = arith.addf %352, %353 : vector<8x64xf32>
    %355 = math.tanh %354 : vector<8x64xf32>
    %356 = arith.mulf %351, %355 : vector<8x64xf32>
    %c8_i32_61 = arith.constant 8 : i32
    %c0_62 = arith.constant 0 : index
    %c0_63 = arith.constant 0 : index
    %357 = vector.load %arg6[%c0_62, %c0_63] : memref<64x1xf32, #tpu.memory_space<vmem>>, vector<64x1xf32>
    %cst_64 = arith.constant dense<0.000000e+00> : vector<8x1xf32>
    %358 = tpu.matmul %356, %357, %cst_64 {dimension_numbers = #tpu.dot_dimension_numbers<[1], [0], [0], [1], [0, 0, 1, 1], [], []>} : vector<8x64xf32>, vector<64x1xf32>, vector<8x1xf32> -> vector<8x1xf32>
    %c0_65 = arith.constant 0 : index
    %c0_66 = arith.constant 0 : index
    %359 = vector.load %arg7[%c0_65, %c0_66] : memref<1x1xf32, #tpu.memory_space<vmem>>, vector<1x1xf32>
    %360 = vector.broadcast %359 : vector<1x1xf32> to vector<8x1xf32>
    %361 = arith.addf %358, %360 : vector<8x1xf32>
    %362 = arith.negf %361 : vector<8x1xf32>
    %363 = math.exp %362 : vector<8x1xf32>
    %cst_67 = arith.constant 1.000000e+00 : f32
    %364 = vector.broadcast %cst_67 : f32 to vector<8x1xf32>
    %365 = arith.addf %364, %363 : vector<8x1xf32>
    %366 = arith.divf %364, %365 : vector<8x1xf32>
    %c0_68 = arith.constant 0 : index
    %c0_69 = arith.constant 0 : index
    %367 = vector.load %arg8[%c0_68, %c0_69] : memref<8x1xf32, #tpu.memory_space<vmem>>, vector<8x1xf32>
    tpu.vector_store %arg8[%c0_68, %c0_69], %366 {strides = array<i32>} : memref<8x1xf32, #tpu.memory_space<vmem>>, vector<8x1xf32>,
    return
  }
}

</mosaic_0001>

<llo_original>
// kernel: tpu_custom_call.1
$region0: #{tpu_custom_call.1}
  #allocation0 [shape = 'u32[]', space=smem, size = 0x4, offset = 0x4, fixed_abs, tag = 'smem constant byte address 0x4 - core index']
  #allocation1 [shape = 'u32[144,128]{1,0:T(1,128)}', space=vmem, size = 0x12000, scoped, tag = 'internal scratch']
  #allocation2 [shape = 'f32[64,256]{1,0:T(8,128)}', space=vmem, size = 0x10000, scoped, tag = 'scratch operand']
  #allocation3 [shape = 'f32[1,1]{1,0:T(1,128)S(1)}', space=vmem, size = 0x200, scoped, tag = 'scoped memory for tpu_custom_call.1']
  %s0 = inlined_call_operand.vmem [shape: f32[64,16], index: 0, kind: input, shape index: {}]
  %s1 = inlined_call_operand.vmem [shape: f32[16,256], index: 1, kind: input, shape index: {}]
  %s2 = inlined_call_operand.vmem [shape: f32[1,256], index: 2, kind: input, shape index: {}]
  %s3 = inlined_call_operand.hbm [shape: f32[128,512], index: 3, kind: input, shape index: {}]
  %s4 = inlined_call_operand.vmem [shape: f32[64,256], index: 4, kind: input, shape index: {}]
  %s5 = inlined_call_operand.vmem [shape: f32[1,256], index: 5, kind: input, shape index: {}]
  %s6 = inlined_call_operand.vmem [shape: f32[64,1], index: 6, kind: input, shape index: {}]
  %s7 = inlined_call_operand.<no memory space> [shape: f32[1,1], index: 7, kind: input, shape index: {}]
  %s8 = inlined_call_operand.vmem [shape: f32[8,1], index: 8, kind: output, shape index: {}]
  %s9 = sld [smem:[#allocation0]]
  $region46: #{tpu_custom_call.1} parent=0
    _
  %s11 = ssub.s32 1, %s9
  %s12 = scalar_select 0, %s11, %s9
  %v13 = vstv %s7
  %14 = vst [vmem:[#allocation3] sm:$0x1] %v13
  $region1: #{tpu_custom_call.1} parent=0
    #allocation4 [shape = 'u8[262144]{0}', space=vmem, size = 0x40000, scoped, tag = 'input window, operand 3, single buffered']
    #allocation5 [shape = 's32[1]{0}', space=sflag, size = 0x4, scoped, tag = 'scoped memory for tpu_custom_call.1']
    %15 = vsyncpa [#allocation5], 0
    // Predicated region
    $region2: #{tpu_custom_call.1} parent=1 // pred_check
      _
    $region3: #{tpu_custom_call.1} parent=1 // pred_check_branch
      %17 = sbr.rel (0) target = $region5
    $region4: #{tpu_custom_call.1} parent=1 // pred_region
      _
    $region5: #{tpu_custom_call.1} parent=1 // pred_fallthru
      _
    // Predicated region
    $region6: #{tpu_custom_call.1} parent=1 // pred_check
      _
    $region7: #{tpu_custom_call.1} parent=1 // pred_check_branch
      %19 = sbr.rel (0) target = $region9
    $region8: #{tpu_custom_call.1} parent=1 // pred_region
      _
    $region9: #{tpu_custom_call.1} parent=1 // pred_fallthru
      _
    // Predicated region
    $region10: #{tpu_custom_call.1} parent=1 // pred_check
      _
    $region11: #{tpu_custom_call.1} parent=1 // pred_check_branch
      %21 = sbr.rel (0) target = $region13
    $region12: #{tpu_custom_call.1} parent=1 // pred_region
      _
    $region13: #{tpu_custom_call.1} parent=1 // pred_fallthru
      _
    // Predicated region
    $region14: #{tpu_custom_call.1} parent=1 // pred_check
      _
    $region15: #{tpu_custom_call.1} parent=1 // pred_check_branch
      %23 = sbr.rel (0) target = $region17
    $region16: #{tpu_custom_call.1} parent=1 // pred_region
      %s25 = ssub.s32 8192, 8192
      %26 = vsyncadd [#allocation5], %s25
      %s27 = sshll.u32 [#allocation4], 4
      %s28 = int_to_ptr.vmem [resolvable:$true] %s27
      %33 = dma.hbm_to_vmem [thread:$0]  %s3, 8192, %s28, [#allocation5], 512, 512, 32
    $region17: #{tpu_custom_call.1} parent=1 // pred_fallthru
      _
    // Predicated region
    $region18: #{tpu_custom_call.1} parent=1 // pred_check
      _
    $region19: #{tpu_custom_call.1} parent=1 // pred_check_branch
      %35 = sbr.rel (0) target = $region21
    $region20: #{tpu_custom_call.1} parent=1 // pred_region
      _
    $region21: #{tpu_custom_call.1} parent=1 // pred_fallthru
      _
    // Predicated region
    $region22: #{tpu_custom_call.1} parent=1 // pred_check
      _
    $region23: #{tpu_custom_call.1} parent=1 // pred_check_branch
      %37 = sbr.rel (0) target = $region25
    $region24: #{tpu_custom_call.1} parent=1 // pred_region
      _
    $region25: #{tpu_custom_call.1} parent=1 // pred_fallthru
      _
    // Predicated region
    $region26: #{tpu_custom_call.1} parent=1 // pred_check
      _
    $region27: #{tpu_custom_call.1} parent=1 // pred_check_branch
      %39 = sbr.rel (0) target = $region29
    $region28: #{tpu_custom_call.1} parent=1 // pred_region
      _
    $region29: #{tpu_custom_call.1} parent=1 // pred_fallthru
      _
    // Predicated region
    $region30: #{tpu_custom_call.1} parent=1 // pred_check
      _
    $region31: #{tpu_custom_call.1} parent=1 // pred_check_branch
      %41 = sbr.rel (0) target = $region33
    $region32: #{tpu_custom_call.1} parent=1 // pred_region
      _
    $region33: #{tpu_custom_call.1} parent=1 // pred_fallthru
      _
    // Predicated region
    $region34: #{tpu_custom_call.1} parent=1 // pred_check
      _
    $region35: #{tpu_custom_call.1} parent=1 // pred_check_branch
      %43 = sbr.rel (0) target = $region37
    $region36: #{tpu_custom_call.1} parent=1 // pred_region
      %44 = dma.done [#allocation5], 8192
    $region37: #{tpu_custom_call.1} parent=1 // pred_fallthru
      _
    %v45 = vld [vmem:[%s0] sm:$0xff]
    %v46 = vld [vmem:[%s0 + $0x8] sm:$0xff]
    %v47 = vld [vmem:[%s0 + $0x10] sm:$0xff]
    %v48 = vld [vmem:[%s0 + $0x18] sm:$0xff]
    %v49 = vld [vmem:[%s0 + $0x20] sm:$0xff]
    %v50 = vld [vmem:[%s0 + $0x28] sm:$0xff]
    %v51 = vld [vmem:[%s0 + $0x30] sm:$0xff]
    %v52 = vld [vmem:[%s0 + $0x38] sm:$0xff]
    %v53 = vld [vmem:[%s1] sm:$0xff]
    %v54 = vld [vmem:[%s1 + $0x8] sm:$0xff]
    %v55 = vld [vmem:[%s1 + $0x10] sm:$0xff]
    %v56 = vld [vmem:[%s1 + $0x18] sm:$0xff]
    %v57 = vld [vmem:[%s2] sm:$0x3]
    %v59 = vlaneseq
    %v60 = vshrl.u32 %v59, 7
    %v61 = vsub.s32 0, %v60
    %v62 = vrot.slane %v57, %v61
    %v63 = vlaneseq
    %v64 = vshrl.u32 %v63, 7
    %v65 = vsub.s32 1, %v64
    %v66 = vrot.slane %v57, %v65
    %vm69 = vcmask 130048
    %v71 = vsel %vm69, %v45, 0
    %v74 = vsel %vm69, %v46, 0
    %v77 = vsel %vm69, %v47, 0
    %v80 = vsel %vm69, %v48, 0
    %v83 = vsel %vm69, %v49, 0
    %v86 = vsel %vm69, %v50, 0
    %v89 = vsel %vm69, %v51, 0
    %v92 = vsel %vm69, %v52, 0
    %94 = vmatprep.subr.mxu0 %v54
    %95 = vmatpush1.msra.mxu0 %v53
    %96 = vmatprep.subr.mxu0 %v56
    %97 = vmatpush1.msra.mxu0 %v55
    %98 = vmatprep.subr.mxu0 0.0
    %99 = vmatpush1.msra.mxu0 0.0
    %100 = vmatprep.subr.mxu0 0.0
    %101 = vmatpush1.msra.mxu0 0.0
    %102 = vmatprep.subr.mxu0 0.0
    %103 = vmatpush1.msra.mxu0 0.0
    %104 = vmatprep.subr.mxu0 0.0
    %105 = vmatpush1.msra.mxu0 0.0
    %106 = vmatprep.subr.mxu0 0.0
    %107 = vmatpush1.msra.mxu0 0.0
    %108 = vmatprep.subr.mxu0 0.0
    %109 = vmatpush1.msra.mxu0 0.0
    %110 = vmatprep.subr.mxu0 0.0
    %111 = vmatpush1.msra.mxu0 0.0
    %112 = vmatprep.subr.mxu0 0.0
    %113 = vmatpush1.msra.mxu0 0.0
    %114 = vmatprep.subr.mxu0 0.0
    %115 = vmatpush1.msra.mxu0 0.0
    %116 = vmatprep.subr.mxu0 0.0
    %117 = vmatpush1.msra.mxu0 0.0
    %118 = vmatprep.subr.mxu0 0.0
    %119 = vmatpush1.msra.mxu0 0.0
    %120 = vmatprep.subr.mxu0 0.0
    %121 = vmatpush1.msra.mxu0 0.0
    %122 = vmatprep.subr.mxu0 0.0
    %123 = vmatpush1.msra.mxu0 0.0
    %124 = vmatprep.subr.mxu0 0.0
    %125 = vmatpush1.msra.mxu0 0.0
    %126 = vmatprep.subr.mxu0 0.0
    %127 = vmatpush1.msra.mxu0 0.0
    %128 = vmatprep.subr.mxu0 0.0
    %129 = vmatpush1.msra.mxu0 0.0
    %130 = vmatprep.subr.mxu0 0.0
    %131 = vmatpush1.msra.mxu0 0.0
    %132 = vmatprep.subr.mxu0 0.0
    %133 = vmatpush1.msra.mxu0 0.0
    %134 = vmatprep.subr.mxu0 0.0
    %135 = vmatpush1.msra.mxu0 0.0
    %136 = vmatprep.subr.mxu0 0.0
    %137 = vmatpush1.msra.mxu0 0.0
    %138 = vmatprep.subr.mxu0 0.0
    %139 = vmatpush1.msra.mxu0 0.0
    %140 = vmatprep.subr.mxu0 0.0
    %141 = vmatpush1.msra.mxu0 0.0
    %142 = vmatprep.subr.mxu0 0.0
    %143 = vmatpush1.msra.mxu0 0.0
    %144 = vmatprep.subr.mxu0 0.0
    %145 = vmatpush1.msra.mxu0 0.0
    %146 = vmatprep.subr.mxu0 0.0
    %147 = vmatpush1.msra.mxu0 0.0
    %148 = vmatprep.subr.mxu0 0.0
    %149 = vmatpush1.msra.mxu0 0.0
    %150 = vmatprep.subr.mxu0 0.0
    %151 = vmatpush1.msra.mxu0 0.0
    %152 = vmatprep.subr.mxu0 0.0
    %153 = vmatpush1.msra.mxu0 0.0
    %154 = vmatprep.subr.mxu0 0.0
    %155 = vmatpush1.msra.mxu0 0.0
    %156 = vmatprep.subr.mxu0 0.0
    %157 = vmatpush1.msra.mxu0 0.0
    %158 = vmatprep.mubr.f32.mxu0 0.0
    %159 = vmatmul.mubr.f32.gmra.mrb[0].mxu0 %v71
    %v160 = vpop.f32.mrb[0].mxu0
    %v161 = vadd.f32 %v62, %v160
    %v162 = vpop.f32.mrb[0].mxu0
    %v163 = vadd.f32 %v66, %v162
    %164 = vmatprep.mubr.f32.mxu0 0.0
    %165 = vmatmul.mubr.f32.gmra.mrb[0].mxu0 %v74
    %v166 = vpop.f32.mrb[0].mxu0
    %v167 = vadd.f32 %v62, %v166
    %v168 = vpop.f32.mrb[0].mxu0
    %v169 = vadd.f32 %v66, %v168
    %170 = vmatprep.mubr.f32.mxu0 0.0
    %171 = vmatmul.mubr.f32.gmra.mrb[0].mxu0 %v77
    %v172 = vpop.f32.mrb[0].mxu0
    %v173 = vadd.f32 %v62, %v172
    %v174 = vpop.f32.mrb[0].mxu0
    %v175 = vadd.f32 %v66, %v174
    %176 = vmatprep.mubr.f32.mxu0 0.0
    %177 = vmatmul.mubr.f32.gmra.mrb[0].mxu0 %v80
    %v178 = vpop.f32.mrb[0].mxu0
    %v179 = vadd.f32 %v62, %v178
    %v180 = vpop.f32.mrb[0].mxu0
    %v181 = vadd.f32 %v66, %v180
    %182 = vmatprep.mubr.f32.mxu0 0.0
    %183 = vmatmul.mubr.f32.gmra.mrb[0].mxu0 %v83
    %v184 = vpop.f32.mrb[0].mxu0
    %v185 = vadd.f32 %v62, %v184
    %v186 = vpop.f32.mrb[0].mxu0
    %v187 = vadd.f32 %v66, %v186
    %188 = vmatprep.mubr.f32.mxu0 0.0
    %189 = vmatmul.mubr.f32.gmra.mrb[0].mxu0 %v86
    %v190 = vpop.f32.mrb[0].mxu0
    %v191 = vadd.f32 %v62, %v190
    %v192 = vpop.f32.mrb[0].mxu0
    %v193 = vadd.f32 %v66, %v192
    %194 = vmatprep.mubr.f32.mxu0 0.0
    %195 = vmatmul.mubr.f32.gmra.mrb[0].mxu0 %v89
    %v196 = vpop.f32.mrb[0].mxu0
    %v197 = vadd.f32 %v62, %v196
    %v198 = vpop.f32.mrb[0].mxu0
    %v199 = vadd.f32 %v66, %v198
    %200 = vmatprep.mubr.f32.mxu0 0.0
    %201 = vmatmul.mubr.f32.gmra.mrb[0].mxu0 %v92
    %v202 = vpop.f32.mrb[0].mxu0
    %v203 = vadd.f32 %v62, %v202
    %v204 = vpop.f32.mrb[0].mxu0
    %v205 = vadd.f32 %v66, %v204
    %206 = vdwg.mxu0
    %207 = vst [vmem:[#allocation2] sm:$0xff] %v161
    %208 = vst [vmem:[#allocation2 + $0x8] sm:$0xff] %v163
    %209 = vst [vmem:[#allocation2 + $0x10] sm:$0xff] %v167
    %210 = vst [vmem:[#allocation2 + $0x18] sm:$0xff] %v169
    %211 = vst [vmem:[#allocation2 + $0x20] sm:$0xff] %v173
    %212 = vst [vmem:[#allocation2 + $0x28] sm:$0xff] %v175
    %213 = vst [vmem:[#allocation2 + $0x30] sm:$0xff] %v179
    %214 = vst [vmem:[#allocation2 + $0x38] sm:$0xff] %v181
    %215 = vst [vmem:[#allocation2 + $0x40] sm:$0xff] %v185
    %216 = vst [vmem:[#allocation2 + $0x48] sm:$0xff] %v187
    %217 = vst [vmem:[#allocation2 + $0x50] sm:$0xff] %v191
    %218 = vst [vmem:[#allocation2 + $0x58] sm:$0xff] %v193
    %219 = vst [vmem:[#allocation2 + $0x60] sm:$0xff] %v197
    %220 = vst [vmem:[#allocation2 + $0x68] sm:$0xff] %v199
    %221 = vst [vmem:[#allocation2 + $0x70] sm:$0xff] %v203
    %222 = vst [vmem:[#allocation2 + $0x78] sm:$0xff] %v205
    %v223 = vld [vmem:[#allocation4] sm:$0xff]
    %v224 = vld [vmem:[#allocation4 + $0x8] sm:$0xff]
    %v225 = vld [vmem:[#allocation4 + $0x10] sm:$0xff]
    %v226 = vld [vmem:[#allocation4 + $0x18] sm:$0xff]
    %v227 = vld [vmem:[#allocation4 + $0x20] sm:$0xff]
    %v228 = vld [vmem:[#allocation4 + $0x28] sm:$0xff]
    %v229 = vld [vmem:[#allocation4 + $0x30] sm:$0xff]
    %v230 = vld [vmem:[#allocation4 + $0x38] sm:$0xff]
    %v231 = vld [vmem:[#allocation4 + $0x40] sm:$0xff]
    %v232 = vld [vmem:[#allocation4 + $0x48] sm:$0xff]
    %v233 = vld [vmem:[#allocation4 + $0x50] sm:$0xff]
    %v234 = vld [vmem:[#allocation4 + $0x58] sm:$0xff]
    %v235 = vld [vmem:[#allocation4 + $0x60] sm:$0xff]
    %v236 = vld [vmem:[#allocation4 + $0x68] sm:$0xff]
    %v237 = vld [vmem:[#allocation4 + $0x70] sm:$0xff]
    %v238 = vld [vmem:[#allocation4 + $0x78] sm:$0xff]
    %v239 = vld [vmem:[#allocation4 + $0x80] sm:$0xff]
    %v240 = vld [vmem:[#allocation4 + $0x88] sm:$0xff]
    %v241 = vld [vmem:[#allocation4 + $0x90] sm:$0xff]
    %v242 = vld [vmem:[#allocation4 + $0x98] sm:$0xff]
    %v243 = vld [vmem:[#allocation4 + $0xa0] sm:$0xff]
    %v244 = vld [vmem:[#allocation4 + $0xa8] sm:$0xff]
    %v245 = vld [vmem:[#allocation4 + $0xb0] sm:$0xff]
    %v246 = vld [vmem:[#allocation4 + $0xb8] sm:$0xff]
    %v247 = vld [vmem:[#allocation4 + $0xc0] sm:$0xff]
    %v248 = vld [vmem:[#allocation4 + $0xc8] sm:$0xff]
    %v249 = vld [vmem:[#allocation4 + $0xd0] sm:$0xff]
    %v250 = vld [vmem:[#allocation4 + $0xd8] sm:$0xff]
    %v251 = vld [vmem:[#allocation4 + $0xe0] sm:$0xff]
    %v252 = vld [vmem:[#allocation4 + $0xe8] sm:$0xff]
    %v253 = vld [vmem:[#allocation4 + $0xf0] sm:$0xff]
    %v254 = vld [vmem:[#allocation4 + $0xf8] sm:$0xff]
    %v255 = vld [vmem:[#allocation4 + $0x100] sm:$0xff]
    %v256 = vld [vmem:[#allocation4 + $0x108] sm:$0xff]
    %v257 = vld [vmem:[#allocation4 + $0x110] sm:$0xff]
    %v258 = vld [vmem:[#allocation4 + $0x118] sm:$0xff]
    %v259 = vld [vmem:[#allocation4 + $0x120] sm:$0xff]
    %v260 = vld [vmem:[#allocation4 + $0x128] sm:$0xff]
    %v261 = vld [vmem:[#allocation4 + $0x130] sm:$0xff]
    %v262 = vld [vmem:[#allocation4 + $0x138] sm:$0xff]
    %v263 = vld [vmem:[#allocation4 + $0x140] sm:$0xff]
    %v264 = vld [vmem:[#allocation4 + $0x148] sm:$0xff]
    %v265 = vld [vmem:[#allocation4 + $0x150] sm:$0xff]
    %v266 = vld [vmem:[#allocation4 + $0x158] sm:$0xff]
    %v267 = vld [vmem:[#allocation4 + $0x160] sm:$0xff]
    %v268 = vld [vmem:[#allocation4 + $0x168] sm:$0xff]
    %v269 = vld [vmem:[#allocation4 + $0x170] sm:$0xff]
    %v270 = vld [vmem:[#allocation4 + $0x178] sm:$0xff]
    %v271 = vld [vmem:[#allocation4 + $0x180] sm:$0xff]
    %v272 = vld [vmem:[#allocation4 + $0x188] sm:$0xff]
    %v273 = vld [vmem:[#allocation4 + $0x190] sm:$0xff]
    %v274 = vld [vmem:[#allocation4 + $0x198] sm:$0xff]
    %v275 = vld [vmem:[#allocation4 + $0x1a0] sm:$0xff]
    %v276 = vld [vmem:[#allocation4 + $0x1a8] sm:$0xff]
    %v277 = vld [vmem:[#allocation4 + $0x1b0] sm:$0xff]
    %v278 = vld [vmem:[#allocation4 + $0x1b8] sm:$0xff]
    %v279 = vld [vmem:[#allocation4 + $0x1c0] sm:$0xff]
    %v280 = vld [vmem:[#allocation4 + $0x1c8] sm:$0xff]
    %v281 = vld [vmem:[#allocation4 + $0x1d0] sm:$0xff]
    %v282 = vld [vmem:[#allocation4 + $0x1d8] sm:$0xff]
    %v283 = vld [vmem:[#allocation4 + $0x1e0] sm:$0xff]
    %v284 = vld [vmem:[#allocation4 + $0x1e8] sm:$0xff]
    %v285 = vld [vmem:[#allocation4 + $0x1f0] sm:$0xff]
    %v286 = vld [vmem:[#allocation4 + $0x1f8] sm:$0xff]
    %v287 = vld [vmem:[%s4] sm:$0xff]
    %v288 = vld [vmem:[%s4 + $0x8] sm:$0xff]
    %v289 = vld [vmem:[%s4 + $0x10] sm:$0xff]
    %v290 = vld [vmem:[%s4 + $0x18] sm:$0xff]
    %v291 = vld [vmem:[%s4 + $0x20] sm:$0xff]
    %v292 = vld [vmem:[%s4 + $0x28] sm:$0xff]
    %v293 = vld [vmem:[%s4 + $0x30] sm:$0xff]
    %v294 = vld [vmem:[%s4 + $0x38] sm:$0xff]
    %v295 = vld [vmem:[%s4 + $0x40] sm:$0xff]
    %v296 = vld [vmem:[%s4 + $0x48] sm:$0xff]
    %v297 = vld [vmem:[%s4 + $0x50] sm:$0xff]
    %v298 = vld [vmem:[%s4 + $0x58] sm:$0xff]
    %v299 = vld [vmem:[%s4 + $0x60] sm:$0xff]
    %v300 = vld [vmem:[%s4 + $0x68] sm:$0xff]
    %v301 = vld [vmem:[%s4 + $0x70] sm:$0xff]
    %v302 = vld [vmem:[%s4 + $0x78] sm:$0xff]
    %v303 = vld [vmem:[%s5] sm:$0x3]
    %v305 = vlaneseq
    %v306 = vshrl.u32 %v305, 7
    %v307 = vsub.s32 0, %v306
    %v308 = vrot.slane %v303, %v307
    %v309 = vlaneseq
    %v310 = vshrl.u32 %v309, 7
    %v311 = vsub.s32 1, %v310
    %v312 = vrot.slane %v303, %v311
    %315 = vmatprep.subr.mxu0 %v224
    %316 = vmatpush1.msra.mxu0 %v223
    %317 = vmatprep.subr.mxu0 %v228
    %318 = vmatpush1.msra.mxu0 %v227
    %319 = vmatprep.subr.mxu0 %v232
    %320 = vmatpush1.msra.mxu0 %v231
    %321 = vmatprep.subr.mxu0 %v236
    %322 = vmatpush1.msra.mxu0 %v235
    %323 = vmatprep.subr.mxu0 %v240
    %324 = vmatpush1.msra.mxu0 %v239
    %325 = vmatprep.subr.mxu0 %v244
    %326 = vmatpush1.msra.mxu0 %v243
    %327 = vmatprep.subr.mxu0 %v248
    %328 = vmatpush1.msra.mxu0 %v247
    %329 = vmatprep.subr.mxu0 %v252
    %330 = vmatpush1.msra.mxu0 %v251
    %331 = vmatprep.subr.mxu0 %v256
    %332 = vmatpush1.msra.mxu0 %v255
    %333 = vmatprep.subr.mxu0 %v260
    %334 = vmatpush1.msra.mxu0 %v259
    %335 = vmatprep.subr.mxu0 %v264
    %336 = vmatpush1.msra.mxu0 %v263
    %337 = vmatprep.subr.mxu0 %v268
    %338 = vmatpush1.msra.mxu0 %v267
    %339 = vmatprep.subr.mxu0 %v272
    %340 = vmatpush1.msra.mxu0 %v271
    %341 = vmatprep.subr.mxu0 %v276
    %342 = vmatpush1.msra.mxu0 %v275
    %343 = vmatprep.subr.mxu0 %v280
    %344 = vmatpush1.msra.mxu0 %v279
    %345 = vmatprep.subr.mxu0 %v284
    %346 = vmatpush1.msra.mxu0 %v283
    %347 = vmatprep.subr.mxu0 0.0
    %348 = vmatpush1.msra.mxu0 0.0
    %349 = vmatprep.subr.mxu0 0.0
    %350 = vmatpush1.msra.mxu0 0.0
    %351 = vmatprep.subr.mxu0 0.0
    %352 = vmatpush1.msra.mxu0 0.0
    %353 = vmatprep.subr.mxu0 0.0
    %354 = vmatpush1.msra.mxu0 0.0
    %355 = vmatprep.subr.mxu0 0.0
    %356 = vmatpush1.msra.mxu0 0.0
    %357 = vmatprep.subr.mxu0 0.0
    %358 = vmatpush1.msra.mxu0 0.0
    %359 = vmatprep.subr.mxu0 0.0
    %360 = vmatpush1.msra.mxu0 0.0
    %361 = vmatprep.subr.mxu0 0.0
    %362 = vmatpush1.msra.mxu0 0.0
    %363 = vmatprep.subr.mxu0 0.0
    %364 = vmatpush1.msra.mxu0 0.0
    %365 = vmatprep.subr.mxu0 0.0
    %366 = vmatpush1.msra.mxu0 0.0
    %367 = vmatprep.subr.mxu0 0.0
    %368 = vmatpush1.msra.mxu0 0.0
    %369 = vmatprep.subr.mxu0 0.0
    %370 = vmatpush1.msra.mxu0 0.0
    %371 = vmatprep.subr.mxu0 0.0
    %372 = vmatpush1.msra.mxu0 0.0
    %373 = vmatprep.subr.mxu0 0.0
    %374 = vmatpush1.msra.mxu0 0.0
    %375 = vmatprep.subr.mxu0 0.0
    %376 = vmatpush1.msra.mxu0 0.0
    %377 = vmatprep.subr.mxu0 0.0
    %378 = vmatpush1.msra.mxu0 0.0
    %379 = vmatprep.mubr.f32.mxu0 0.0
    %380 = vmatmul.mubr.f32.gmra.mrb[0].mxu0 0.0
    %v381 = vpop.f32.mrb[0].mxu0
    %v382 = vadd.f32 0.0, %v381
    %v383 = vpop.f32.mrb[0].mxu0
    %v384 = vadd.f32 0.0, %v383
    %385 = vdwg.mxu0
    %386 = vmatprep.subr.mxu0 %v226
    %387 = vmatpush1.msra.mxu0 %v225
    %388 = vmatprep.subr.mxu0 %v230
    %389 = vmatpush1.msra.mxu0 %v229
    %390 = vmatprep.subr.mxu0 %v234
    %391 = vmatpush1.msra.mxu0 %v233
    %392 = vmatprep.subr.mxu0 %v238
    %393 = vmatpush1.msra.mxu0 %v237
    %394 = vmatprep.subr.mxu0 %v242
    %395 = vmatpush1.msra.mxu0 %v241
    %396 = vmatprep.subr.mxu0 %v246
    %397 = vmatpush1.msra.mxu0 %v245
    %398 = vmatprep.subr.mxu0 %v250
    %399 = vmatpush1.msra.mxu0 %v249
    %400 = vmatprep.subr.mxu0 %v254
    %401 = vmatpush1.msra.mxu0 %v253
    %402 = vmatprep.subr.mxu0 %v258
    %403 = vmatpush1.msra.mxu0 %v257
    %404 = vmatprep.subr.mxu0 %v262
    %405 = vmatpush1.msra.mxu0 %v261
    %406 = vmatprep.subr.mxu0 %v266
    %407 = vmatpush1.msra.mxu0 %v265
    %408 = vmatprep.subr.mxu0 %v270
    %409 = vmatpush1.msra.mxu0 %v269
    %410 = vmatprep.subr.mxu0 %v274
    %411 = vmatpush1.msra.mxu0 %v273
    %412 = vmatprep.subr.mxu0 %v278
    %413 = vmatpush1.msra.mxu0 %v277
    %414 = vmatprep.subr.mxu0 %v282
    %415 = vmatpush1.msra.mxu0 %v281
    %416 = vmatprep.subr.mxu0 %v286
    %417 = vmatpush1.msra.mxu0 %v285
    %418 = vmatprep.subr.mxu0 0.0
    %419 = vmatpush1.msra.mxu0 0.0
    %420 = vmatprep.subr.mxu0 0.0
    %421 = vmatpush1.msra.mxu0 0.0
    %422 = vmatprep.subr.mxu0 0.0
    %423 = vmatpush1.msra.mxu0 0.0
    %424 = vmatprep.subr.mxu0 0.0
    %425 = vmatpush1.msra.mxu0 0.0
    %426 = vmatprep.subr.mxu0 0.0
    %427 = vmatpush1.msra.mxu0 0.0
    %428 = vmatprep.subr.mxu0 0.0
    %429 = vmatpush1.msra.mxu0 0.0
    %430 = vmatprep.subr.mxu0 0.0
    %431 = vmatpush1.msra.mxu0 0.0
    %432 = vmatprep.subr.mxu0 0.0
    %433 = vmatpush1.msra.mxu0 0.0
    %434 = vmatprep.subr.mxu0 0.0
    %435 = vmatpush1.msra.mxu0 0.0
    %436 = vmatprep.subr.mxu0 0.0
    %437 = vmatpush1.msra.mxu0 0.0
    %438 = vmatprep.subr.mxu0 0.0
    %439 = vmatpush1.msra.mxu0 0.0
    %440 = vmatprep.subr.mxu0 0.0
    %441 = vmatpush1.msra.mxu0 0.0
    %442 = vmatprep.subr.mxu0 0.0
    %443 = vmatpush1.msra.mxu0 0.0
    %444 = vmatprep.subr.mxu0 0.0
    %445 = vmatpush1.msra.mxu0 0.0
    %446 = vmatprep.subr.mxu0 0.0
    %447 = vmatpush1.msra.mxu0 0.0
    %448 = vmatprep.subr.mxu0 0.0
    %449 = vmatpush1.msra.mxu0 0.0
    %450 = vmatprep.mubr.f32.mxu0 0.0
    %451 = vmatmul.mubr.f32.gmra.mrb[0].mxu0 0.0
    %v452 = vpop.f32.mrb[0].mxu0
    %v453 = vadd.f32 0.0, %v452
    %v454 = vpop.f32.mrb[0].mxu0
    %v455 = vadd.f32 0.0, %v454
    %456 = vdwg.mxu0
    %v457 = vld [vmem:[#allocation2] sm:$0xff]
    %v458 = vld [vmem:[#allocation2 + $0x8] sm:$0xff]
    %v459 = vadd.f32 %v457, %v382
    %v460 = vadd.f32 %v458, %v384
    %v461 = vxor.u32 %v459, 2147483648
    %v462 = vxor.u32 %v460, 2147483648
    %v463 = vmul.f32 %v461, 1.442695
    %v464 = vpow.pop %v463
    %v465 = vmul.f32 %v462, 1.442695
    %v466 = vpow.pop %v465
    %v467 = vadd.f32 %v464, 1.0
    %v468 = vadd.f32 %v466, 1.0
    %v469 = vrcp.pop %v467
    %v470 = vmul.f32 1.0, %v469
    %v471 = vrcp.pop %v468
    %v472 = vmul.f32 1.0, %v471
    %v473 = vtanh.pop %v460
    %v474 = vmul.f32 %v470, 0.0
    %476 = vrot.lane.b32.xlu0 %v473, 64
    %v477 = vpop.permute.xlu0 %476
    %v479 = vmul.f32 %v470, %v477
    %481 = vrot.lane.b32.xlu0 %v479, 64
    %v482 = vpop.permute.xlu0 %481
    %v484 = vadd.f32 %v474, %v482
    %v485 = vtanh.pop %v484
    %487 = vrot.lane.b32.xlu0 %v485, 64
    %v488 = vpop.permute.xlu0 %487
    %v490 = vmul.f32 %v472, %v488
    %vm491 = vcmask 523264
    %v493 = vsel %vm491, %v490, 0
    %495 = vmatprep.subr.mxu0 %v288
    %496 = vmatpush1.msra.mxu0 %v287
    %497 = vmatprep.subr.mxu0 %v290
    %498 = vmatpush1.msra.mxu0 %v289
    %499 = vmatprep.subr.mxu0 %v292
    %500 = vmatpush1.msra.mxu0 %v291
    %501 = vmatprep.subr.mxu0 %v294
    %502 = vmatpush1.msra.mxu0 %v293
    %503 = vmatprep.subr.mxu0 %v296
    %504 = vmatpush1.msra.mxu0 %v295
    %505 = vmatprep.subr.mxu0 %v298
    %506 = vmatpush1.msra.mxu0 %v297
    %507 = vmatprep.subr.mxu0 %v300
    %508 = vmatpush1.msra.mxu0 %v299
    %509 = vmatprep.subr.mxu0 %v302
    %510 = vmatpush1.msra.mxu0 %v301
    %511 = vmatprep.subr.mxu0 0.0
    %512 = vmatpush1.msra.mxu0 0.0
    %513 = vmatprep.subr.mxu0 0.0
    %514 = vmatpush1.msra.mxu0 0.0
    %515 = vmatprep.subr.mxu0 0.0
    %516 = vmatpush1.msra.mxu0 0.0
    %517 = vmatprep.subr.mxu0 0.0
    %518 = vmatpush1.msra.mxu0 0.0
    %519 = vmatprep.subr.mxu0 0.0
    %520 = vmatpush1.msra.mxu0 0.0
    %521 = vmatprep.subr.mxu0 0.0
    %522 = vmatpush1.msra.mxu0 0.0
    %523 = vmatprep.subr.mxu0 0.0
    %524 = vmatpush1.msra.mxu0 0.0
    %525 = vmatprep.subr.mxu0 0.0
    %526 = vmatpush1.msra.mxu0 0.0
    %527 = vmatprep.subr.mxu0 0.0
    %528 = vmatpush1.msra.mxu0 0.0
    %529 = vmatprep.subr.mxu0 0.0
    %530 = vmatpush1.msra.mxu0 0.0
    %531 = vmatprep.subr.mxu0 0.0
    %532 = vmatpush1.msra.mxu0 0.0
    %533 = vmatprep.subr.mxu0 0.0
    %534 = vmatpush1.msra.mxu0 0.0
    %535 = vmatprep.subr.mxu0 0.0
    %536 = vmatpush1.msra.mxu0 0.0
    %537 = vmatprep.subr.mxu0 0.0
    %538 = vmatpush1.msra.mxu0 0.0
    %539 = vmatprep.subr.mxu0 0.0
    %540 = vmatpush1.msra.mxu0 0.0
    %541 = vmatprep.subr.mxu0 0.0
    %542 = vmatpush1.msra.mxu0 0.0
    %543 = vmatprep.subr.mxu0 0.0
    %544 = vmatpush1.msra.mxu0 0.0
    %545 = vmatprep.subr.mxu0 0.0
    %546 = vmatpush1.msra.mxu0 0.0
    %547 = vmatprep.subr.mxu0 0.0
    %548 = vmatpush1.msra.mxu0 0.0
    %549 = vmatprep.subr.mxu0 0.0
    %550 = vmatpush1.msra.mxu0 0.0
    %551 = vmatprep.subr.mxu0 0.0
    %552 = vmatpush1.msra.mxu0 0.0
    %553 = vmatprep.subr.mxu0 0.0
    %554 = vmatpush1.msra.mxu0 0.0
    %555 = vmatprep.subr.mxu0 0.0
    %556 = vmatpush1.msra.mxu0 0.0
    %557 = vmatprep.subr.mxu0 0.0
    %558 = vmatpush1.msra.mxu0 0.0
    %559 = vmatprep.mubr.f32.mxu0 0.0
    %560 = vmatmul.mubr.f32.gmra.mrb[0].mxu0 %v493
    %v561 = vpop.f32.mrb[0].mxu0
    %v562 = vadd.f32 %v308, %v561
    %v563 = vpop.f32.mrb[0].mxu0
    %v564 = vadd.f32 %v312, %v563
    %565 = vdwg.mxu0
    %v566 = vadd.f32 %v562, %v453
    %v567 = vadd.f32 %v564, %v455
    %v568 = vxor.u32 %v566, 2147483648
    %v569 = vxor.u32 %v567, 2147483648
    %v570 = vmul.f32 %v568, 1.442695
    %v571 = vpow.pop %v570
    %v572 = vmul.f32 %v569, 1.442695
    %v573 = vpow.pop %v572
    %v574 = vadd.f32 %v571, 1.0
    %v575 = vadd.f32 %v573, 1.0
    %v576 = vrcp.pop %v574
    %v577 = vmul.f32 1.0, %v576
    %v578 = vrcp.pop %v575
    %v579 = vmul.f32 1.0, %v578
    %v580 = vtanh.pop %v567
    %v581 = vmul.f32 %v577, 0.0
    %583 = vrot.lane.b32.xlu0 %v580, 64
    %v584 = vpop.permute.xlu0 %583
    %v586 = vmul.f32 %v577, %v584
    %588 = vrot.lane.b32.xlu0 %v586, 64
    %v589 = vpop.permute.xlu0 %588
    %v591 = vadd.f32 %v581, %v589
    %v592 = vtanh.pop %v591
    %594 = vrot.lane.b32.xlu0 %v592, 64
    %v595 = vpop.permute.xlu0 %594
    %v597 = vmul.f32 %v579, %v595
    %599 = vrot.lane.b32.xlu0 %v597, 64
    %v600 = vpop.permute.xlu0 %599
    %v602 = vsel %vm491, %v490, %v600
    %603 = vmatprep.subr.mxu0 %v224
    %604 = vmatpush1.msra.mxu0 %v223
    %605 = vmatprep.subr.mxu0 %v228
    %606 = vmatpush1.msra.mxu0 %v227
    %607 = vmatprep.subr.mxu0 %v232
    %608 = vmatpush1.msra.mxu0 %v231
    %609 = vmatprep.subr.mxu0 %v236
    %610 = vmatpush1.msra.mxu0 %v235
    %611 = vmatprep.subr.mxu0 %v240
    %612 = vmatpush1.msra.mxu0 %v239
    %613 = vmatprep.subr.mxu0 %v244
    %614 = vmatpush1.msra.mxu0 %v243
    %615 = vmatprep.subr.mxu0 %v248
    %616 = vmatpush1.msra.mxu0 %v247
    %617 = vmatprep.subr.mxu0 %v252
    %618 = vmatpush1.msra.mxu0 %v251
    %619 = vmatprep.subr.mxu0 %v256
    %620 = vmatpush1.msra.mxu0 %v255
    %621 = vmatprep.subr.mxu0 %v260
    %622 = vmatpush1.msra.mxu0 %v259
    %623 = vmatprep.subr.mxu0 %v264
    %624 = vmatpush1.msra.mxu0 %v263
    %625 = vmatprep.subr.mxu0 %v268
    %626 = vmatpush1.msra.mxu0 %v267
    %627 = vmatprep.subr.mxu0 %v272
    %628 = vmatpush1.msra.mxu0 %v271
    %629 = vmatprep.subr.mxu0 %v276
    %630 = vmatpush1.msra.mxu0 %v275
    %631 = vmatprep.subr.mxu0 %v280
    %632 = vmatpush1.msra.mxu0 %v279
    %633 = vmatprep.subr.mxu0 %v284
    %634 = vmatpush1.msra.mxu0 %v283
    %635 = vmatprep.subr.mxu0 0.0
    %636 = vmatpush1.msra.mxu0 0.0
    %637 = vmatprep.subr.mxu0 0.0
    %638 = vmatpush1.msra.mxu0 0.0
    %639 = vmatprep.subr.mxu0 0.0
    %640 = vmatpush1.msra.mxu0 0.0
    %641 = vmatprep.subr.mxu0 0.0
    %642 = vmatpush1.msra.mxu0 0.0
    %643 = vmatprep.subr.mxu0 0.0
    %644 = vmatpush1.msra.mxu0 0.0
    %645 = vmatprep.subr.mxu0 0.0
    %646 = vmatpush1.msra.mxu0 0.0
    %647 = vmatprep.subr.mxu0 0.0
    %648 = vmatpush1.msra.mxu0 0.0
    %649 = vmatprep.subr.mxu0 0.0
    %650 = vmatpush1.msra.mxu0 0.0
    %651 = vmatprep.subr.mxu0 0.0
    %652 = vmatpush1.msra.mxu0 0.0
    %653 = vmatprep.subr.mxu0 0.0
    %654 = vmatpush1.msra.mxu0 0.0
    %655 = vmatprep.subr.mxu0 0.0
    %656 = vmatpush1.msra.mxu0 0.0
    %657 = vmatprep.subr.mxu0 0.0
    %658 = vmatpush1.msra.mxu0 0.0
    %659 = vmatprep.subr.mxu0 0.0
    %660 = vmatpush1.msra.mxu0 0.0
    %661 = vmatprep.subr.mxu0 0.0
    %662 = vmatpush1.msra.mxu0 0.0
    %663 = vmatprep.subr.mxu0 0.0
    %664 = vmatpush1.msra.mxu0 0.0
    %665 = vmatprep.subr.mxu0 0.0
    %666 = vmatpush1.msra.mxu0 0.0
    %667 = vmatprep.mubr.f32.mxu0 0.0
    %668 = vmatmul.mubr.f32.gmra.mrb[0].mxu0 %v602
    %v669 = vpop.f32.mrb[0].mxu0
    %v670 = vadd.f32 0.0, %v669
    %v671 = vpop.f32.mrb[0].mxu0
    %v672 = vadd.f32 0.0, %v671
    %673 = vdwg.mxu0
    %674 = vmatprep.subr.mxu0 %v226
    %675 = vmatpush1.msra.mxu0 %v225
    %676 = vmatprep.subr.mxu0 %v230
    %677 = vmatpush1.msra.mxu0 %v229
    %678 = vmatprep.subr.mxu0 %v234
    %679 = vmatpush1.msra.mxu0 %v233
    %680 = vmatprep.subr.mxu0 %v238
    %681 = vmatpush1.msra.mxu0 %v237
    %682 = vmatprep.subr.mxu0 %v242
    %683 = vmatpush1.msra.mxu0 %v241
    %684 = vmatprep.subr.mxu0 %v246
    %685 = vmatpush1.msra.mxu0 %v245
    %686 = vmatprep.subr.mxu0 %v250
    %687 = vmatpush1.msra.mxu0 %v249
    %688 = vmatprep.subr.mxu0 %v254
    %689 = vmatpush1.msra.mxu0 %v253
    %690 = vmatprep.subr.mxu0 %v258
    %691 = vmatpush1.msra.mxu0 %v257
    %692 = vmatprep.subr.mxu0 %v262
    %693 = vmatpush1.msra.mxu0 %v261
    %694 = vmatprep.subr.mxu0 %v266
    %695 = vmatpush1.msra.mxu0 %v265
    %696 = vmatprep.subr.mxu0 %v270
    %697 = vmatpush1.msra.mxu0 %v269
    %698 = vmatprep.subr.mxu0 %v274
    %699 = vmatpush1.msra.mxu0 %v273
    %700 = vmatprep.subr.mxu0 %v278
    %701 = vmatpush1.msra.mxu0 %v277
    %702 = vmatprep.subr.mxu0 %v282
    %703 = vmatpush1.msra.mxu0 %v281
    %704 = vmatprep.subr.mxu0 %v286
    %705 = vmatpush1.msra.mxu0 %v285
    %706 = vmatprep.subr.mxu0 0.0
    %707 = vmatpush1.msra.mxu0 0.0
    %708 = vmatprep.subr.mxu0 0.0
    %709 = vmatpush1.msra.mxu0 0.0
    %710 = vmatprep.subr.mxu0 0.0
    %711 = vmatpush1.msra.mxu0 0.0
    %712 = vmatprep.subr.mxu0 0.0
    %713 = vmatpush1.msra.mxu0 0.0
    %714 = vmatprep.subr.mxu0 0.0
    %715 = vmatpush1.msra.mxu0 0.0
    %716 = vmatprep.subr.mxu0 0.0
    %717 = vmatpush1.msra.mxu0 0.0
    %718 = vmatprep.subr.mxu0 0.0
    %719 = vmatpush1.msra.mxu0 0.0
    %720 = vmatprep.subr.mxu0 0.0
    %721 = vmatpush1.msra.mxu0 0.0
    %722 = vmatprep.subr.mxu0 0.0
    %723 = vmatpush1.msra.mxu0 0.0
    %724 = vmatprep.subr.mxu0 0.0
    %725 = vmatpush1.msra.mxu0 0.0
    %726 = vmatprep.subr.mxu0 0.0
    %727 = vmatpush1.msra.mxu0 0.0
    %728 = vmatprep.subr.mxu0 0.0
    %729 = vmatpush1.msra.mxu0 0.0
    %730 = vmatprep.subr.mxu0 0.0
    %731 = vmatpush1.msra.mxu0 0.0
    %732 = vmatprep.subr.mxu0 0.0
    %733 = vmatpush1.msra.mxu0 0.0
    %734 = vmatprep.subr.mxu0 0.0
    %735 = vmatpush1.msra.mxu0 0.0
    %736 = vmatprep.subr.mxu0 0.0
    %737 = vmatpush1.msra.mxu0 0.0
    %738 = vmatprep.mubr.f32.mxu0 0.0
    %739 = vmatmul.mubr.f32.gmra.mrb[0].mxu0 %v602
    %v740 = vpop.f32.mrb[0].mxu0
    %v741 = vadd.f32 0.0, %v740
    %v742 = vpop.f32.mrb[0].mxu0
    %v743 = vadd.f32 0.0, %v742
    %744 = vdwg.mxu0
    %v745 = vld [vmem:[#allocation2 + $0x10] sm:$0xff]
    %v746 = vld [vmem:[#allocation2 + $0x18] sm:$0xff]
    %v747 = vadd.f32 %v745, %v670
    %v748 = vadd.f32 %v746, %v672
    %v749 = vxor.u32 %v747, 2147483648
    %v750 = vxor.u32 %v748, 2147483648
    %v751 = vmul.f32 %v749, 1.442695
    %v752 = vpow.pop %v751
    %v753 = vmul.f32 %v750, 1.442695
    %v754 = vpow.pop %v753
    %v755 = vadd.f32 %v752, 1.0
    %v756 = vadd.f32 %v754, 1.0
    %v757 = vrcp.pop %v755
    %v758 = vmul.f32 1.0, %v757
    %v759 = vrcp.pop %v756
    %v760 = vmul.f32 1.0, %v759
    %v761 = vtanh.pop %v748
    %v762 = vmul.f32 %v758, %v484
    %764 = vrot.lane.b32.xlu0 %v761, 64
    %v765 = vpop.permute.xlu0 %764
    %v767 = vmul.f32 %v758, %v765
    %769 = vrot.lane.b32.xlu0 %v767, 64
    %v770 = vpop.permute.xlu0 %769
    %v772 = vadd.f32 %v762, %v770
    %v773 = vtanh.pop %v772
    %775 = vrot.lane.b32.xlu0 %v773, 64
    %v776 = vpop.permute.xlu0 %775
    %v778 = vmul.f32 %v760, %v776
    %v780 = vsel %vm491, %v778, 0
    %782 = vmatprep.subr.mxu0 %v288
    %783 = vmatpush1.msra.mxu0 %v287
    %784 = vmatprep.subr.mxu0 %v290
    %785 = vmatpush1.msra.mxu0 %v289
    %786 = vmatprep.subr.mxu0 %v292
    %787 = vmatpush1.msra.mxu0 %v291
    %788 = vmatprep.subr.mxu0 %v294
    %789 = vmatpush1.msra.mxu0 %v293
    %790 = vmatprep.subr.mxu0 %v296
    %791 = vmatpush1.msra.mxu0 %v295
    %792 = vmatprep.subr.mxu0 %v298
    %793 = vmatpush1.msra.mxu0 %v297
    %794 = vmatprep.subr.mxu0 %v300
    %795 = vmatpush1.msra.mxu0 %v299
    %796 = vmatprep.subr.mxu0 %v302
    %797 = vmatpush1.msra.mxu0 %v301
    %798 = vmatprep.subr.mxu0 0.0
    %799 = vmatpush1.msra.mxu0 0.0
    %800 = vmatprep.subr.mxu0 0.0
    %801 = vmatpush1.msra.mxu0 0.0
    %802 = vmatprep.subr.mxu0 0.0
    %803 = vmatpush1.msra.mxu0 0.0
    %804 = vmatprep.subr.mxu0 0.0
    %805 = vmatpush1.msra.mxu0 0.0
    %806 = vmatprep.subr.mxu0 0.0
    %807 = vmatpush1.msra.mxu0 0.0
    %808 = vmatprep.subr.mxu0 0.0
    %809 = vmatpush1.msra.mxu0 0.0
    %810 = vmatprep.subr.mxu0 0.0
    %811 = vmatpush1.msra.mxu0 0.0
    %812 = vmatprep.subr.mxu0 0.0
    %813 = vmatpush1.msra.mxu0 0.0
    %814 = vmatprep.subr.mxu0 0.0
    %815 = vmatpush1.msra.mxu0 0.0
    %816 = vmatprep.subr.mxu0 0.0
    %817 = vmatpush1.msra.mxu0 0.0
    %818 = vmatprep.subr.mxu0 0.0
    %819 = vmatpush1.msra.mxu0 0.0
    %820 = vmatprep.subr.mxu0 0.0
    %821 = vmatpush1.msra.mxu0 0.0
    %822 = vmatprep.subr.mxu0 0.0
    %823 = vmatpush1.msra.mxu0 0.0
    %824 = vmatprep.subr.mxu0 0.0
    %825 = vmatpush1.msra.mxu0 0.0
    %826 = vmatprep.subr.mxu0 0.0
    %827 = vmatpush1.msra.mxu0 0.0
    %828 = vmatprep.subr.mxu0 0.0
    %829 = vmatpush1.msra.mxu0 0.0
    %830 = vmatprep.subr.mxu0 0.0
    %831 = vmatpush1.msra.mxu0 0.0
    %832 = vmatprep.subr.mxu0 0.0
    %833 = vmatpush1.msra.mxu0 0.0
    %834 = vmatprep.subr.mxu0 0.0
    %835 = vmatpush1.msra.mxu0 0.0
    %836 = vmatprep.subr.mxu0 0.0
    %837 = vmatpush1.msra.mxu0 0.0
    %838 = vmatprep.subr.mxu0 0.0
    %839 = vmatpush1.msra.mxu0 0.0
    %840 = vmatprep.subr.mxu0 0.0
    %841 = vmatpush1.msra.mxu0 0.0
    %842 = vmatprep.subr.mxu0 0.0
    %843 = vmatpush1.msra.mxu0 0.0
    %844 = vmatprep.subr.mxu0 0.0
    %845 = vmatpush1.msra.mxu0 0.0
    %846 = vmatprep.mubr.f32.mxu0 0.0
    %847 = vmatmul.mubr.f32.gmra.mrb[0].mxu0 %v780
    %v848 = vpop.f32.mrb[0].mxu0
    %v849 = vadd.f32 %v308, %v848
    %v850 = vpop.f32.mrb[0].mxu0
    %v851 = vadd.f32 %v312, %v850
    %852 = vdwg.mxu0
    %v853 = vadd.f32 %v849, %v741
    %v854 = vadd.f32 %v851, %v743
    %v855 = vxor.u32 %v853, 2147483648
    %v856 = vxor.u32 %v854, 2147483648
    %v857 = vmul.f32 %v855, 1.442695
    %v858 = vpow.pop %v857
    %v859 = vmul.f32 %v856, 1.442695
    %v860 = vpow.pop %v859
    %v861 = vadd.f32 %v858, 1.0
    %v862 = vadd.f32 %v860, 1.0
    %v863 = vrcp.pop %v861
    %v864 = vmul.f32 1.0, %v863
    %v865 = vrcp.pop %v862
    %v866 = vmul.f32 1.0, %v865
    %v867 = vtanh.pop %v854
    %v868 = vmul.f32 %v864, %v591
    %870 = vrot.lane.b32.xlu0 %v867, 64
    %v871 = vpop.permute.xlu0 %870
    %v873 = vmul.f32 %v864, %v871
    %875 = vrot.lane.b32.xlu0 %v873, 64
    %v876 = vpop.permute.xlu0 %875
    %v878 = vadd.f32 %v868, %v876
    %v879 = vtanh.pop %v878
    %881 = vrot.lane.b32.xlu0 %v879, 64
    %v882 = vpop.permute.xlu0 %881
    %v884 = vmul.f32 %v866, %v882
    %886 = vrot.lane.b32.xlu0 %v884, 64
    %v887 = vpop.permute.xlu0 %886
    %v889 = vsel %vm491, %v778, %v887
    %890 = vmatprep.subr.mxu0 %v224
    %891 = vmatpush1.msra.mxu0 %v223
    %892 = vmatprep.subr.mxu0 %v228
    %893 = vmatpush1.msra.mxu0 %v227
    %894 = vmatprep.subr.mxu0 %v232
    %895 = vmatpush1.msra.mxu0 %v231
    %896 = vmatprep.subr.mxu0 %v236
    %897 = vmatpush1.msra.mxu0 %v235
    %898 = vmatprep.subr.mxu0 %v240
    %899 = vmatpush1.msra.mxu0 %v239
    %900 = vmatprep.subr.mxu0 %v244
    %901 = vmatpush1.msra.mxu0 %v243
    %902 = vmatprep.subr.mxu0 %v248
    %903 = vmatpush1.msra.mxu0 %v247
    %904 = vmatprep.subr.mxu0 %v252
    %905 = vmatpush1.msra.mxu0 %v251
    %906 = vmatprep.subr.mxu0 %v256
    %907 = vmatpush1.msra.mxu0 %v255
    %908 = vmatprep.subr.mxu0 %v260
    %909 = vmatpush1.msra.mxu0 %v259
    %910 = vmatprep.subr.mxu0 %v264
    %911 = vmatpush1.msra.mxu0 %v263
    %912 = vmatprep.subr.mxu0 %v268
    %913 = vmatpush1.msra.mxu0 %v267
    %914 = vmatprep.subr.mxu0 %v272
    %915 = vmatpush1.msra.mxu0 %v271
    %916 = vmatprep.subr.mxu0 %v276
    %917 = vmatpush1.msra.mxu0 %v275
    %918 = vmatprep.subr.mxu0 %v280
    %919 = vmatpush1.msra.mxu0 %v279
    %920 = vmatprep.subr.mxu0 %v284
    %921 = vmatpush1.msra.mxu0 %v283
    %922 = vmatprep.subr.mxu0 0.0
    %923 = vmatpush1.msra.mxu0 0.0
    %924 = vmatprep.subr.mxu0 0.0
    %925 = vmatpush1.msra.mxu0 0.0
    %926 = vmatprep.subr.mxu0 0.0
    %927 = vmatpush1.msra.mxu0 0.0
    %928 = vmatprep.subr.mxu0 0.0
    %929 = vmatpush1.msra.mxu0 0.0
    %930 = vmatprep.subr.mxu0 0.0
    %931 = vmatpush1.msra.mxu0 0.0
    %932 = vmatprep.subr.mxu0 0.0
    %933 = vmatpush1.msra.mxu0 0.0
    %934 = vmatprep.subr.mxu0 0.0
    %935 = vmatpush1.msra.mxu0 0.0
    %936 = vmatprep.subr.mxu0 0.0
    %937 = vmatpush1.msra.mxu0 0.0
    %938 = vmatprep.subr.mxu0 0.0
    %939 = vmatpush1.msra.mxu0 0.0
    %940 = vmatprep.subr.mxu0 0.0
    %941 = vmatpush1.msra.mxu0 0.0
    %942 = vmatprep.subr.mxu0 0.0
    %943 = vmatpush1.msra.mxu0 0.0
    %944 = vmatprep.subr.mxu0 0.0
    %945 = vmatpush1.msra.mxu0 0.0
    %946 = vmatprep.subr.mxu0 0.0
    %947 = vmatpush1.msra.mxu0 0.0
    %948 = vmatprep.subr.mxu0 0.0
    %949 = vmatpush1.msra.mxu0 0.0
    %950 = vmatprep.subr.mxu0 0.0
    %951 = vmatpush1.msra.mxu0 0.0
    %952 = vmatprep.subr.mxu0 0.0
    %953 = vmatpush1.msra.mxu0 0.0
    %954 = vmatprep.mubr.f32.mxu0 0.0
    %955 = vmatmul.mubr.f32.gmra.mrb[0].mxu0 %v889
    %v956 = vpop.f32.mrb[0].mxu0
    %v957 = vadd.f32 0.0, %v956
    %v958 = vpop.f32.mrb[0].mxu0
    %v959 = vadd.f32 0.0, %v958
    %960 = vdwg.mxu0
    %961 = vmatprep.subr.mxu0 %v226
    %962 = vmatpush1.msra.mxu0 %v225
    %963 = vmatprep.subr.mxu0 %v230
    %964 = vmatpush1.msra.mxu0 %v229
    %965 = vmatprep.subr.mxu0 %v234
    %966 = vmatpush1.msra.mxu0 %v233
    %967 = vmatprep.subr.mxu0 %v238
    %968 = vmatpush1.msra.mxu0 %v237
    %969 = vmatprep.subr.mxu0 %v242
    %970 = vmatpush1.msra.mxu0 %v241
    %971 = vmatprep.subr.mxu0 %v246
    %972 = vmatpush1.msra.mxu0 %v245
    %973 = vmatprep.subr.mxu0 %v250
    %974 = vmatpush1.msra.mxu0 %v249
    %975 = vmatprep.subr.mxu0 %v254
    %976 = vmatpush1.msra.mxu0 %v253
    %977 = vmatprep.subr.mxu0 %v258
    %978 = vmatpush1.msra.mxu0 %v257
    %979 = vmatprep.subr.mxu0 %v262
    %980 = vmatpush1.msra.mxu0 %v261
    %981 = vmatprep.subr.mxu0 %v266
    %982 = vmatpush1.msra.mxu0 %v265
    %983 = vmatprep.subr.mxu0 %v270
    %984 = vmatpush1.msra.mxu0 %v269
    %985 = vmatprep.subr.mxu0 %v274
    %986 = vmatpush1.msra.mxu0 %v273
    %987 = vmatprep.subr.mxu0 %v278
    %988 = vmatpush1.msra.mxu0 %v277
    %989 = vmatprep.subr.mxu0 %v282
    %990 = vmatpush1.msra.mxu0 %v281
    %991 = vmatprep.subr.mxu0 %v286
    %992 = vmatpush1.msra.mxu0 %v285
    %993 = vmatprep.subr.mxu0 0.0
    %994 = vmatpush1.msra.mxu0 0.0
    %995 = vmatprep.subr.mxu0 0.0
    %996 = vmatpush1.msra.mxu0 0.0
    %997 = vmatprep.subr.mxu0 0.0
    %998 = vmatpush1.msra.mxu0 0.0
    %999 = vmatprep.subr.mxu0 0.0
    %1000 = vmatpush1.msra.mxu0 0.0
    %1001 = vmatprep.subr.mxu0 0.0
    %1002 = vmatpush1.msra.mxu0 0.0
    %1003 = vmatprep.subr.mxu0 0.0
    %1004 = vmatpush1.msra.mxu0 0.0
    %1005 = vmatprep.subr.mxu0 0.0
    %1006 = vmatpush1.msra.mxu0 0.0
    %1007 = vmatprep.subr.mxu0 0.0
    %1008 = vmatpush1.msra.mxu0 0.0
    %1009 = vmatprep.subr.mxu0 0.0
    %1010 = vmatpush1.msra.mxu0 0.0
    %1011 = vmatprep.subr.mxu0 0.0
    %1012 = vmatpush1.msra.mxu0 0.0
    %1013 = vmatprep.subr.mxu0 0.0
    %1014 = vmatpush1.msra.mxu0 0.0
    %1015 = vmatprep.subr.mxu0 0.0
    %1016 = vmatpush1.msra.mxu0 0.0
    %1017 = vmatprep.subr.mxu0 0.0
    %1018 = vmatpush1.msra.mxu0 0.0
    %1019 = vmatprep.subr.mxu0 0.0
    %1020 = vmatpush1.msra.mxu0 0.0
    %1021 = vmatprep.subr.mxu0 0.0
    %1022 = vmatpush1.msra.mxu0 0.0
    %1023 = vmatprep.subr.mxu0 0.0
    %1024 = vmatpush1.msra.mxu0 0.0
    %1025 = vmatprep.mubr.f32.mxu0 0.0
    %1026 = vmatmul.mubr.f32.gmra.mrb[0].mxu0 %v889
    %v1027 = vpop.f32.mrb[0].mxu0
    %v1028 = vadd.f32 0.0, %v1027
    %v1029 = vpop.f32.mrb[0].mxu0
    %v1030 = vadd.f32 0.0, %v1029
    %1031 = vdwg.mxu0
    %v1032 = vld [vmem:[#allocation2 + $0x20] sm:$0xff]
    %v1033 = vld [vmem:[#allocation2 + $0x28] sm:$0xff]
    %v1034 = vadd.f32 %v1032, %v957
    %v1035 = vadd.f32 %v1033, %v959
    %v1036 = vxor.u32 %v1034, 2147483648
    %v1037 = vxor.u32 %v1035, 2147483648
    %v1038 = vmul.f32 %v1036, 1.442695
    %v1039 = vpow.pop %v1038
    %v1040 = vmul.f32 %v1037, 1.442695
    %v1041 = vpow.pop %v1040
    %v1042 = vadd.f32 %v1039, 1.0
    %v1043 = vadd.f32 %v1041, 1.0
    %v1044 = vrcp.pop %v1042
    %v1045 = vmul.f32 1.0, %v1044
    %v1046 = vrcp.pop %v1043
    %v1047 = vmul.f32 1.0, %v1046
    %v1048 = vtanh.pop %v1035
    %v1049 = vmul.f32 %v1045, %v772
    %1051 = vrot.lane.b32.xlu0 %v1048, 64
    %v1052 = vpop.permute.xlu0 %1051
    %v1054 = vmul.f32 %v1045, %v1052
    %1056 = vrot.lane.b32.xlu0 %v1054, 64
    %v1057 = vpop.permute.xlu0 %1056
    %v1059 = vadd.f32 %v1049, %v1057
    %v1060 = vtanh.pop %v1059
    %1062 = vrot.lane.b32.xlu0 %v1060, 64
    %v1063 = vpop.permute.xlu0 %1062
    %v1065 = vmul.f32 %v1047, %v1063
    %v1067 = vsel %vm491, %v1065, 0
    %1069 = vmatprep.subr.mxu0 %v288
    %1070 = vmatpush1.msra.mxu0 %v287
    %1071 = vmatprep.subr.mxu0 %v290
    %1072 = vmatpush1.msra.mxu0 %v289
    %1073 = vmatprep.subr.mxu0 %v292
    %1074 = vmatpush1.msra.mxu0 %v291
    %1075 = vmatprep.subr.mxu0 %v294
    %1076 = vmatpush1.msra.mxu0 %v293
    %1077 = vmatprep.subr.mxu0 %v296
    %1078 = vmatpush1.msra.mxu0 %v295
    %1079 = vmatprep.subr.mxu0 %v298
    %1080 = vmatpush1.msra.mxu0 %v297
    %1081 = vmatprep.subr.mxu0 %v300
    %1082 = vmatpush1.msra.mxu0 %v299
    %1083 = vmatprep.subr.mxu0 %v302
    %1084 = vmatpush1.msra.mxu0 %v301
    %1085 = vmatprep.subr.mxu0 0.0
    %1086 = vmatpush1.msra.mxu0 0.0
    %1087 = vmatprep.subr.mxu0 0.0
    %1088 = vmatpush1.msra.mxu0 0.0
    %1089 = vmatprep.subr.mxu0 0.0
    %1090 = vmatpush1.msra.mxu0 0.0
    %1091 = vmatprep.subr.mxu0 0.0
    %1092 = vmatpush1.msra.mxu0 0.0
    %1093 = vmatprep.subr.mxu0 0.0
    %1094 = vmatpush1.msra.mxu0 0.0
    %1095 = vmatprep.subr.mxu0 0.0
    %1096 = vmatpush1.msra.mxu0 0.0
    %1097 = vmatprep.subr.mxu0 0.0
    %1098 = vmatpush1.msra.mxu0 0.0
    %1099 = vmatprep.subr.mxu0 0.0
    %1100 = vmatpush1.msra.mxu0 0.0
    %1101 = vmatprep.subr.mxu0 0.0
    %1102 = vmatpush1.msra.mxu0 0.0
    %1103 = vmatprep.subr.mxu0 0.0
    %1104 = vmatpush1.msra.mxu0 0.0
    %1105 = vmatprep.subr.mxu0 0.0
    %1106 = vmatpush1.msra.mxu0 0.0
    %1107 = vmatprep.subr.mxu0 0.0
    %1108 = vmatpush1.msra.mxu0 0.0
    %1109 = vmatprep.subr.mxu0 0.0
    %1110 = vmatpush1.msra.mxu0 0.0
    %1111 = vmatprep.subr.mxu0 0.0
    %1112 = vmatpush1.msra.mxu0 0.0
    %1113 = vmatprep.subr.mxu0 0.0
    %1114 = vmatpush1.msra.mxu0 0.0
    %1115 = vmatprep.subr.mxu0 0.0
    %1116 = vmatpush1.msra.mxu0 0.0
    %1117 = vmatprep.subr.mxu0 0.0
    %1118 = vmatpush1.msra.mxu0 0.0
    %1119 = vmatprep.subr.mxu0 0.0
    %1120 = vmatpush1.msra.mxu0 0.0
    %1121 = vmatprep.subr.mxu0 0.0
    %1122 = vmatpush1.msra.mxu0 0.0
    %1123 = vmatprep.subr.mxu0 0.0
    %1124 = vmatpush1.msra.mxu0 0.0
    %1125 = vmatprep.subr.mxu0 0.0
    %1126 = vmatpush1.msra.mxu0 0.0
    %1127 = vmatprep.subr.mxu0 0.0
    %1128 = vmatpush1.msra.mxu0 0.0
    %1129 = vmatprep.subr.mxu0 0.0
    %1130 = vmatpush1.msra.mxu0 0.0
    %1131 = vmatprep.subr.mxu0 0.0
    %1132 = vmatpush1.msra.mxu0 0.0
    %1133 = vmatprep.mubr.f32.mxu0 0.0
    %1134 = vmatmul.mubr.f32.gmra.mrb[0].mxu0 %v1067
    %v1135 = vpop.f32.mrb[0].mxu0
    %v1136 = vadd.f32 %v308, %v1135
    %v1137 = vpop.f32.mrb[0].mxu0
    %v1138 = vadd.f32 %v312, %v1137
    %1139 = vdwg.mxu0
    %v1140 = vadd.f32 %v1136, %v1028
    %v1141 = vadd.f32 %v1138, %v1030
    %v1142 = vxor.u32 %v1140, 2147483648
    %v1143 = vxor.u32 %v1141, 2147483648
    %v1144 = vmul.f32 %v1142, 1.442695
    %v1145 = vpow.pop %v1144
    %v1146 = vmul.f32 %v1143, 1.442695
    %v1147 = vpow.pop %v1146
    %v1148 = vadd.f32 %v1145, 1.0
    %v1149 = vadd.f32 %v1147, 1.0
    %v1150 = vrcp.pop %v1148
    %v1151 = vmul.f32 1.0, %v1150
    %v1152 = vrcp.pop %v1149
    %v1153 = vmul.f32 1.0, %v1152
    %v1154 = vtanh.pop %v1141
    %v1155 = vmul.f32 %v1151, %v878
    %1157 = vrot.lane.b32.xlu0 %v1154, 64
    %v1158 = vpop.permute.xlu0 %1157
    %v1160 = vmul.f32 %v1151, %v1158
    %1162 = vrot.lane.b32.xlu0 %v1160, 64
    %v1163 = vpop.permute.xlu0 %1162
    %v1165 = vadd.f32 %v1155, %v1163
    %v1166 = vtanh.pop %v1165
    %1168 = vrot.lane.b32.xlu0 %v1166, 64
    %v1169 = vpop.permute.xlu0 %1168
    %v1171 = vmul.f32 %v1153, %v1169
    %1173 = vrot.lane.b32.xlu0 %v1171, 64
    %v1174 = vpop.permute.xlu0 %1173
    %v1176 = vsel %vm491, %v1065, %v1174
    %1177 = vmatprep.subr.mxu0 %v224
    %1178 = vmatpush1.msra.mxu0 %v223
    %1179 = vmatprep.subr.mxu0 %v228
    %1180 = vmatpush1.msra.mxu0 %v227
    %1181 = vmatprep.subr.mxu0 %v232
    %1182 = vmatpush1.msra.mxu0 %v231
    %1183 = vmatprep.subr.mxu0 %v236
    %1184 = vmatpush1.msra.mxu0 %v235
    %1185 = vmatprep.subr.mxu0 %v240
    %1186 = vmatpush1.msra.mxu0 %v239
    %1187 = vmatprep.subr.mxu0 %v244
    %1188 = vmatpush1.msra.mxu0 %v243
    %1189 = vmatprep.subr.mxu0 %v248
    %1190 = vmatpush1.msra.mxu0 %v247
    %1191 = vmatprep.subr.mxu0 %v252
    %1192 = vmatpush1.msra.mxu0 %v251
    %1193 = vmatprep.subr.mxu0 %v256
    %1194 = vmatpush1.msra.mxu0 %v255
    %1195 = vmatprep.subr.mxu0 %v260
    %1196 = vmatpush1.msra.mxu0 %v259
    %1197 = vmatprep.subr.mxu0 %v264
    %1198 = vmatpush1.msra.mxu0 %v263
    %1199 = vmatprep.subr.mxu0 %v268
    %1200 = vmatpush1.msra.mxu0 %v267
    %1201 = vmatprep.subr.mxu0 %v272
    %1202 = vmatpush1.msra.mxu0 %v271
    %1203 = vmatprep.subr.mxu0 %v276
    %1204 = vmatpush1.msra.mxu0 %v275
    %1205 = vmatprep.subr.mxu0 %v280
    %1206 = vmatpush1.msra.mxu0 %v279
    %1207 = vmatprep.subr.mxu0 %v284
    %1208 = vmatpush1.msra.mxu0 %v283
    %1209 = vmatprep.subr.mxu0 0.0
    %1210 = vmatpush1.msra.mxu0 0.0
    %1211 = vmatprep.subr.mxu0 0.0
    %1212 = vmatpush1.msra.mxu0 0.0
    %1213 = vmatprep.subr.mxu0 0.0
    %1214 = vmatpush1.msra.mxu0 0.0
    %1215 = vmatprep.subr.mxu0 0.0
    %1216 = vmatpush1.msra.mxu0 0.0
    %1217 = vmatprep.subr.mxu0 0.0
    %1218 = vmatpush1.msra.mxu0 0.0
    %1219 = vmatprep.subr.mxu0 0.0
    %1220 = vmatpush1.msra.mxu0 0.0
    %1221 = vmatprep.subr.mxu0 0.0
    %1222 = vmatpush1.msra.mxu0 0.0
    %1223 = vmatprep.subr.mxu0 0.0
    %1224 = vmatpush1.msra.mxu0 0.0
    %1225 = vmatprep.subr.mxu0 0.0
    %1226 = vmatpush1.msra.mxu0 0.0
    %1227 = vmatprep.subr.mxu0 0.0
    %1228 = vmatpush1.msra.mxu0 0.0
    %1229 = vmatprep.subr.mxu0 0.0
    %1230 = vmatpush1.msra.mxu0 0.0
    %1231 = vmatprep.subr.mxu0 0.0
    %1232 = vmatpush1.msra.mxu0 0.0
    %1233 = vmatprep.subr.mxu0 0.0
    %1234 = vmatpush1.msra.mxu0 0.0
    %1235 = vmatprep.subr.mxu0 0.0
    %1236 = vmatpush1.msra.mxu0 0.0
    %1237 = vmatprep.subr.mxu0 0.0
    %1238 = vmatpush1.msra.mxu0 0.0
    %1239 = vmatprep.subr.mxu0 0.0
    %1240 = vmatpush1.msra.mxu0 0.0
    %1241 = vmatprep.mubr.f32.mxu0 0.0
    %1242 = vmatmul.mubr.f32.gmra.mrb[0].mxu0 %v1176
    %v1243 = vpop.f32.mrb[0].mxu0
    %v1244 = vadd.f32 0.0, %v1243
    %v1245 = vpop.f32.mrb[0].mxu0
    %v1246 = vadd.f32 0.0, %v1245
    %1247 = vdwg.mxu0
    %1248 = vmatprep.subr.mxu0 %v226
    %1249 = vmatpush1.msra.mxu0 %v225
    %1250 = vmatprep.subr.mxu0 %v230
    %1251 = vmatpush1.msra.mxu0 %v229
    %1252 = vmatprep.subr.mxu0 %v234
    %1253 = vmatpush1.msra.mxu0 %v233
    %1254 = vmatprep.subr.mxu0 %v238
    %1255 = vmatpush1.msra.mxu0 %v237
    %1256 = vmatprep.subr.mxu0 %v242
    %1257 = vmatpush1.msra.mxu0 %v241
    %1258 = vmatprep.subr.mxu0 %v246
    %1259 = vmatpush1.msra.mxu0 %v245
    %1260 = vmatprep.subr.mxu0 %v250
    %1261 = vmatpush1.msra.mxu0 %v249
    %1262 = vmatprep.subr.mxu0 %v254
    %1263 = vmatpush1.msra.mxu0 %v253
    %1264 = vmatprep.subr.mxu0 %v258
    %1265 = vmatpush1.msra.mxu0 %v257
    %1266 = vmatprep.subr.mxu0 %v262
    %1267 = vmatpush1.msra.mxu0 %v261
    %1268 = vmatprep.subr.mxu0 %v266
    %1269 = vmatpush1.msra.mxu0 %v265
    %1270 = vmatprep.subr.mxu0 %v270
    %1271 = vmatpush1.msra.mxu0 %v269
    %1272 = vmatprep.subr.mxu0 %v274
    %1273 = vmatpush1.msra.mxu0 %v273
    %1274 = vmatprep.subr.mxu0 %v278
    %1275 = vmatpush1.msra.mxu0 %v277
    %1276 = vmatprep.subr.mxu0 %v282
    %1277 = vmatpush1.msra.mxu0 %v281
    %1278 = vmatprep.subr.mxu0 %v286
    %1279 = vmatpush1.msra.mxu0 %v285
    %1280 = vmatprep.subr.mxu0 0.0
    %1281 = vmatpush1.msra.mxu0 0.0
    %1282 = vmatprep.subr.mxu0 0.0
    %1283 = vmatpush1.msra.mxu0 0.0
    %1284 = vmatprep.subr.mxu0 0.0
    %1285 = vmatpush1.msra.mxu0 0.0
    %1286 = vmatprep.subr.mxu0 0.0
    %1287 = vmatpush1.msra.mxu0 0.0
    %1288 = vmatprep.subr.mxu0 0.0
    %1289 = vmatpush1.msra.mxu0 0.0
    %1290 = vmatprep.subr.mxu0 0.0
    %1291 = vmatpush1.msra.mxu0 0.0
    %1292 = vmatprep.subr.mxu0 0.0
    %1293 = vmatpush1.msra.mxu0 0.0
    %1294 = vmatprep.subr.mxu0 0.0
    %1295 = vmatpush1.msra.mxu0 0.0
    %1296 = vmatprep.subr.mxu0 0.0
    %1297 = vmatpush1.msra.mxu0 0.0
    %1298 = vmatprep.subr.mxu0 0.0
    %1299 = vmatpush1.msra.mxu0 0.0
    %1300 = vmatprep.subr.mxu0 0.0
    %1301 = vmatpush1.msra.mxu0 0.0
    %1302 = vmatprep.subr.mxu0 0.0
    %1303 = vmatpush1.msra.mxu0 0.0
    %1304 = vmatprep.subr.mxu0 0.0
    %1305 = vmatpush1.msra.mxu0 0.0
    %1306 = vmatprep.subr.mxu0 0.0
    %1307 = vmatpush1.msra.mxu0 0.0
    %1308 = vmatprep.subr.mxu0 0.0
    %1309 = vmatpush1.msra.mxu0 0.0
    %1310 = vmatprep.subr.mxu0 0.0
    %1311 = vmatpush1.msra.mxu0 0.0
    %1312 = vmatprep.mubr.f32.mxu0 0.0
    %1313 = vmatmul.mubr.f32.gmra.mrb[0].mxu0 %v1176
    %v1314 = vpop.f32.mrb[0].mxu0
    %v1315 = vadd.f32 0.0, %v1314
    %v1316 = vpop.f32.mrb[0].mxu0
    %v1317 = vadd.f32 0.0, %v1316
    %1318 = vdwg.mxu0
    %v1319 = vld [vmem:[#allocation2 + $0x30] sm:$0xff]
    %v1320 = vld [vmem:[#allocation2 + $0x38] sm:$0xff]
    %v1321 = vadd.f32 %v1319, %v1244
    %v1322 = vadd.f32 %v1320, %v1246
    %v1323 = vxor.u32 %v1321, 2147483648
    %v1324 = vxor.u32 %v1322, 2147483648
    %v1325 = vmul.f32 %v1323, 1.442695
    %v1326 = vpow.pop %v1325
    %v1327 = vmul.f32 %v1324, 1.442695
    %v1328 = vpow.pop %v1327
    %v1329 = vadd.f32 %v1326, 1.0
    %v1330 = vadd.f32 %v1328, 1.0
    %v1331 = vrcp.pop %v1329
    %v1332 = vmul.f32 1.0, %v1331
    %v1333 = vrcp.pop %v1330
    %v1334 = vmul.f32 1.0, %v1333
    %v1335 = vtanh.pop %v1322
    %v1336 = vmul.f32 %v1332, %v1059
    %1338 = vrot.lane.b32.xlu0 %v1335, 64
    %v1339 = vpop.permute.xlu0 %1338
    %v1341 = vmul.f32 %v1332, %v1339
    %1343 = vrot.lane.b32.xlu0 %v1341, 64
    %v1344 = vpop.permute.xlu0 %1343
    %v1346 = vadd.f32 %v1336, %v1344
    %v1347 = vtanh.pop %v1346
    %1349 = vrot.lane.b32.xlu0 %v1347, 64
    %v1350 = vpop.permute.xlu0 %1349
    %v1352 = vmul.f32 %v1334, %v1350
    %v1354 = vsel %vm491, %v1352, 0
    %1356 = vmatprep.subr.mxu0 %v288
    %1357 = vmatpush1.msra.mxu0 %v287
    %1358 = vmatprep.subr.mxu0 %v290
    %1359 = vmatpush1.msra.mxu0 %v289
    %1360 = vmatprep.subr.mxu0 %v292
    %1361 = vmatpush1.msra.mxu0 %v291
    %1362 = vmatprep.subr.mxu0 %v294
    %1363 = vmatpush1.msra.mxu0 %v293
    %1364 = vmatprep.subr.mxu0 %v296
    %1365 = vmatpush1.msra.mxu0 %v295
    %1366 = vmatprep.subr.mxu0 %v298
    %1367 = vmatpush1.msra.mxu0 %v297
    %1368 = vmatprep.subr.mxu0 %v300
    %1369 = vmatpush1.msra.mxu0 %v299
    %1370 = vmatprep.subr.mxu0 %v302
    %1371 = vmatpush1.msra.mxu0 %v301
    %1372 = vmatprep.subr.mxu0 0.0
    %1373 = vmatpush1.msra.mxu0 0.0
    %1374 = vmatprep.subr.mxu0 0.0
    %1375 = vmatpush1.msra.mxu0 0.0
    %1376 = vmatprep.subr.mxu0 0.0
    %1377 = vmatpush1.msra.mxu0 0.0
    %1378 = vmatprep.subr.mxu0 0.0
    %1379 = vmatpush1.msra.mxu0 0.0
    %1380 = vmatprep.subr.mxu0 0.0
    %1381 = vmatpush1.msra.mxu0 0.0
    %1382 = vmatprep.subr.mxu0 0.0
    %1383 = vmatpush1.msra.mxu0 0.0
    %1384 = vmatprep.subr.mxu0 0.0
    %1385 = vmatpush1.msra.mxu0 0.0
    %1386 = vmatprep.subr.mxu0 0.0
    %1387 = vmatpush1.msra.mxu0 0.0
    %1388 = vmatprep.subr.mxu0 0.0
    %1389 = vmatpush1.msra.mxu0 0.0
    %1390 = vmatprep.subr.mxu0 0.0
    %1391 = vmatpush1.msra.mxu0 0.0
    %1392 = vmatprep.subr.mxu0 0.0
    %1393 = vmatpush1.msra.mxu0 0.0
    %1394 = vmatprep.subr.mxu0 0.0
    %1395 = vmatpush1.msra.mxu0 0.0
    %1396 = vmatprep.subr.mxu0 0.0
    %1397 = vmatpush1.msra.mxu0 0.0
    %1398 = vmatprep.subr.mxu0 0.0
    %1399 = vmatpush1.msra.mxu0 0.0
    %1400 = vmatprep.subr.mxu0 0.0
    %1401 = vmatpush1.msra.mxu0 0.0
    %1402 = vmatprep.subr.mxu0 0.0
    %1403 = vmatpush1.msra.mxu0 0.0
    %1404 = vmatprep.subr.mxu0 0.0
    %1405 = vmatpush1.msra.mxu0 0.0
    %1406 = vmatprep.subr.mxu0 0.0
    %1407 = vmatpush1.msra.mxu0 0.0
    %1408 = vmatprep.subr.mxu0 0.0
    %1409 = vmatpush1.msra.mxu0 0.0
    %1410 = vmatprep.subr.mxu0 0.0
    %1411 = vmatpush1.msra.mxu0 0.0
    %1412 = vmatprep.subr.mxu0 0.0
    %1413 = vmatpush1.msra.mxu0 0.0
    %1414 = vmatprep.subr.mxu0 0.0
    %1415 = vmatpush1.msra.mxu0 0.0
    %1416 = vmatprep.subr.mxu0 0.0
    %1417 = vmatpush1.msra.mxu0 0.0
    %1418 = vmatprep.subr.mxu0 0.0
    %1419 = vmatpush1.msra.mxu0 0.0
    %1420 = vmatprep.mubr.f32.mxu0 0.0
    %1421 = vmatmul.mubr.f32.gmra.mrb[0].mxu0 %v1354
    %v1422 = vpop.f32.mrb[0].mxu0
    %v1423 = vadd.f32 %v308, %v1422
    %v1424 = vpop.f32.mrb[0].mxu0
    %v1425 = vadd.f32 %v312, %v1424
    %1426 = vdwg.mxu0
    %v1427 = vadd.f32 %v1423, %v1315
    %v1428 = vadd.f32 %v1425, %v1317
    %v1429 = vxor.u32 %v1427, 2147483648
    %v1430 = vxor.u32 %v1428, 2147483648
    %v1431 = vmul.f32 %v1429, 1.442695
    %v1432 = vpow.pop %v1431
    %v1433 = vmul.f32 %v1430, 1.442695
    %v1434 = vpow.pop %v1433
    %v1435 = vadd.f32 %v1432, 1.0
    %v1436 = vadd.f32 %v1434, 1.0
    %v1437 = vrcp.pop %v1435
    %v1438 = vmul.f32 1.0, %v1437
    %v1439 = vrcp.pop %v1436
    %v1440 = vmul.f32 1.0, %v1439
    %v1441 = vtanh.pop %v1428
    %v1442 = vmul.f32 %v1438, %v1165
    %1444 = vrot.lane.b32.xlu0 %v1441, 64
    %v1445 = vpop.permute.xlu0 %1444
    %v1447 = vmul.f32 %v1438, %v1445
    %1449 = vrot.lane.b32.xlu0 %v1447, 64
    %v1450 = vpop.permute.xlu0 %1449
    %v1452 = vadd.f32 %v1442, %v1450
    %v1453 = vtanh.pop %v1452
    %1455 = vrot.lane.b32.xlu0 %v1453, 64
    %v1456 = vpop.permute.xlu0 %1455
    %v1458 = vmul.f32 %v1440, %v1456
    %1460 = vrot.lane.b32.xlu0 %v1458, 64
    %v1461 = vpop.permute.xlu0 %1460
    %v1463 = vsel %vm491, %v1352, %v1461
    %1464 = vmatprep.subr.mxu0 %v224
    %1465 = vmatpush1.msra.mxu0 %v223
    %1466 = vmatprep.subr.mxu0 %v228
    %1467 = vmatpush1.msra.mxu0 %v227
    %1468 = vmatprep.subr.mxu0 %v232
    %1469 = vmatpush1.msra.mxu0 %v231
    %1470 = vmatprep.subr.mxu0 %v236
    %1471 = vmatpush1.msra.mxu0 %v235
    %1472 = vmatprep.subr.mxu0 %v240
    %1473 = vmatpush1.msra.mxu0 %v239
    %1474 = vmatprep.subr.mxu0 %v244
    %1475 = vmatpush1.msra.mxu0 %v243
    %1476 = vmatprep.subr.mxu0 %v248
    %1477 = vmatpush1.msra.mxu0 %v247
    %1478 = vmatprep.subr.mxu0 %v252
    %1479 = vmatpush1.msra.mxu0 %v251
    %1480 = vmatprep.subr.mxu0 %v256
    %1481 = vmatpush1.msra.mxu0 %v255
    %1482 = vmatprep.subr.mxu0 %v260
    %1483 = vmatpush1.msra.mxu0 %v259
    %1484 = vmatprep.subr.mxu0 %v264
    %1485 = vmatpush1.msra.mxu0 %v263
    %1486 = vmatprep.subr.mxu0 %v268
    %1487 = vmatpush1.msra.mxu0 %v267
    %1488 = vmatprep.subr.mxu0 %v272
    %1489 = vmatpush1.msra.mxu0 %v271
    %1490 = vmatprep.subr.mxu0 %v276
    %1491 = vmatpush1.msra.mxu0 %v275
    %1492 = vmatprep.subr.mxu0 %v280
    %1493 = vmatpush1.msra.mxu0 %v279
    %1494 = vmatprep.subr.mxu0 %v284
    %1495 = vmatpush1.msra.mxu0 %v283
    %1496 = vmatprep.subr.mxu0 0.0
    %1497 = vmatpush1.msra.mxu0 0.0
    %1498 = vmatprep.subr.mxu0 0.0
    %1499 = vmatpush1.msra.mxu0 0.0
    %1500 = vmatprep.subr.mxu0 0.0
    %1501 = vmatpush1.msra.mxu0 0.0
    %1502 = vmatprep.subr.mxu0 0.0
    %1503 = vmatpush1.msra.mxu0 0.0
    %1504 = vmatprep.subr.mxu0 0.0
    %1505 = vmatpush1.msra.mxu0 0.0
    %1506 = vmatprep.subr.mxu0 0.0
    %1507 = vmatpush1.msra.mxu0 0.0
    %1508 = vmatprep.subr.mxu0 0.0
    %1509 = vmatpush1.msra.mxu0 0.0
    %1510 = vmatprep.subr.mxu0 0.0
    %1511 = vmatpush1.msra.mxu0 0.0
    %1512 = vmatprep.subr.mxu0 0.0
    %1513 = vmatpush1.msra.mxu0 0.0
    %1514 = vmatprep.subr.mxu0 0.0
    %1515 = vmatpush1.msra.mxu0 0.0
    %1516 = vmatprep.subr.mxu0 0.0
    %1517 = vmatpush1.msra.mxu0 0.0
    %1518 = vmatprep.subr.mxu0 0.0
    %1519 = vmatpush1.msra.mxu0 0.0
    %1520 = vmatprep.subr.mxu0 0.0
    %1521 = vmatpush1.msra.mxu0 0.0
    %1522 = vmatprep.subr.mxu0 0.0
    %1523 = vmatpush1.msra.mxu0 0.0
    %1524 = vmatprep.subr.mxu0 0.0
    %1525 = vmatpush1.msra.mxu0 0.0
    %1526 = vmatprep.subr.mxu0 0.0
    %1527 = vmatpush1.msra.mxu0 0.0
    %1528 = vmatprep.mubr.f32.mxu0 0.0
    %1529 = vmatmul.mubr.f32.gmra.mrb[0].mxu0 %v1463
    %v1530 = vpop.f32.mrb[0].mxu0
    %v1531 = vadd.f32 0.0, %v1530
    %v1532 = vpop.f32.mrb[0].mxu0
    %v1533 = vadd.f32 0.0, %v1532
    %1534 = vdwg.mxu0
    %1535 = vmatprep.subr.mxu0 %v226
    %1536 = vmatpush1.msra.mxu0 %v225
    %1537 = vmatprep.subr.mxu0 %v230
    %1538 = vmatpush1.msra.mxu0 %v229
    %1539 = vmatprep.subr.mxu0 %v234
    %1540 = vmatpush1.msra.mxu0 %v233
    %1541 = vmatprep.subr.mxu0 %v238
    %1542 = vmatpush1.msra.mxu0 %v237
    %1543 = vmatprep.subr.mxu0 %v242
    %1544 = vmatpush1.msra.mxu0 %v241
    %1545 = vmatprep.subr.mxu0 %v246
    %1546 = vmatpush1.msra.mxu0 %v245
    %1547 = vmatprep.subr.mxu0 %v250
    %1548 = vmatpush1.msra.mxu0 %v249
    %1549 = vmatprep.subr.mxu0 %v254
    %1550 = vmatpush1.msra.mxu0 %v253
    %1551 = vmatprep.subr.mxu0 %v258
    %1552 = vmatpush1.msra.mxu0 %v257
    %1553 = vmatprep.subr.mxu0 %v262
    %1554 = vmatpush1.msra.mxu0 %v261
    %1555 = vmatprep.subr.mxu0 %v266
    %1556 = vmatpush1.msra.mxu0 %v265
    %1557 = vmatprep.subr.mxu0 %v270
    %1558 = vmatpush1.msra.mxu0 %v269
    %1559 = vmatprep.subr.mxu0 %v274
    %1560 = vmatpush1.msra.mxu0 %v273
    %1561 = vmatprep.subr.mxu0 %v278
    %1562 = vmatpush1.msra.mxu0 %v277
    %1563 = vmatprep.subr.mxu0 %v282
    %1564 = vmatpush1.msra.mxu0 %v281
    %1565 = vmatprep.subr.mxu0 %v286
    %1566 = vmatpush1.msra.mxu0 %v285
    %1567 = vmatprep.subr.mxu0 0.0
    %1568 = vmatpush1.msra.mxu0 0.0
    %1569 = vmatprep.subr.mxu0 0.0
    %1570 = vmatpush1.msra.mxu0 0.0
    %1571 = vmatprep.subr.mxu0 0.0
    %1572 = vmatpush1.msra.mxu0 0.0
    %1573 = vmatprep.subr.mxu0 0.0
    %1574 = vmatpush1.msra.mxu0 0.0
    %1575 = vmatprep.subr.mxu0 0.0
    %1576 = vmatpush1.msra.mxu0 0.0
    %1577 = vmatprep.subr.mxu0 0.0
    %1578 = vmatpush1.msra.mxu0 0.0
    %1579 = vmatprep.subr.mxu0 0.0
    %1580 = vmatpush1.msra.mxu0 0.0
    %1581 = vmatprep.subr.mxu0 0.0
    %1582 = vmatpush1.msra.mxu0 0.0
    %1583 = vmatprep.subr.mxu0 0.0
    %1584 = vmatpush1.msra.mxu0 0.0
    %1585 = vmatprep.subr.mxu0 0.0
    %1586 = vmatpush1.msra.mxu0 0.0
    %1587 = vmatprep.subr.mxu0 0.0
    %1588 = vmatpush1.msra.mxu0 0.0
    %1589 = vmatprep.subr.mxu0 0.0
    %1590 = vmatpush1.msra.mxu0 0.0
    %1591 = vmatprep.subr.mxu0 0.0
    %1592 = vmatpush1.msra.mxu0 0.0
    %1593 = vmatprep.subr.mxu0 0.0
    %1594 = vmatpush1.msra.mxu0 0.0
    %1595 = vmatprep.subr.mxu0 0.0
    %1596 = vmatpush1.msra.mxu0 0.0
    %1597 = vmatprep.subr.mxu0 0.0
    %1598 = vmatpush1.msra.mxu0 0.0
    %1599 = vmatprep.mubr.f32.mxu0 0.0
    %1600 = vmatmul.mubr.f32.gmra.mrb[0].mxu0 %v1463
    %v1601 = vpop.f32.mrb[0].mxu0
    %v1602 = vadd.f32 0.0, %v1601
    %v1603 = vpop.f32.mrb[0].mxu0
    %v1604 = vadd.f32 0.0, %v1603
    %1605 = vdwg.mxu0
    %v1606 = vld [vmem:[#allocation2 + $0x40] sm:$0xff]
    %v1607 = vld [vmem:[#allocation2 + $0x48] sm:$0xff]
    %v1608 = vadd.f32 %v1606, %v1531
    %v1609 = vadd.f32 %v1607, %v1533
    %v1610 = vxor.u32 %v1608, 2147483648
    %v1611 = vxor.u32 %v1609, 2147483648
    %v1612 = vmul.f32 %v1610, 1.442695
    %v1613 = vpow.pop %v1612
    %v1614 = vmul.f32 %v1611, 1.442695
    %v1615 = vpow.pop %v1614
    %v1616 = vadd.f32 %v1613, 1.0
    %v1617 = vadd.f32 %v1615, 1.0
    %v1618 = vrcp.pop %v1616
    %v1619 = vmul.f32 1.0, %v1618
    %v1620 = vrcp.pop %v1617
    %v1621 = vmul.f32 1.0, %v1620
    %v1622 = vtanh.pop %v1609
    %v1623 = vmul.f32 %v1619, %v1346
    %1625 = vrot.lane.b32.xlu0 %v1622, 64
    %v1626 = vpop.permute.xlu0 %1625
    %v1628 = vmul.f32 %v1619, %v1626
    %1630 = vrot.lane.b32.xlu0 %v1628, 64
    %v1631 = vpop.permute.xlu0 %1630
    %v1633 = vadd.f32 %v1623, %v1631
    %v1634 = vtanh.pop %v1633
    %1636 = vrot.lane.b32.xlu0 %v1634, 64
    %v1637 = vpop.permute.xlu0 %1636
    %v1639 = vmul.f32 %v1621, %v1637
    %v1641 = vsel %vm491, %v1639, 0
    %1643 = vmatprep.subr.mxu0 %v288
    %1644 = vmatpush1.msra.mxu0 %v287
    %1645 = vmatprep.subr.mxu0 %v290
    %1646 = vmatpush1.msra.mxu0 %v289
    %1647 = vmatprep.subr.mxu0 %v292
    %1648 = vmatpush1.msra.mxu0 %v291
    %1649 = vmatprep.subr.mxu0 %v294
    %1650 = vmatpush1.msra.mxu0 %v293
    %1651 = vmatprep.subr.mxu0 %v296
    %1652 = vmatpush1.msra.mxu0 %v295
    %1653 = vmatprep.subr.mxu0 %v298
    %1654 = vmatpush1.msra.mxu0 %v297
    %1655 = vmatprep.subr.mxu0 %v300
    %1656 = vmatpush1.msra.mxu0 %v299
    %1657 = vmatprep.subr.mxu0 %v302
    %1658 = vmatpush1.msra.mxu0 %v301
    %1659 = vmatprep.subr.mxu0 0.0
    %1660 = vmatpush1.msra.mxu0 0.0
    %1661 = vmatprep.subr.mxu0 0.0
    %1662 = vmatpush1.msra.mxu0 0.0
    %1663 = vmatprep.subr.mxu0 0.0
    %1664 = vmatpush1.msra.mxu0 0.0
    %1665 = vmatprep.subr.mxu0 0.0
    %1666 = vmatpush1.msra.mxu0 0.0
    %1667 = vmatprep.subr.mxu0 0.0
    %1668 = vmatpush1.msra.mxu0 0.0
    %1669 = vmatprep.subr.mxu0 0.0
    %1670 = vmatpush1.msra.mxu0 0.0
    %1671 = vmatprep.subr.mxu0 0.0
    %1672 = vmatpush1.msra.mxu0 0.0
    %1673 = vmatprep.subr.mxu0 0.0
    %1674 = vmatpush1.msra.mxu0 0.0
    %1675 = vmatprep.subr.mxu0 0.0
    %1676 = vmatpush1.msra.mxu0 0.0
    %1677 = vmatprep.subr.mxu0 0.0
    %1678 = vmatpush1.msra.mxu0 0.0
    %1679 = vmatprep.subr.mxu0 0.0
    %1680 = vmatpush1.msra.mxu0 0.0
    %1681 = vmatprep.subr.mxu0 0.0
    %1682 = vmatpush1.msra.mxu0 0.0
    %1683 = vmatprep.subr.mxu0 0.0
    %1684 = vmatpush1.msra.mxu0 0.0
    %1685 = vmatprep.subr.mxu0 0.0
    %1686 = vmatpush1.msra.mxu0 0.0
    %1687 = vmatprep.subr.mxu0 0.0
    %1688 = vmatpush1.msra.mxu0 0.0
    %1689 = vmatprep.subr.mxu0 0.0
    %1690 = vmatpush1.msra.mxu0 0.0
    %1691 = vmatprep.subr.mxu0 0.0
    %1692 = vmatpush1.msra.mxu0 0.0
    %1693 = vmatprep.subr.mxu0 0.0
    %1694 = vmatpush1.msra.mxu0 0.0
    %1695 = vmatprep.subr.mxu0 0.0
    %1696 = vmatpush1.msra.mxu0 0.0
    %1697 = vmatprep.subr.mxu0 0.0
    %1698 = vmatpush1.msra.mxu0 0.0
    %1699 = vmatprep.subr.mxu0 0.0
    %1700 = vmatpush1.msra.mxu0 0.0
    %1701 = vmatprep.subr.mxu0 0.0
    %1702 = vmatpush1.msra.mxu0 0.0
    %1703 = vmatprep.subr.mxu0 0.0
    %1704 = vmatpush1.msra.mxu0 0.0
    %1705 = vmatprep.subr.mxu0 0.0
    %1706 = vmatpush1.msra.mxu0 0.0
    %1707 = vmatprep.mubr.f32.mxu0 0.0
    %1708 = vmatmul.mubr.f32.gmra.mrb[0].mxu0 %v1641
    %v1709 = vpop.f32.mrb[0].mxu0
    %v1710 = vadd.f32 %v308, %v1709
    %v1711 = vpop.f32.mrb[0].mxu0
    %v1712 = vadd.f32 %v312, %v1711
    %1713 = vdwg.mxu0
    %v1714 = vadd.f32 %v1710, %v1602
    %v1715 = vadd.f32 %v1712, %v1604
    %v1716 = vxor.u32 %v1714, 2147483648
    %v1717 = vxor.u32 %v1715, 2147483648
    %v1718 = vmul.f32 %v1716, 1.442695
    %v1719 = vpow.pop %v1718
    %v1720 = vmul.f32 %v1717, 1.442695
    %v1721 = vpow.pop %v1720
    %v1722 = vadd.f32 %v1719, 1.0
    %v1723 = vadd.f32 %v1721, 1.0
    %v1724 = vrcp.pop %v1722
    %v1725 = vmul.f32 1.0, %v1724
    %v1726 = vrcp.pop %v1723
    %v1727 = vmul.f32 1.0, %v1726
    %v1728 = vtanh.pop %v1715
    %v1729 = vmul.f32 %v1725, %v1452
    %1731 = vrot.lane.b32.xlu0 %v1728, 64
    %v1732 = vpop.permute.xlu0 %1731
    %v1734 = vmul.f32 %v1725, %v1732
    %1736 = vrot.lane.b32.xlu0 %v1734, 64
    %v1737 = vpop.permute.xlu0 %1736
    %v1739 = vadd.f32 %v1729, %v1737
    %v1740 = vtanh.pop %v1739
    %1742 = vrot.lane.b32.xlu0 %v1740, 64
    %v1743 = vpop.permute.xlu0 %1742
    %v1745 = vmul.f32 %v1727, %v1743
    %1747 = vrot.lane.b32.xlu0 %v1745, 64
    %v1748 = vpop.permute.xlu0 %1747
    %v1750 = vsel %vm491, %v1639, %v1748
    %1751 = vmatprep.subr.mxu0 %v224
    %1752 = vmatpush1.msra.mxu0 %v223
    %1753 = vmatprep.subr.mxu0 %v228
    %1754 = vmatpush1.msra.mxu0 %v227
    %1755 = vmatprep.subr.mxu0 %v232
    %1756 = vmatpush1.msra.mxu0 %v231
    %1757 = vmatprep.subr.mxu0 %v236
    %1758 = vmatpush1.msra.mxu0 %v235
    %1759 = vmatprep.subr.mxu0 %v240
    %1760 = vmatpush1.msra.mxu0 %v239
    %1761 = vmatprep.subr.mxu0 %v244
    %1762 = vmatpush1.msra.mxu0 %v243
    %1763 = vmatprep.subr.mxu0 %v248
    %1764 = vmatpush1.msra.mxu0 %v247
    %1765 = vmatprep.subr.mxu0 %v252
    %1766 = vmatpush1.msra.mxu0 %v251
    %1767 = vmatprep.subr.mxu0 %v256
    %1768 = vmatpush1.msra.mxu0 %v255
    %1769 = vmatprep.subr.mxu0 %v260
    %1770 = vmatpush1.msra.mxu0 %v259
    %1771 = vmatprep.subr.mxu0 %v264
    %1772 = vmatpush1.msra.mxu0 %v263
    %1773 = vmatprep.subr.mxu0 %v268
    %1774 = vmatpush1.msra.mxu0 %v267
    %1775 = vmatprep.subr.mxu0 %v272
    %1776 = vmatpush1.msra.mxu0 %v271
    %1777 = vmatprep.subr.mxu0 %v276
    %1778 = vmatpush1.msra.mxu0 %v275
    %1779 = vmatprep.subr.mxu0 %v280
    %1780 = vmatpush1.msra.mxu0 %v279
    %1781 = vmatprep.subr.mxu0 %v284
    %1782 = vmatpush1.msra.mxu0 %v283
    %1783 = vmatprep.subr.mxu0 0.0
    %1784 = vmatpush1.msra.mxu0 0.0
    %1785 = vmatprep.subr.mxu0 0.0
    %1786 = vmatpush1.msra.mxu0 0.0
    %1787 = vmatprep.subr.mxu0 0.0
    %1788 = vmatpush1.msra.mxu0 0.0
    %1789 = vmatprep.subr.mxu0 0.0
    %1790 = vmatpush1.msra.mxu0 0.0
    %1791 = vmatprep.subr.mxu0 0.0
    %1792 = vmatpush1.msra.mxu0 0.0
    %1793 = vmatprep.subr.mxu0 0.0
    %1794 = vmatpush1.msra.mxu0 0.0
    %1795 = vmatprep.subr.mxu0 0.0
    %1796 = vmatpush1.msra.mxu0 0.0
    %1797 = vmatprep.subr.mxu0 0.0
    %1798 = vmatpush1.msra.mxu0 0.0
    %1799 = vmatprep.subr.mxu0 0.0
    %1800 = vmatpush1.msra.mxu0 0.0
    %1801 = vmatprep.subr.mxu0 0.0
    %1802 = vmatpush1.msra.mxu0 0.0
    %1803 = vmatprep.subr.mxu0 0.0
    %1804 = vmatpush1.msra.mxu0 0.0
    %1805 = vmatprep.subr.mxu0 0.0
    %1806 = vmatpush1.msra.mxu0 0.0
    %1807 = vmatprep.subr.mxu0 0.0
    %1808 = vmatpush1.msra.mxu0 0.0
    %1809 = vmatprep.subr.mxu0 0.0
    %1810 = vmatpush1.msra.mxu0 0.0
    %1811 = vmatprep.subr.mxu0 0.0
    %1812 = vmatpush1.msra.mxu0 0.0
    %1813 = vmatprep.subr.mxu0 0.0
    %1814 = vmatpush1.msra.mxu0 0.0
    %1815 = vmatprep.mubr.f32.mxu0 0.0
    %1816 = vmatmul.mubr.f32.gmra.mrb[0].mxu0 %v1750
    %v1817 = vpop.f32.mrb[0].mxu0
    %v1818 = vadd.f32 0.0, %v1817
    %v1819 = vpop.f32.mrb[0].mxu0
    %v1820 = vadd.f32 0.0, %v1819
    %1821 = vdwg.mxu0
    %1822 = vmatprep.subr.mxu0 %v226
    %1823 = vmatpush1.msra.mxu0 %v225
    %1824 = vmatprep.subr.mxu0 %v230
    %1825 = vmatpush1.msra.mxu0 %v229
    %1826 = vmatprep.subr.mxu0 %v234
    %1827 = vmatpush1.msra.mxu0 %v233
    %1828 = vmatprep.subr.mxu0 %v238
    %1829 = vmatpush1.msra.mxu0 %v237
    %1830 = vmatprep.subr.mxu0 %v242
    %1831 = vmatpush1.msra.mxu0 %v241
    %1832 = vmatprep.subr.mxu0 %v246
    %1833 = vmatpush1.msra.mxu0 %v245
    %1834 = vmatprep.subr.mxu0 %v250
    %1835 = vmatpush1.msra.mxu0 %v249
    %1836 = vmatprep.subr.mxu0 %v254
    %1837 = vmatpush1.msra.mxu0 %v253
    %1838 = vmatprep.subr.mxu0 %v258
    %1839 = vmatpush1.msra.mxu0 %v257
    %1840 = vmatprep.subr.mxu0 %v262
    %1841 = vmatpush1.msra.mxu0 %v261
    %1842 = vmatprep.subr.mxu0 %v266
    %1843 = vmatpush1.msra.mxu0 %v265
    %1844 = vmatprep.subr.mxu0 %v270
    %1845 = vmatpush1.msra.mxu0 %v269
    %1846 = vmatprep.subr.mxu0 %v274
    %1847 = vmatpush1.msra.mxu0 %v273
    %1848 = vmatprep.subr.mxu0 %v278
    %1849 = vmatpush1.msra.mxu0 %v277
    %1850 = vmatprep.subr.mxu0 %v282
    %1851 = vmatpush1.msra.mxu0 %v281
    %1852 = vmatprep.subr.mxu0 %v286
    %1853 = vmatpush1.msra.mxu0 %v285
    %1854 = vmatprep.subr.mxu0 0.0
    %1855 = vmatpush1.msra.mxu0 0.0
    %1856 = vmatprep.subr.mxu0 0.0
    %1857 = vmatpush1.msra.mxu0 0.0
    %1858 = vmatprep.subr.mxu0 0.0
    %1859 = vmatpush1.msra.mxu0 0.0
    %1860 = vmatprep.subr.mxu0 0.0
    %1861 = vmatpush1.msra.mxu0 0.0
    %1862 = vmatprep.subr.mxu0 0.0
    %1863 = vmatpush1.msra.mxu0 0.0
    %1864 = vmatprep.subr.mxu0 0.0
    %1865 = vmatpush1.msra.mxu0 0.0
    %1866 = vmatprep.subr.mxu0 0.0
    %1867 = vmatpush1.msra.mxu0 0.0
    %1868 = vmatprep.subr.mxu0 0.0
    %1869 = vmatpush1.msra.mxu0 0.0
    %1870 = vmatprep.subr.mxu0 0.0
    %1871 = vmatpush1.msra.mxu0 0.0
    %1872 = vmatprep.subr.mxu0 0.0
    %1873 = vmatpush1.msra.mxu0 0.0
    %1874 = vmatprep.subr.mxu0 0.0
    %1875 = vmatpush1.msra.mxu0 0.0
    %1876 = vmatprep.subr.mxu0 0.0
    %1877 = vmatpush1.msra.mxu0 0.0
    %1878 = vmatprep.subr.mxu0 0.0
    %1879 = vmatpush1.msra.mxu0 0.0
    %1880 = vmatprep.subr.mxu0 0.0
    %1881 = vmatpush1.msra.mxu0 0.0
    %1882 = vmatprep.subr.mxu0 0.0
    %1883 = vmatpush1.msra.mxu0 0.0
    %1884 = vmatprep.subr.mxu0 0.0
    %1885 = vmatpush1.msra.mxu0 0.0
    %1886 = vmatprep.mubr.f32.mxu0 0.0
    %1887 = vmatmul.mubr.f32.gmra.mrb[0].mxu0 %v1750
    %v1888 = vpop.f32.mrb[0].mxu0
    %v1889 = vadd.f32 0.0, %v1888
    %v1890 = vpop.f32.mrb[0].mxu0
    %v1891 = vadd.f32 0.0, %v1890
    %1892 = vdwg.mxu0
    %v1893 = vld [vmem:[#allocation2 + $0x50] sm:$0xff]
    %v1894 = vld [vmem:[#allocation2 + $0x58] sm:$0xff]
    %v1895 = vadd.f32 %v1893, %v1818
    %v1896 = vadd.f32 %v1894, %v1820
    %v1897 = vxor.u32 %v1895, 2147483648
    %v1898 = vxor.u32 %v1896, 2147483648
    %v1899 = vmul.f32 %v1897, 1.442695
    %v1900 = vpow.pop %v1899
    %v1901 = vmul.f32 %v1898, 1.442695
    %v1902 = vpow.pop %v1901
    %v1903 = vadd.f32 %v1900, 1.0
    %v1904 = vadd.f32 %v1902, 1.0
    %v1905 = vrcp.pop %v1903
    %v1906 = vmul.f32 1.0, %v1905
    %v1907 = vrcp.pop %v1904
    %v1908 = vmul.f32 1.0, %v1907
    %v1909 = vtanh.pop %v1896
    %v1910 = vmul.f32 %v1906, %v1633
    %1912 = vrot.lane.b32.xlu0 %v1909, 64
    %v1913 = vpop.permute.xlu0 %1912
    %v1915 = vmul.f32 %v1906, %v1913
    %1917 = vrot.lane.b32.xlu0 %v1915, 64
    %v1918 = vpop.permute.xlu0 %1917
    %v1920 = vadd.f32 %v1910, %v1918
    %v1921 = vtanh.pop %v1920
    %1923 = vrot.lane.b32.xlu0 %v1921, 64
    %v1924 = vpop.permute.xlu0 %1923
    %v1926 = vmul.f32 %v1908, %v1924
    %v1928 = vsel %vm491, %v1926, 0
    %1930 = vmatprep.subr.mxu0 %v288
    %1931 = vmatpush1.msra.mxu0 %v287
    %1932 = vmatprep.subr.mxu0 %v290
    %1933 = vmatpush1.msra.mxu0 %v289
    %1934 = vmatprep.subr.mxu0 %v292
    %1935 = vmatpush1.msra.mxu0 %v291
    %1936 = vmatprep.subr.mxu0 %v294
    %1937 = vmatpush1.msra.mxu0 %v293
    %1938 = vmatprep.subr.mxu0 %v296
    %1939 = vmatpush1.msra.mxu0 %v295
    %1940 = vmatprep.subr.mxu0 %v298
    %1941 = vmatpush1.msra.mxu0 %v297
    %1942 = vmatprep.subr.mxu0 %v300
    %1943 = vmatpush1.msra.mxu0 %v299
    %1944 = vmatprep.subr.mxu0 %v302
    %1945 = vmatpush1.msra.mxu0 %v301
    %1946 = vmatprep.subr.mxu0 0.0
    %1947 = vmatpush1.msra.mxu0 0.0
    %1948 = vmatprep.subr.mxu0 0.0
    %1949 = vmatpush1.msra.mxu0 0.0
    %1950 = vmatprep.subr.mxu0 0.0
    %1951 = vmatpush1.msra.mxu0 0.0
    %1952 = vmatprep.subr.mxu0 0.0
    %1953 = vmatpush1.msra.mxu0 0.0
    %1954 = vmatprep.subr.mxu0 0.0
    %1955 = vmatpush1.msra.mxu0 0.0
    %1956 = vmatprep.subr.mxu0 0.0
    %1957 = vmatpush1.msra.mxu0 0.0
    %1958 = vmatprep.subr.mxu0 0.0
    %1959 = vmatpush1.msra.mxu0 0.0
    %1960 = vmatprep.subr.mxu0 0.0
    %1961 = vmatpush1.msra.mxu0 0.0
    %1962 = vmatprep.subr.mxu0 0.0
    %1963 = vmatpush1.msra.mxu0 0.0
    %1964 = vmatprep.subr.mxu0 0.0
    %1965 = vmatpush1.msra.mxu0 0.0
    %1966 = vmatprep.subr.mxu0 0.0
    %1967 = vmatpush1.msra.mxu0 0.0
    %1968 = vmatprep.subr.mxu0 0.0
    %1969 = vmatpush1.msra.mxu0 0.0
    %1970 = vmatprep.subr.mxu0 0.0
    %1971 = vmatpush1.msra.mxu0 0.0
    %1972 = vmatprep.subr.mxu0 0.0
    %1973 = vmatpush1.msra.mxu0 0.0
    %1974 = vmatprep.subr.mxu0 0.0
    %1975 = vmatpush1.msra.mxu0 0.0
    %1976 = vmatprep.subr.mxu0 0.0
    %1977 = vmatpush1.msra.mxu0 0.0
    %1978 = vmatprep.subr.mxu0 0.0
    %1979 = vmatpush1.msra.mxu0 0.0
    %1980 = vmatprep.subr.mxu0 0.0
    %1981 = vmatpush1.msra.mxu0 0.0
    %1982 = vmatprep.subr.mxu0 0.0
    %1983 = vmatpush1.msra.mxu0 0.0
    %1984 = vmatprep.subr.mxu0 0.0
    %1985 = vmatpush1.msra.mxu0 0.0
    %1986 = vmatprep.subr.mxu0 0.0
    %1987 = vmatpush1.msra.mxu0 0.0
    %1988 = vmatprep.subr.mxu0 0.0
    %1989 = vmatpush1.msra.mxu0 0.0
    %1990 = vmatprep.subr.mxu0 0.0
    %1991 = vmatpush1.msra.mxu0 0.0
    %1992 = vmatprep.subr.mxu0 0.0
    %1993 = vmatpush1.msra.mxu0 0.0
    %1994 = vmatprep.mubr.f32.mxu0 0.0
    %1995 = vmatmul.mubr.f32.gmra.mrb[0].mxu0 %v1928
    %v1996 = vpop.f32.mrb[0].mxu0
    %v1997 = vadd.f32 %v308, %v1996
    %v1998 = vpop.f32.mrb[0].mxu0
    %v1999 = vadd.f32 %v312, %v1998
    %2000 = vdwg.mxu0
    %v2001 = vadd.f32 %v1997, %v1889
    %v2002 = vadd.f32 %v1999, %v1891
    %v2003 = vxor.u32 %v2001, 2147483648
    %v2004 = vxor.u32 %v2002, 2147483648
    %v2005 = vmul.f32 %v2003, 1.442695
    %v2006 = vpow.pop %v2005
    %v2007 = vmul.f32 %v2004, 1.442695
    %v2008 = vpow.pop %v2007
    %v2009 = vadd.f32 %v2006, 1.0
    %v2010 = vadd.f32 %v2008, 1.0
    %v2011 = vrcp.pop %v2009
    %v2012 = vmul.f32 1.0, %v2011
    %v2013 = vrcp.pop %v2010
    %v2014 = vmul.f32 1.0, %v2013
    %v2015 = vtanh.pop %v2002
    %v2016 = vmul.f32 %v2012, %v1739
    %2018 = vrot.lane.b32.xlu0 %v2015, 64
    %v2019 = vpop.permute.xlu0 %2018
    %v2021 = vmul.f32 %v2012, %v2019
    %2023 = vrot.lane.b32.xlu0 %v2021, 64
    %v2024 = vpop.permute.xlu0 %2023
    %v2026 = vadd.f32 %v2016, %v2024
    %v2027 = vtanh.pop %v2026
    %2029 = vrot.lane.b32.xlu0 %v2027, 64
    %v2030 = vpop.permute.xlu0 %2029
    %v2032 = vmul.f32 %v2014, %v2030
    %2034 = vrot.lane.b32.xlu0 %v2032, 64
    %v2035 = vpop.permute.xlu0 %2034
    %v2037 = vsel %vm491, %v1926, %v2035
    %2038 = vmatprep.subr.mxu0 %v224
    %2039 = vmatpush1.msra.mxu0 %v223
    %2040 = vmatprep.subr.mxu0 %v228
    %2041 = vmatpush1.msra.mxu0 %v227
    %2042 = vmatprep.subr.mxu0 %v232
    %2043 = vmatpush1.msra.mxu0 %v231
    %2044 = vmatprep.subr.mxu0 %v236
    %2045 = vmatpush1.msra.mxu0 %v235
    %2046 = vmatprep.subr.mxu0 %v240
    %2047 = vmatpush1.msra.mxu0 %v239
    %2048 = vmatprep.subr.mxu0 %v244
    %2049 = vmatpush1.msra.mxu0 %v243
    %2050 = vmatprep.subr.mxu0 %v248
    %2051 = vmatpush1.msra.mxu0 %v247
    %2052 = vmatprep.subr.mxu0 %v252
    %2053 = vmatpush1.msra.mxu0 %v251
    %2054 = vmatprep.subr.mxu0 %v256
    %2055 = vmatpush1.msra.mxu0 %v255
    %2056 = vmatprep.subr.mxu0 %v260
    %2057 = vmatpush1.msra.mxu0 %v259
    %2058 = vmatprep.subr.mxu0 %v264
    %2059 = vmatpush1.msra.mxu0 %v263
    %2060 = vmatprep.subr.mxu0 %v268
    %2061 = vmatpush1.msra.mxu0 %v267
    %2062 = vmatprep.subr.mxu0 %v272
    %2063 = vmatpush1.msra.mxu0 %v271
    %2064 = vmatprep.subr.mxu0 %v276
    %2065 = vmatpush1.msra.mxu0 %v275
    %2066 = vmatprep.subr.mxu0 %v280
    %2067 = vmatpush1.msra.mxu0 %v279
    %2068 = vmatprep.subr.mxu0 %v284
    %2069 = vmatpush1.msra.mxu0 %v283
    %2070 = vmatprep.subr.mxu0 0.0
    %2071 = vmatpush1.msra.mxu0 0.0
    %2072 = vmatprep.subr.mxu0 0.0
    %2073 = vmatpush1.msra.mxu0 0.0
    %2074 = vmatprep.subr.mxu0 0.0
    %2075 = vmatpush1.msra.mxu0 0.0
    %2076 = vmatprep.subr.mxu0 0.0
    %2077 = vmatpush1.msra.mxu0 0.0
    %2078 = vmatprep.subr.mxu0 0.0
    %2079 = vmatpush1.msra.mxu0 0.0
    %2080 = vmatprep.subr.mxu0 0.0
    %2081 = vmatpush1.msra.mxu0 0.0
    %2082 = vmatprep.subr.mxu0 0.0
    %2083 = vmatpush1.msra.mxu0 0.0
    %2084 = vmatprep.subr.mxu0 0.0
    %2085 = vmatpush1.msra.mxu0 0.0
    %2086 = vmatprep.subr.mxu0 0.0
    %2087 = vmatpush1.msra.mxu0 0.0
    %2088 = vmatprep.subr.mxu0 0.0
    %2089 = vmatpush1.msra.mxu0 0.0
    %2090 = vmatprep.subr.mxu0 0.0
    %2091 = vmatpush1.msra.mxu0 0.0
    %2092 = vmatprep.subr.mxu0 0.0
    %2093 = vmatpush1.msra.mxu0 0.0
    %2094 = vmatprep.subr.mxu0 0.0
    %2095 = vmatpush1.msra.mxu0 0.0
    %2096 = vmatprep.subr.mxu0 0.0
    %2097 = vmatpush1.msra.mxu0 0.0
    %2098 = vmatprep.subr.mxu0 0.0
    %2099 = vmatpush1.msra.mxu0 0.0
    %2100 = vmatprep.subr.mxu0 0.0
    %2101 = vmatpush1.msra.mxu0 0.0
    %2102 = vmatprep.mubr.f32.mxu0 0.0
    %2103 = vmatmul.mubr.f32.gmra.mrb[0].mxu0 %v2037
    %v2104 = vpop.f32.mrb[0].mxu0
    %v2105 = vadd.f32 0.0, %v2104
    %v2106 = vpop.f32.mrb[0].mxu0
    %v2107 = vadd.f32 0.0, %v2106
    %2108 = vdwg.mxu0
    %2109 = vmatprep.subr.mxu0 %v226
    %2110 = vmatpush1.msra.mxu0 %v225
    %2111 = vmatprep.subr.mxu0 %v230
    %2112 = vmatpush1.msra.mxu0 %v229
    %2113 = vmatprep.subr.mxu0 %v234
    %2114 = vmatpush1.msra.mxu0 %v233
    %2115 = vmatprep.subr.mxu0 %v238
    %2116 = vmatpush1.msra.mxu0 %v237
    %2117 = vmatprep.subr.mxu0 %v242
    %2118 = vmatpush1.msra.mxu0 %v241
    %2119 = vmatprep.subr.mxu0 %v246
    %2120 = vmatpush1.msra.mxu0 %v245
    %2121 = vmatprep.subr.mxu0 %v250
    %2122 = vmatpush1.msra.mxu0 %v249
    %2123 = vmatprep.subr.mxu0 %v254
    %2124 = vmatpush1.msra.mxu0 %v253
    %2125 = vmatprep.subr.mxu0 %v258
    %2126 = vmatpush1.msra.mxu0 %v257
    %2127 = vmatprep.subr.mxu0 %v262
    %2128 = vmatpush1.msra.mxu0 %v261
    %2129 = vmatprep.subr.mxu0 %v266
    %2130 = vmatpush1.msra.mxu0 %v265
    %2131 = vmatprep.subr.mxu0 %v270
    %2132 = vmatpush1.msra.mxu0 %v269
    %2133 = vmatprep.subr.mxu0 %v274
    %2134 = vmatpush1.msra.mxu0 %v273
    %2135 = vmatprep.subr.mxu0 %v278
    %2136 = vmatpush1.msra.mxu0 %v277
    %2137 = vmatprep.subr.mxu0 %v282
    %2138 = vmatpush1.msra.mxu0 %v281
    %2139 = vmatprep.subr.mxu0 %v286
    %2140 = vmatpush1.msra.mxu0 %v285
    %2141 = vmatprep.subr.mxu0 0.0
    %2142 = vmatpush1.msra.mxu0 0.0
    %2143 = vmatprep.subr.mxu0 0.0
    %2144 = vmatpush1.msra.mxu0 0.0
    %2145 = vmatprep.subr.mxu0 0.0
    %2146 = vmatpush1.msra.mxu0 0.0
    %2147 = vmatprep.subr.mxu0 0.0
    %2148 = vmatpush1.msra.mxu0 0.0
    %2149 = vmatprep.subr.mxu0 0.0
    %2150 = vmatpush1.msra.mxu0 0.0
    %2151 = vmatprep.subr.mxu0 0.0
    %2152 = vmatpush1.msra.mxu0 0.0
    %2153 = vmatprep.subr.mxu0 0.0
    %2154 = vmatpush1.msra.mxu0 0.0
    %2155 = vmatprep.subr.mxu0 0.0
    %2156 = vmatpush1.msra.mxu0 0.0
    %2157 = vmatprep.subr.mxu0 0.0
    %2158 = vmatpush1.msra.mxu0 0.0
    %2159 = vmatprep.subr.mxu0 0.0
    %2160 = vmatpush1.msra.mxu0 0.0
    %2161 = vmatprep.subr.mxu0 0.0
    %2162 = vmatpush1.msra.mxu0 0.0
    %2163 = vmatprep.subr.mxu0 0.0
    %2164 = vmatpush1.msra.mxu0 0.0
    %2165 = vmatprep.subr.mxu0 0.0
    %2166 = vmatpush1.msra.mxu0 0.0
    %2167 = vmatprep.subr.mxu0 0.0
    %2168 = vmatpush1.msra.mxu0 0.0
    %2169 = vmatprep.subr.mxu0 0.0
    %2170 = vmatpush1.msra.mxu0 0.0
    %2171 = vmatprep.subr.mxu0 0.0
    %2172 = vmatpush1.msra.mxu0 0.0
    %2173 = vmatprep.mubr.f32.mxu0 0.0
    %2174 = vmatmul.mubr.f32.gmra.mrb[0].mxu0 %v2037
    %v2175 = vpop.f32.mrb[0].mxu0
    %v2176 = vadd.f32 0.0, %v2175
    %v2177 = vpop.f32.mrb[0].mxu0
    %v2178 = vadd.f32 0.0, %v2177
    %2179 = vdwg.mxu0
    %v2180 = vld [vmem:[#allocation2 + $0x60] sm:$0xff]
    %v2181 = vld [vmem:[#allocation2 + $0x68] sm:$0xff]
    %v2182 = vadd.f32 %v2180, %v2105
    %v2183 = vadd.f32 %v2181, %v2107
    %v2184 = vxor.u32 %v2182, 2147483648
    %v2185 = vxor.u32 %v2183, 2147483648
    %v2186 = vmul.f32 %v2184, 1.442695
    %v2187 = vpow.pop %v2186
    %v2188 = vmul.f32 %v2185, 1.442695
    %v2189 = vpow.pop %v2188
    %v2190 = vadd.f32 %v2187, 1.0
    %v2191 = vadd.f32 %v2189, 1.0
    %v2192 = vrcp.pop %v2190
    %v2193 = vmul.f32 1.0, %v2192
    %v2194 = vrcp.pop %v2191
    %v2195 = vmul.f32 1.0, %v2194
    %v2196 = vtanh.pop %v2183
    %v2197 = vmul.f32 %v2193, %v1920
    %2199 = vrot.lane.b32.xlu0 %v2196, 64
    %v2200 = vpop.permute.xlu0 %2199
    %v2202 = vmul.f32 %v2193, %v2200
    %2204 = vrot.lane.b32.xlu0 %v2202, 64
    %v2205 = vpop.permute.xlu0 %2204
    %v2207 = vadd.f32 %v2197, %v2205
    %v2208 = vtanh.pop %v2207
    %2210 = vrot.lane.b32.xlu0 %v2208, 64
    %v2211 = vpop.permute.xlu0 %2210
    %v2213 = vmul.f32 %v2195, %v2211
    %v2215 = vsel %vm491, %v2213, 0
    %2217 = vmatprep.subr.mxu0 %v288
    %2218 = vmatpush1.msra.mxu0 %v287
    %2219 = vmatprep.subr.mxu0 %v290
    %2220 = vmatpush1.msra.mxu0 %v289
    %2221 = vmatprep.subr.mxu0 %v292
    %2222 = vmatpush1.msra.mxu0 %v291
    %2223 = vmatprep.subr.mxu0 %v294
    %2224 = vmatpush1.msra.mxu0 %v293
    %2225 = vmatprep.subr.mxu0 %v296
    %2226 = vmatpush1.msra.mxu0 %v295
    %2227 = vmatprep.subr.mxu0 %v298
    %2228 = vmatpush1.msra.mxu0 %v297
    %2229 = vmatprep.subr.mxu0 %v300
    %2230 = vmatpush1.msra.mxu0 %v299
    %2231 = vmatprep.subr.mxu0 %v302
    %2232 = vmatpush1.msra.mxu0 %v301
    %2233 = vmatprep.subr.mxu0 0.0
    %2234 = vmatpush1.msra.mxu0 0.0
    %2235 = vmatprep.subr.mxu0 0.0
    %2236 = vmatpush1.msra.mxu0 0.0
    %2237 = vmatprep.subr.mxu0 0.0
    %2238 = vmatpush1.msra.mxu0 0.0
    %2239 = vmatprep.subr.mxu0 0.0
    %2240 = vmatpush1.msra.mxu0 0.0
    %2241 = vmatprep.subr.mxu0 0.0
    %2242 = vmatpush1.msra.mxu0 0.0
    %2243 = vmatprep.subr.mxu0 0.0
    %2244 = vmatpush1.msra.mxu0 0.0
    %2245 = vmatprep.subr.mxu0 0.0
    %2246 = vmatpush1.msra.mxu0 0.0
    %2247 = vmatprep.subr.mxu0 0.0
    %2248 = vmatpush1.msra.mxu0 0.0
    %2249 = vmatprep.subr.mxu0 0.0
    %2250 = vmatpush1.msra.mxu0 0.0
    %2251 = vmatprep.subr.mxu0 0.0
    %2252 = vmatpush1.msra.mxu0 0.0
    %2253 = vmatprep.subr.mxu0 0.0
    %2254 = vmatpush1.msra.mxu0 0.0
    %2255 = vmatprep.subr.mxu0 0.0
    %2256 = vmatpush1.msra.mxu0 0.0
    %2257 = vmatprep.subr.mxu0 0.0
    %2258 = vmatpush1.msra.mxu0 0.0
    %2259 = vmatprep.subr.mxu0 0.0
    %2260 = vmatpush1.msra.mxu0 0.0
    %2261 = vmatprep.subr.mxu0 0.0
    %2262 = vmatpush1.msra.mxu0 0.0
    %2263 = vmatprep.subr.mxu0 0.0
    %2264 = vmatpush1.msra.mxu0 0.0
    %2265 = vmatprep.subr.mxu0 0.0
    %2266 = vmatpush1.msra.mxu0 0.0
    %2267 = vmatprep.subr.mxu0 0.0
    %2268 = vmatpush1.msra.mxu0 0.0
    %2269 = vmatprep.subr.mxu0 0.0
    %2270 = vmatpush1.msra.mxu0 0.0
    %2271 = vmatprep.subr.mxu0 0.0
    %2272 = vmatpush1.msra.mxu0 0.0
    %2273 = vmatprep.subr.mxu0 0.0
    %2274 = vmatpush1.msra.mxu0 0.0
    %2275 = vmatprep.subr.mxu0 0.0
    %2276 = vmatpush1.msra.mxu0 0.0
    %2277 = vmatprep.subr.mxu0 0.0
    %2278 = vmatpush1.msra.mxu0 0.0
    %2279 = vmatprep.subr.mxu0 0.0
    %2280 = vmatpush1.msra.mxu0 0.0
    %2281 = vmatprep.mubr.f32.mxu0 0.0
    %2282 = vmatmul.mubr.f32.gmra.mrb[0].mxu0 %v2215
    %v2283 = vpop.f32.mrb[0].mxu0
    %v2284 = vadd.f32 %v308, %v2283
    %v2285 = vpop.f32.mrb[0].mxu0
    %v2286 = vadd.f32 %v312, %v2285
    %2287 = vdwg.mxu0
    %v2288 = vadd.f32 %v2284, %v2176
    %v2289 = vadd.f32 %v2286, %v2178
    %v2290 = vxor.u32 %v2288, 2147483648
    %v2291 = vxor.u32 %v2289, 2147483648
    %v2292 = vmul.f32 %v2290, 1.442695
    %v2293 = vpow.pop %v2292
    %v2294 = vmul.f32 %v2291, 1.442695
    %v2295 = vpow.pop %v2294
    %v2296 = vadd.f32 %v2293, 1.0
    %v2297 = vadd.f32 %v2295, 1.0
    %v2298 = vrcp.pop %v2296
    %v2299 = vmul.f32 1.0, %v2298
    %v2300 = vrcp.pop %v2297
    %v2301 = vmul.f32 1.0, %v2300
    %v2302 = vtanh.pop %v2289
    %v2303 = vmul.f32 %v2299, %v2026
    %2305 = vrot.lane.b32.xlu0 %v2302, 64
    %v2306 = vpop.permute.xlu0 %2305
    %v2308 = vmul.f32 %v2299, %v2306
    %2310 = vrot.lane.b32.xlu0 %v2308, 64
    %v2311 = vpop.permute.xlu0 %2310
    %v2313 = vadd.f32 %v2303, %v2311
    %v2314 = vtanh.pop %v2313
    %2316 = vrot.lane.b32.xlu0 %v2314, 64
    %v2317 = vpop.permute.xlu0 %2316
    %v2319 = vmul.f32 %v2301, %v2317
    %2321 = vrot.lane.b32.xlu0 %v2319, 64
    %v2322 = vpop.permute.xlu0 %2321
    %v2324 = vsel %vm491, %v2213, %v2322
    %2325 = vmatprep.subr.mxu0 %v224
    %2326 = vmatpush1.msra.mxu0 %v223
    %2327 = vmatprep.subr.mxu0 %v228
    %2328 = vmatpush1.msra.mxu0 %v227
    %2329 = vmatprep.subr.mxu0 %v232
    %2330 = vmatpush1.msra.mxu0 %v231
    %2331 = vmatprep.subr.mxu0 %v236
    %2332 = vmatpush1.msra.mxu0 %v235
    %2333 = vmatprep.subr.mxu0 %v240
    %2334 = vmatpush1.msra.mxu0 %v239
    %2335 = vmatprep.subr.mxu0 %v244
    %2336 = vmatpush1.msra.mxu0 %v243
    %2337 = vmatprep.subr.mxu0 %v248
    %2338 = vmatpush1.msra.mxu0 %v247
    %2339 = vmatprep.subr.mxu0 %v252
    %2340 = vmatpush1.msra.mxu0 %v251
    %2341 = vmatprep.subr.mxu0 %v256
    %2342 = vmatpush1.msra.mxu0 %v255
    %2343 = vmatprep.subr.mxu0 %v260
    %2344 = vmatpush1.msra.mxu0 %v259
    %2345 = vmatprep.subr.mxu0 %v264
    %2346 = vmatpush1.msra.mxu0 %v263
    %2347 = vmatprep.subr.mxu0 %v268
    %2348 = vmatpush1.msra.mxu0 %v267
    %2349 = vmatprep.subr.mxu0 %v272
    %2350 = vmatpush1.msra.mxu0 %v271
    %2351 = vmatprep.subr.mxu0 %v276
    %2352 = vmatpush1.msra.mxu0 %v275
    %2353 = vmatprep.subr.mxu0 %v280
    %2354 = vmatpush1.msra.mxu0 %v279
    %2355 = vmatprep.subr.mxu0 %v284
    %2356 = vmatpush1.msra.mxu0 %v283
    %2357 = vmatprep.subr.mxu0 0.0
    %2358 = vmatpush1.msra.mxu0 0.0
    %2359 = vmatprep.subr.mxu0 0.0
    %2360 = vmatpush1.msra.mxu0 0.0
    %2361 = vmatprep.subr.mxu0 0.0
    %2362 = vmatpush1.msra.mxu0 0.0
    %2363 = vmatprep.subr.mxu0 0.0
    %2364 = vmatpush1.msra.mxu0 0.0
    %2365 = vmatprep.subr.mxu0 0.0
    %2366 = vmatpush1.msra.mxu0 0.0
    %2367 = vmatprep.subr.mxu0 0.0
    %2368 = vmatpush1.msra.mxu0 0.0
    %2369 = vmatprep.subr.mxu0 0.0
    %2370 = vmatpush1.msra.mxu0 0.0
    %2371 = vmatprep.subr.mxu0 0.0
    %2372 = vmatpush1.msra.mxu0 0.0
    %2373 = vmatprep.subr.mxu0 0.0
    %2374 = vmatpush1.msra.mxu0 0.0
    %2375 = vmatprep.subr.mxu0 0.0
    %2376 = vmatpush1.msra.mxu0 0.0
    %2377 = vmatprep.subr.mxu0 0.0
    %2378 = vmatpush1.msra.mxu0 0.0
    %2379 = vmatprep.subr.mxu0 0.0
    %2380 = vmatpush1.msra.mxu0 0.0
    %2381 = vmatprep.subr.mxu0 0.0
    %2382 = vmatpush1.msra.mxu0 0.0
    %2383 = vmatprep.subr.mxu0 0.0
    %2384 = vmatpush1.msra.mxu0 0.0
    %2385 = vmatprep.subr.mxu0 0.0
    %2386 = vmatpush1.msra.mxu0 0.0
    %2387 = vmatprep.subr.mxu0 0.0
    %2388 = vmatpush1.msra.mxu0 0.0
    %2389 = vmatprep.mubr.f32.mxu0 0.0
    %2390 = vmatmul.mubr.f32.gmra.mrb[0].mxu0 %v2324
    %v2391 = vpop.f32.mrb[0].mxu0
    %v2392 = vadd.f32 0.0, %v2391
    %v2393 = vpop.f32.mrb[0].mxu0
    %v2394 = vadd.f32 0.0, %v2393
    %2395 = vdwg.mxu0
    %2396 = vmatprep.subr.mxu0 %v226
    %2397 = vmatpush1.msra.mxu0 %v225
    %2398 = vmatprep.subr.mxu0 %v230
    %2399 = vmatpush1.msra.mxu0 %v229
    %2400 = vmatprep.subr.mxu0 %v234
    %2401 = vmatpush1.msra.mxu0 %v233
    %2402 = vmatprep.subr.mxu0 %v238
    %2403 = vmatpush1.msra.mxu0 %v237
    %2404 = vmatprep.subr.mxu0 %v242
    %2405 = vmatpush1.msra.mxu0 %v241
    %2406 = vmatprep.subr.mxu0 %v246
    %2407 = vmatpush1.msra.mxu0 %v245
    %2408 = vmatprep.subr.mxu0 %v250
    %2409 = vmatpush1.msra.mxu0 %v249
    %2410 = vmatprep.subr.mxu0 %v254
    %2411 = vmatpush1.msra.mxu0 %v253
    %2412 = vmatprep.subr.mxu0 %v258
    %2413 = vmatpush1.msra.mxu0 %v257
    %2414 = vmatprep.subr.mxu0 %v262
    %2415 = vmatpush1.msra.mxu0 %v261
    %2416 = vmatprep.subr.mxu0 %v266
    %2417 = vmatpush1.msra.mxu0 %v265
    %2418 = vmatprep.subr.mxu0 %v270
    %2419 = vmatpush1.msra.mxu0 %v269
    %2420 = vmatprep.subr.mxu0 %v274
    %2421 = vmatpush1.msra.mxu0 %v273
    %2422 = vmatprep.subr.mxu0 %v278
    %2423 = vmatpush1.msra.mxu0 %v277
    %2424 = vmatprep.subr.mxu0 %v282
    %2425 = vmatpush1.msra.mxu0 %v281
    %2426 = vmatprep.subr.mxu0 %v286
    %2427 = vmatpush1.msra.mxu0 %v285
    %2428 = vmatprep.subr.mxu0 0.0
    %2429 = vmatpush1.msra.mxu0 0.0
    %2430 = vmatprep.subr.mxu0 0.0
    %2431 = vmatpush1.msra.mxu0 0.0
    %2432 = vmatprep.subr.mxu0 0.0
    %2433 = vmatpush1.msra.mxu0 0.0
    %2434 = vmatprep.subr.mxu0 0.0
    %2435 = vmatpush1.msra.mxu0 0.0
    %2436 = vmatprep.subr.mxu0 0.0
    %2437 = vmatpush1.msra.mxu0 0.0
    %2438 = vmatprep.subr.mxu0 0.0
    %2439 = vmatpush1.msra.mxu0 0.0
    %2440 = vmatprep.subr.mxu0 0.0
    %2441 = vmatpush1.msra.mxu0 0.0
    %2442 = vmatprep.subr.mxu0 0.0
    %2443 = vmatpush1.msra.mxu0 0.0
    %2444 = vmatprep.subr.mxu0 0.0
    %2445 = vmatpush1.msra.mxu0 0.0
    %2446 = vmatprep.subr.mxu0 0.0
    %2447 = vmatpush1.msra.mxu0 0.0
    %2448 = vmatprep.subr.mxu0 0.0
    %2449 = vmatpush1.msra.mxu0 0.0
    %2450 = vmatprep.subr.mxu0 0.0
    %2451 = vmatpush1.msra.mxu0 0.0
    %2452 = vmatprep.subr.mxu0 0.0
    %2453 = vmatpush1.msra.mxu0 0.0
    %2454 = vmatprep.subr.mxu0 0.0
    %2455 = vmatpush1.msra.mxu0 0.0
    %2456 = vmatprep.subr.mxu0 0.0
    %2457 = vmatpush1.msra.mxu0 0.0
    %2458 = vmatprep.subr.mxu0 0.0
    %2459 = vmatpush1.msra.mxu0 0.0
    %2460 = vmatprep.mubr.f32.mxu0 0.0
    %2461 = vmatmul.mubr.f32.gmra.mrb[0].mxu0 %v2324
    %v2462 = vpop.f32.mrb[0].mxu0
    %v2463 = vadd.f32 0.0, %v2462
    %v2464 = vpop.f32.mrb[0].mxu0
    %v2465 = vadd.f32 0.0, %v2464
    %2466 = vdwg.mxu0
    %v2467 = vld [vmem:[#allocation2 + $0x70] sm:$0xff]
    %v2468 = vld [vmem:[#allocation2 + $0x78] sm:$0xff]
    %v2469 = vadd.f32 %v2467, %v2392
    %v2470 = vadd.f32 %v2468, %v2394
    %v2471 = vxor.u32 %v2469, 2147483648
    %v2472 = vxor.u32 %v2470, 2147483648
    %v2473 = vmul.f32 %v2471, 1.442695
    %v2474 = vpow.pop %v2473
    %v2475 = vmul.f32 %v2472, 1.442695
    %v2476 = vpow.pop %v2475
    %v2477 = vadd.f32 %v2474, 1.0
    %v2478 = vadd.f32 %v2476, 1.0
    %v2479 = vrcp.pop %v2477
    %v2480 = vmul.f32 1.0, %v2479
    %v2481 = vrcp.pop %v2478
    %v2482 = vmul.f32 1.0, %v2481
    %v2483 = vtanh.pop %v2470
    %v2484 = vmul.f32 %v2480, %v2207
    %2486 = vrot.lane.b32.xlu0 %v2483, 64
    %v2487 = vpop.permute.xlu0 %2486
    %v2489 = vmul.f32 %v2480, %v2487
    %2491 = vrot.lane.b32.xlu0 %v2489, 64
    %v2492 = vpop.permute.xlu0 %2491
    %v2494 = vadd.f32 %v2484, %v2492
    %v2495 = vtanh.pop %v2494
    %2497 = vrot.lane.b32.xlu0 %v2495, 64
    %v2498 = vpop.permute.xlu0 %2497
    %v2500 = vmul.f32 %v2482, %v2498
    %v2502 = vsel %vm491, %v2500, 0
    %2504 = vmatprep.subr.mxu0 %v288
    %2505 = vmatpush1.msra.mxu0 %v287
    %2506 = vmatprep.subr.mxu0 %v290
    %2507 = vmatpush1.msra.mxu0 %v289
    %2508 = vmatprep.subr.mxu0 %v292
    %2509 = vmatpush1.msra.mxu0 %v291
    %2510 = vmatprep.subr.mxu0 %v294
    %2511 = vmatpush1.msra.mxu0 %v293
    %2512 = vmatprep.subr.mxu0 %v296
    %2513 = vmatpush1.msra.mxu0 %v295
    %2514 = vmatprep.subr.mxu0 %v298
    %2515 = vmatpush1.msra.mxu0 %v297
    %2516 = vmatprep.subr.mxu0 %v300
    %2517 = vmatpush1.msra.mxu0 %v299
    %2518 = vmatprep.subr.mxu0 %v302
    %2519 = vmatpush1.msra.mxu0 %v301
    %2520 = vmatprep.subr.mxu0 0.0
    %2521 = vmatpush1.msra.mxu0 0.0
    %2522 = vmatprep.subr.mxu0 0.0
    %2523 = vmatpush1.msra.mxu0 0.0
    %2524 = vmatprep.subr.mxu0 0.0
    %2525 = vmatpush1.msra.mxu0 0.0
    %2526 = vmatprep.subr.mxu0 0.0
    %2527 = vmatpush1.msra.mxu0 0.0
    %2528 = vmatprep.subr.mxu0 0.0
    %2529 = vmatpush1.msra.mxu0 0.0
    %2530 = vmatprep.subr.mxu0 0.0
    %2531 = vmatpush1.msra.mxu0 0.0
    %2532 = vmatprep.subr.mxu0 0.0
    %2533 = vmatpush1.msra.mxu0 0.0
    %2534 = vmatprep.subr.mxu0 0.0
    %2535 = vmatpush1.msra.mxu0 0.0
    %2536 = vmatprep.subr.mxu0 0.0
    %2537 = vmatpush1.msra.mxu0 0.0
    %2538 = vmatprep.subr.mxu0 0.0
    %2539 = vmatpush1.msra.mxu0 0.0
    %2540 = vmatprep.subr.mxu0 0.0
    %2541 = vmatpush1.msra.mxu0 0.0
    %2542 = vmatprep.subr.mxu0 0.0
    %2543 = vmatpush1.msra.mxu0 0.0
    %2544 = vmatprep.subr.mxu0 0.0
    %2545 = vmatpush1.msra.mxu0 0.0
    %2546 = vmatprep.subr.mxu0 0.0
    %2547 = vmatpush1.msra.mxu0 0.0
    %2548 = vmatprep.subr.mxu0 0.0
    %2549 = vmatpush1.msra.mxu0 0.0
    %2550 = vmatprep.subr.mxu0 0.0
    %2551 = vmatpush1.msra.mxu0 0.0
    %2552 = vmatprep.subr.mxu0 0.0
    %2553 = vmatpush1.msra.mxu0 0.0
    %2554 = vmatprep.subr.mxu0 0.0
    %2555 = vmatpush1.msra.mxu0 0.0
    %2556 = vmatprep.subr.mxu0 0.0
    %2557 = vmatpush1.msra.mxu0 0.0
    %2558 = vmatprep.subr.mxu0 0.0
    %2559 = vmatpush1.msra.mxu0 0.0
    %2560 = vmatprep.subr.mxu0 0.0
    %2561 = vmatpush1.msra.mxu0 0.0
    %2562 = vmatprep.subr.mxu0 0.0
    %2563 = vmatpush1.msra.mxu0 0.0
    %2564 = vmatprep.subr.mxu0 0.0
    %2565 = vmatpush1.msra.mxu0 0.0
    %2566 = vmatprep.subr.mxu0 0.0
    %2567 = vmatpush1.msra.mxu0 0.0
    %2568 = vmatprep.mubr.f32.mxu0 0.0
    %2569 = vmatmul.mubr.f32.gmra.mrb[0].mxu0 %v2502
    %v2570 = vpop.f32.mrb[0].mxu0
    %v2571 = vadd.f32 %v308, %v2570
    %v2572 = vpop.f32.mrb[0].mxu0
    %v2573 = vadd.f32 %v312, %v2572
    %2574 = vdwg.mxu0
    %v2575 = vadd.f32 %v2571, %v2463
    %v2576 = vadd.f32 %v2573, %v2465
    %v2577 = vxor.u32 %v2575, 2147483648
    %v2578 = vxor.u32 %v2576, 2147483648
    %v2579 = vmul.f32 %v2577, 1.442695
    %v2580 = vpow.pop %v2579
    %v2581 = vmul.f32 %v2578, 1.442695
    %v2582 = vpow.pop %v2581
    %v2583 = vadd.f32 %v2580, 1.0
    %v2584 = vadd.f32 %v2582, 1.0
    %v2585 = vrcp.pop %v2583
    %v2586 = vmul.f32 1.0, %v2585
    %v2587 = vrcp.pop %v2584
    %v2588 = vmul.f32 1.0, %v2587
    %v2589 = vtanh.pop %v2576
    %v2590 = vmul.f32 %v2586, %v2313
    %2592 = vrot.lane.b32.xlu0 %v2589, 64
    %v2593 = vpop.permute.xlu0 %2592
    %v2595 = vmul.f32 %v2586, %v2593
    %2597 = vrot.lane.b32.xlu0 %v2595, 64
    %v2598 = vpop.permute.xlu0 %2597
    %v2600 = vadd.f32 %v2590, %v2598
    %v2601 = vtanh.pop %v2600
    %2603 = vrot.lane.b32.xlu0 %v2601, 64
    %v2604 = vpop.permute.xlu0 %2603
    %v2606 = vmul.f32 %v2588, %v2604
    %v2607 = vld [vmem:[%s6] sm:$0xff]
    %v2608 = vld [vmem:[%s6 + $0x8] sm:$0xff]
    %v2609 = vld [vmem:[%s6 + $0x10] sm:$0xff]
    %v2610 = vld [vmem:[%s6 + $0x18] sm:$0xff]
    %v2611 = vld [vmem:[%s6 + $0x20] sm:$0xff]
    %v2612 = vld [vmem:[%s6 + $0x28] sm:$0xff]
    %v2613 = vld [vmem:[%s6 + $0x30] sm:$0xff]
    %v2614 = vld [vmem:[%s6 + $0x38] sm:$0xff]
    %v2615 = vld [vmem:[#allocation3] sm:$0x1]
    %v2617 = vlaneseq
    %v2618 = vshrl.u32 %v2617, 7
    %v2619 = vsub.s32 0, %v2618
    %v2620 = vrot.slane %v2615, %v2619
    %v2623 = vsel %vm491, %v2606, 0
    %2625 = vmatprep.subr.mxu0 0.0
    %2626 = vmatpush1.msra.mxu0 %v2607
    %2627 = vmatprep.subr.mxu0 0.0
    %2628 = vmatpush1.msra.mxu0 %v2608
    %2629 = vmatprep.subr.mxu0 0.0
    %2630 = vmatpush1.msra.mxu0 %v2609
    %2631 = vmatprep.subr.mxu0 0.0
    %2632 = vmatpush1.msra.mxu0 %v2610
    %2633 = vmatprep.subr.mxu0 0.0
    %2634 = vmatpush1.msra.mxu0 %v2611
    %2635 = vmatprep.subr.mxu0 0.0
    %2636 = vmatpush1.msra.mxu0 %v2612
    %2637 = vmatprep.subr.mxu0 0.0
    %2638 = vmatpush1.msra.mxu0 %v2613
    %2639 = vmatprep.subr.mxu0 0.0
    %2640 = vmatpush1.msra.mxu0 %v2614
    %2641 = vmatprep.subr.mxu0 0.0
    %2642 = vmatpush1.msra.mxu0 0.0
    %2643 = vmatprep.subr.mxu0 0.0
    %2644 = vmatpush1.msra.mxu0 0.0
    %2645 = vmatprep.subr.mxu0 0.0
    %2646 = vmatpush1.msra.mxu0 0.0
    %2647 = vmatprep.subr.mxu0 0.0
    %2648 = vmatpush1.msra.mxu0 0.0
    %2649 = vmatprep.subr.mxu0 0.0
    %2650 = vmatpush1.msra.mxu0 0.0
    %2651 = vmatprep.subr.mxu0 0.0
    %2652 = vmatpush1.msra.mxu0 0.0
    %2653 = vmatprep.subr.mxu0 0.0
    %2654 = vmatpush1.msra.mxu0 0.0
    %2655 = vmatprep.subr.mxu0 0.0
    %2656 = vmatpush1.msra.mxu0 0.0
    %2657 = vmatprep.subr.mxu0 0.0
    %2658 = vmatpush1.msra.mxu0 0.0
    %2659 = vmatprep.subr.mxu0 0.0
    %2660 = vmatpush1.msra.mxu0 0.0
    %2661 = vmatprep.subr.mxu0 0.0
    %2662 = vmatpush1.msra.mxu0 0.0
    %2663 = vmatprep.subr.mxu0 0.0
    %2664 = vmatpush1.msra.mxu0 0.0
    %2665 = vmatprep.subr.mxu0 0.0
    %2666 = vmatpush1.msra.mxu0 0.0
    %2667 = vmatprep.subr.mxu0 0.0
    %2668 = vmatpush1.msra.mxu0 0.0
    %2669 = vmatprep.subr.mxu0 0.0
    %2670 = vmatpush1.msra.mxu0 0.0
    %2671 = vmatprep.subr.mxu0 0.0
    %2672 = vmatpush1.msra.mxu0 0.0
    %2673 = vmatprep.subr.mxu0 0.0
    %2674 = vmatpush1.msra.mxu0 0.0
    %2675 = vmatprep.subr.mxu0 0.0
    %2676 = vmatpush1.msra.mxu0 0.0
    %2677 = vmatprep.subr.mxu0 0.0
    %2678 = vmatpush1.msra.mxu0 0.0
    %2679 = vmatprep.subr.mxu0 0.0
    %2680 = vmatpush1.msra.mxu0 0.0
    %2681 = vmatprep.subr.mxu0 0.0
    %2682 = vmatpush1.msra.mxu0 0.0
    %2683 = vmatprep.subr.mxu0 0.0
    %2684 = vmatpush1.msra.mxu0 0.0
    %2685 = vmatprep.subr.mxu0 0.0
    %2686 = vmatpush1.msra.mxu0 0.0
    %2687 = vmatprep.subr.mxu0 0.0
    %2688 = vmatpush1.msra.mxu0 0.0
    %2689 = vmatprep.mubr.f32.mxu0 0.0
    %2690 = vmatmul.mubr.f32.gmra.mrb[0].mxu0 %v2623
    %v2691 = vpop.f32.mrb[0].mxu0
    %v2692 = vadd.f32 %v2620, %v2691
    %v2693 = vpop.f32.mrb[0].mxu0
    %2694 = vdwg.mxu0
    %v2695 = vxor.u32 %v2692, 2147483648
    %v2696 = vmul.f32 %v2695, 1.442695
    %v2697 = vpow.pop %v2696
    %v2698 = vadd.f32 %v2697, 1.0
    %v2699 = vrcp.pop %v2698
    %v2700 = vmul.f32 1.0, %v2699
    %vm2701 = vcmask 7168
    %2702 = vst.msk [vmem:[%s8] sm:$0xff] %vm2701, %v2700
    // Predicated region
    $region38: #{tpu_custom_call.1} parent=1 // pred_check
      _
    $region39: #{tpu_custom_call.1} parent=1 // pred_check_branch
      %2704 = sbr.rel (0) target = $region41
    $region40: #{tpu_custom_call.1} parent=1 // pred_region
      _
    $region41: #{tpu_custom_call.1} parent=1 // pred_fallthru
      _
    // Predicated region
    $region42: #{tpu_custom_call.1} parent=1 // pred_check
      _
    $region43: #{tpu_custom_call.1} parent=1 // pred_check_branch
      %2706 = sbr.rel (0) target = $region45
    $region44: #{tpu_custom_call.1} parent=1 // pred_region
      _
    $region45: #{tpu_custom_call.1} parent=1 // pred_fallthru
      _
    %2707 = vsyncpa [#allocation5], 1

</llo_original>
